<compile_context>
chip_gen: v7x
topology: tpu7x:2x2x1
jax: 0.10.0
libtpu: 0.0.40
codegen_flags: <defaults>
</compile_context>

<pallas_src>
import functools

import numpy as np

import jax
import jax.numpy as jnp
from jax.experimental import pallas as pl
from jax.experimental.pallas import tpu as pltpu


# --------------------------------------------------------------------------
# Fused whole-network kernel
# --------------------------------------------------------------------------
def _disc_fused_kernel(p1x_ref, w1_ref, bn1_ref,
                       g2_ref, w2_ref, bn2_ref,
                       g3_ref, w3_ref, b3_ref,
                       out_ref, gat2_ref, gat3_ref,
                       *, n_taps, c1, c2, m2, m3, eps, slope):
    f32 = jnp.float32
    bf16 = jnp.bfloat16

    def bias_bn_lrelu(y, bn_ref):
        # conv bias + BatchNorm2d (training-mode biased batch stats, f32 math)
        # + LeakyReLU(slope) via jnp.maximum (valid for 0 < slope < 1).
        y = y + bn_ref[0:1, :]
        inv_m = 1.0 / float(y.shape[0])
        mean = jnp.sum(y, axis=0, keepdims=True) * inv_m
        d = y - mean
        var = jnp.sum(d * d, axis=0, keepdims=True) * inv_m
        yn = d * jax.lax.rsqrt(var + eps)            # rsqrt -> EUP slot
        yn = yn * bn_ref[1:2, :] + bn_ref[2:3, :]
        return jnp.maximum(yn, slope * yn)

    # ----- Layer 1: 4x4 / stride-2 conv as im2col GEMM + BN + LeakyReLU -----
    y1 = jnp.dot(p1x_ref[...], w1_ref[...], preferred_element_type=f32)
    h1 = bias_bn_lrelu(y1, bn1_ref).astype(bf16)          # (M1, C1), stays in VMEM

    # ----- Layer 2: conv via 0/1 row-gather matmul + 16 per-tap weight matmuls
    # gat2[t*M2 + m, :] = h1 row feeding tap t of output position m.
    gat2_ref[...] = jnp.dot(g2_ref[...], h1, preferred_element_type=f32)
    y2 = jnp.zeros((m2, c2), f32)
    for t in range(n_taps):                               # static 16-tap accumulation
        rows = gat2_ref[t * m2:(t + 1) * m2, :].astype(bf16)
        y2 = y2 + jnp.dot(rows, w2_ref[t * c1:(t + 1) * c1, :],
                          preferred_element_type=f32)
    h2 = bias_bn_lrelu(y2, bn2_ref).astype(bf16)          # (M2, C2)

    # ----- Layer 3: conv + bias -> logits (written directly as (M3, 1)) -----
    gat3_ref[...] = jnp.dot(g3_ref[...], h2, preferred_element_type=f32)
    y3 = jnp.zeros((m3, 1), f32)
    for t in range(n_taps):
        rows = gat3_ref[t * m3:(t + 1) * m3, :].astype(bf16)
        y3 = y3 + jnp.dot(rows, w3_ref[t * c2:(t + 1) * c2, :],
                          preferred_element_type=f32)
    out_ref[...] = y3 + b3_ref[...]


# --------------------------------------------------------------------------
# XLA-level helpers (shape-only constants + layer-1 im2col on the raw input)
# --------------------------------------------------------------------------
def _im2col(x_nhwc, kh, kw, stride):
    """Patch extraction for the input image. Rows (n, oh, ow); cols (kh, kw, c)."""
    N, H, W, C = x_nhwc.shape
    OH = (H - kh) // stride + 1
    OW = (W - kw) // stride + 1
    cols = []
    for i in range(kh):
        for j in range(kw):
            cols.append(x_nhwc[:, i:i + stride * (OH - 1) + 1:stride,
                               j:j + stride * (OW - 1) + 1:stride, :])
    return jnp.stack(cols, axis=3).reshape(N * OH * OW, kh * kw * C)


def _gather_matrix(N, IH, IW, OH, OW, k=4, s=2):
    """Constant 0/1 matrix G: (k*k*N*OH*OW, N*IH*IW).

    Row t*M_out + m (m = n*OH*OW + oh*OW + ow) selects the input row
    n*IH*IW + (s*oh + ki)*IW + (s*ow + kj) for tap t = ki*k + kj.
    """
    m_in, m_out = N * IH * IW, N * OH * OW
    t_i, t_j = np.divmod(np.arange(k * k), k)
    n, r = np.divmod(np.arange(m_out), OH * OW)
    oh, ow = np.divmod(r, OW)
    src = (n[None, :] * IH * IW
           + (s * oh[None, :] + t_i[:, None]) * IW
           + (s * ow[None, :] + t_j[:, None]))            # (k*k, m_out)
    G = np.zeros((k * k * m_out, m_in), np.float32)
    G[np.arange(k * k * m_out), src.reshape(-1)] = 1.0
    return G


# --------------------------------------------------------------------------
# Discriminator forward (single fused pallas_call) + params
# --------------------------------------------------------------------------
def init_discriminator_params(key, hidden_dim=16, image_channel=1):
    k1, k2, k3 = jax.random.split(key, 3)
    # Conv weights stored HWIO (KH, KW, Cin, Cout); BatchNorm affine defaults.
    return {
        "w1": 0.05 * jax.random.normal(k1, (4, 4, image_channel, hidden_dim), jnp.float32),
        "b1": jnp.zeros((hidden_dim,), jnp.float32),
        "g1": jnp.ones((hidden_dim,), jnp.float32),
        "be1": jnp.zeros((hidden_dim,), jnp.float32),
        "w2": 0.05 * jax.random.normal(k2, (4, 4, hidden_dim, hidden_dim * 2), jnp.float32),
        "b2": jnp.zeros((hidden_dim * 2,), jnp.float32),
        "g2": jnp.ones((hidden_dim * 2,), jnp.float32),
        "be2": jnp.zeros((hidden_dim * 2,), jnp.float32),
        "w3": 0.05 * jax.random.normal(k3, (4, 4, hidden_dim * 2, 1), jnp.float32),
        "b3": jnp.zeros((1,), jnp.float32),
    }


def discriminator_forward(x_nchw, p, *, eps=1e-5, slope=0.2):
    N, C, H, W = x_nchw.shape
    KH = KW = 4
    S = 2
    T = KH * KW
    C1 = p["w1"].shape[-1]
    C2 = p["w2"].shape[-1]
    OH1, OW1 = (H - KH) // S + 1, (W - KW) // S + 1
    OH2, OW2 = (OH1 - KH) // S + 1, (OW1 - KW) // S + 1
    OH3, OW3 = (OH2 - KH) // S + 1, (OW2 - KW) // S + 1
    M1, M2, M3 = N * OH1 * OW1, N * OH2 * OW2, N * OH3 * OW3
    K1, K2, K3 = T * C, T * C1, T * C2

    # Layer-1 im2col on the raw input (tiny; the only remaining HBM glue).
    x = jnp.transpose(x_nchw, (0, 2, 3, 1))               # NCHW -> NHWC
    patches1 = _im2col(x, KH, KW, S).astype(jnp.bfloat16)  # (M1, K1)

    # Constant 0/1 gather matrices (shape-only -> baked in as constants).
    g2 = jnp.asarray(_gather_matrix(N, OH1, OW1, OH2, OW2, KH, S), jnp.bfloat16)
    g3 = jnp.asarray(_gather_matrix(N, OH2, OW2, OH3, OW3, KH, S), jnp.bfloat16)

    # GEMM operands in bf16 (native MXU dtype); BN params packed (3, C) f32.
    w1 = p["w1"].reshape(K1, C1).astype(jnp.bfloat16)
    w2 = p["w2"].reshape(K2, C2).astype(jnp.bfloat16)
    w3 = p["w3"].reshape(K3, 1).astype(jnp.bfloat16)
    bn1 = jnp.stack([p["b1"], p["g1"], p["be1"]]).astype(jnp.float32)   # (3, C1)
    bn2 = jnp.stack([p["b2"], p["g2"], p["be2"]]).astype(jnp.float32)   # (3, C2)
    b3 = p["b3"].reshape(1, 1).astype(jnp.float32)

    kern = functools.partial(_disc_fused_kernel, n_taps=T, c1=C1, c2=C2,
                             m2=M2, m3=M3, eps=eps, slope=slope)

    def full(shape):
        # Full-array block: one VMEM-resident block, (8,128) rule waived.
        return pl.BlockSpec(shape, lambda i: (0, 0))

    out = pl.pallas_call(
        kern,
        out_shape=jax.ShapeDtypeStruct((M3, 1), jnp.float32),
        grid=(1,),
        in_specs=[full((M1, K1)), full((K1, C1)), full((3, C1)),
                  full((T * M2, M1)), full((K2, C2)), full((3, C2)),
                  full((T * M3, M2)), full((K3, 1)), full((1, 1))],
        out_specs=full((M3, 1)),
        scratch_shapes=[pltpu.VMEM((T * M2, C1), jnp.float32),   # layer-2 gathered rows
                        pltpu.VMEM((T * M3, C2), jnp.float32)],  # layer-3 gathered rows
        compiler_params=pltpu.CompilerParams(
            dimension_semantics=("arbitrary",),
            # Explicit scoped-VMEM limit (v5e default is only 16 MiB); total
            # footprint here is ~2 MiB, so 32 MiB leaves ample headroom and is
            # valid on v5e/v6e/v7x.
            vmem_limit_bytes=32 * 1024 * 1024),
    )(patches1, w1, bn1, g2, w2, bn2, g3, w3, b3)

    # torch.flatten(x, 1): conv3 has a single output channel, so flatten order
    # is (oh3, ow3) row-major, which is exactly the kernel's row ordering.
    return out.reshape(N, OH3 * OW3)


# --------------------------------------------------------------------------
# Pure-JAX f32 reference for correctness checking
# --------------------------------------------------------------------------
def _reference_forward(x_nchw, p, *, eps=1e-5, slope=0.2):
    x = jnp.transpose(x_nchw, (0, 2, 3, 1)).astype(jnp.float32)

    def conv(h, w, b):
        out = jax.lax.conv_general_dilated(
            h, w, window_strides=(2, 2), padding="VALID",
            dimension_numbers=("NHWC", "HWIO", "NHWC"),
            precision=jax.lax.Precision.HIGHEST)
        return out + b

    def bn_lrelu(h, g, be):
        mean = jnp.mean(h, axis=(0, 1, 2), keepdims=True)
        var = jnp.mean(jnp.square(h - mean), axis=(0, 1, 2), keepdims=True)
        y = (h - mean) * jax.lax.rsqrt(var + eps) * g + be
        return jnp.where(y >= 0, y, slope * y)

    h = bn_lrelu(conv(x, p["w1"], p["b1"]), p["g1"], p["be1"])
    h = bn_lrelu(conv(h, p["w2"], p["b2"]), p["g2"], p["be2"])
    h = conv(h, p["w3"], p["b3"])
    h = jnp.transpose(h, (0, 3, 1, 2))
    return h.reshape(h.shape[0], -1)


if __name__ == "__main__":
    key = jax.random.PRNGKey(0)
    kx, kp = jax.random.split(key)

    # MNIST-like input: batch=2, channels=1, 28x28  (28 -> 13 -> 5 -> 1 spatial)
    x = jax.random.normal(kx, (2, 1, 28, 28), jnp.float32)
    params = init_discriminator_params(kp, hidden_dim=16, image_channel=1)

    fwd = jax.jit(discriminator_forward)
    out = fwd(x, params)
    jax.block_until_ready(out)
    assert out.shape == (2, 1), out.shape

    # Intermediates are f32 in-kernel; only MXU operands are rounded to bf16,
    # so the error vs. the f32 reference is ~1e-2 (well inside this tolerance).
    ref = _reference_forward(x, params)
    err = float(jnp.max(jnp.abs(out - ref)))
    assert jnp.allclose(out, ref, atol=1e-1, rtol=1e-1), err

    print("KERNEL_OK")
</pallas_src>

<mosaic_0001>
module attributes {stable_mosaic.version = 11 : i64} {
  func.func @_disc_fused_kernel(%arg0: i32, %arg1: memref<338x16xbf16, #tpu.memory_space<vmem>>, %arg2: memref<16x16xbf16, #tpu.memory_space<vmem>>, %arg3: memref<3x16xf32, #tpu.memory_space<vmem>>, %arg4: memref<800x338xbf16, #tpu.memory_space<vmem>>, %arg5: memref<256x32xbf16, #tpu.memory_space<vmem>>, %arg6: memref<3x32xf32, #tpu.memory_space<vmem>>, %arg7: memref<32x50xbf16, #tpu.memory_space<vmem>>, %arg8: memref<512x1xbf16, #tpu.memory_space<vmem>>, %arg9: memref<1x1xf32, #tpu.memory_space<vmem>>, %arg10: memref<2x1xf32, #tpu.memory_space<vmem>>, %arg11: memref<800x16xf32, #tpu.memory_space<vmem>>, %arg12: memref<32x32xf32, #tpu.memory_space<vmem>>) attributes {dimension_semantics = [#tpu.dimension_semantics<arbitrary>], iteration_bounds = array<i64: 1>, scalar_prefetch = 0 : i64, scratch_operands = 2 : i64, tpu.core_type = #tpu.core_type<tc>, window_params = [{pipeline_mode = #tpu.pipeline_mode<synchronous>, transform_indices = @transform_0, window_bounds = array<i64: 338, 16>}, {pipeline_mode = #tpu.pipeline_mode<synchronous>, transform_indices = @transform_1, window_bounds = array<i64: 16, 16>}, {pipeline_mode = #tpu.pipeline_mode<synchronous>, transform_indices = @transform_2, window_bounds = array<i64: 3, 16>}, {pipeline_mode = #tpu.pipeline_mode<synchronous>, transform_indices = @transform_3, window_bounds = array<i64: 800, 338>}, {pipeline_mode = #tpu.pipeline_mode<synchronous>, transform_indices = @transform_4, window_bounds = array<i64: 256, 32>}, {pipeline_mode = #tpu.pipeline_mode<synchronous>, transform_indices = @transform_5, window_bounds = array<i64: 3, 32>}, {pipeline_mode = #tpu.pipeline_mode<synchronous>, transform_indices = @transform_6, window_bounds = array<i64: 32, 50>}, {pipeline_mode = #tpu.pipeline_mode<synchronous>, transform_indices = @transform_7, window_bounds = array<i64: 512, 1>}, {pipeline_mode = #tpu.pipeline_mode<synchronous>, transform_indices = @transform_8, window_bounds = array<i64: 1, 1>}, {pipeline_mode = #tpu.pipeline_mode<synchronous>, transform_indices = @transform_9, window_bounds = array<i64: 2, 1>}]} {
    %c0 = arith.constant 0 : index
    %c0_0 = arith.constant 0 : index
    %0 = vector.load %arg1[%c0, %c0_0] : memref<338x16xbf16, #tpu.memory_space<vmem>>, vector<338x16xbf16>
    %c0_1 = arith.constant 0 : index
    %c0_2 = arith.constant 0 : index
    %1 = vector.load %arg2[%c0_1, %c0_2] : memref<16x16xbf16, #tpu.memory_space<vmem>>, vector<16x16xbf16>
    %cst = arith.constant dense<0.000000e+00> : vector<338x16xf32>
    %2 = tpu.matmul %0, %1, %cst {dimension_numbers = #tpu.dot_dimension_numbers<[1], [0], [0], [1], [0, 0, 1, 1], [], []>} : vector<338x16xbf16>, vector<16x16xbf16>, vector<338x16xf32> -> vector<338x16xf32>
    %c0_3 = arith.constant 0 : index
    %c0_4 = arith.constant 0 : index
    %3 = vector.load %arg3[%c0_3, %c0_4] : memref<3x16xf32, #tpu.memory_space<vmem>>, vector<1x16xf32>
    %4 = vector.broadcast %3 : vector<1x16xf32> to vector<338x16xf32>
    %5 = arith.addf %2, %4 : vector<338x16xf32>
    %cst_5 = arith.constant dense<0.000000e+00> : vector<16xf32>
    %6 = vector.multi_reduction <add>, %5, %cst_5 [0] : vector<338x16xf32> to vector<16xf32>
    %7 = vector.shape_cast %6 : vector<16xf32> to vector<1x16xf32>
    %cst_6 = arith.constant 2.958580e-03 : f32
    %8 = vector.broadcast %cst_6 : f32 to vector<1x16xf32>
    %9 = arith.mulf %7, %8 : vector<1x16xf32>
    %10 = vector.broadcast %9 : vector<1x16xf32> to vector<338x16xf32>
    %11 = arith.subf %5, %10 : vector<338x16xf32>
    %12 = arith.mulf %11, %11 : vector<338x16xf32>
    %cst_7 = arith.constant dense<0.000000e+00> : vector<16xf32>
    %13 = vector.multi_reduction <add>, %12, %cst_7 [0] : vector<338x16xf32> to vector<16xf32>
    %14 = vector.shape_cast %13 : vector<16xf32> to vector<1x16xf32>
    %cst_8 = arith.constant 2.958580e-03 : f32
    %15 = vector.broadcast %cst_8 : f32 to vector<1x16xf32>
    %16 = arith.mulf %14, %15 : vector<1x16xf32>
    %cst_9 = arith.constant 9.99999974E-6 : f32
    %17 = vector.broadcast %cst_9 : f32 to vector<1x16xf32>
    %18 = arith.addf %16, %17 : vector<1x16xf32>
    %19 = math.rsqrt %18 : vector<1x16xf32>
    %20 = vector.broadcast %19 : vector<1x16xf32> to vector<338x16xf32>
    %21 = arith.mulf %11, %20 : vector<338x16xf32>
    %c1 = arith.constant 1 : index
    %c0_10 = arith.constant 0 : index
    %22 = vector.load %arg3[%c1, %c0_10] : memref<3x16xf32, #tpu.memory_space<vmem>>, vector<1x16xf32>
    %23 = vector.broadcast %22 : vector<1x16xf32> to vector<338x16xf32>
    %24 = arith.mulf %21, %23 : vector<338x16xf32>
    %c2 = arith.constant 2 : index
    %c0_11 = arith.constant 0 : index
    %25 = vector.load %arg3[%c2, %c0_11] : memref<3x16xf32, #tpu.memory_space<vmem>>, vector<1x16xf32>
    %26 = vector.broadcast %25 : vector<1x16xf32> to vector<338x16xf32>
    %27 = arith.addf %24, %26 : vector<338x16xf32>
    %cst_12 = arith.constant 2.000000e-01 : f32
    %28 = vector.broadcast %cst_12 : f32 to vector<338x16xf32>
    %29 = arith.mulf %28, %27 : vector<338x16xf32>
    %30 = arith.maximumf %27, %29 : vector<338x16xf32>
    %31 = arith.truncf %30 : vector<338x16xf32> to vector<338x16xbf16>
    %c0_13 = arith.constant 0 : index
    %c0_14 = arith.constant 0 : index
    %32 = vector.load %arg4[%c0_13, %c0_14] : memref<800x338xbf16, #tpu.memory_space<vmem>>, vector<800x338xbf16>
    %cst_15 = arith.constant dense<0.000000e+00> : vector<800x16xf32>
    %33 = tpu.matmul %32, %31, %cst_15 {dimension_numbers = #tpu.dot_dimension_numbers<[1], [0], [0], [1], [0, 0, 1, 1], [], []>} : vector<800x338xbf16>, vector<338x16xbf16>, vector<800x16xf32> -> vector<800x16xf32>
    %c0_16 = arith.constant 0 : index
    %c0_17 = arith.constant 0 : index
    %34 = vector.load %arg11[%c0_16, %c0_17] : memref<800x16xf32, #tpu.memory_space<vmem>>, vector<800x16xf32>
    tpu.vector_store %arg11[%c0_16, %c0_17], %33 {strides = array<i32>} : memref<800x16xf32, #tpu.memory_space<vmem>>, vector<800x16xf32>,
    %cst_18 = arith.constant 0.000000e+00 : f32
    %35 = vector.broadcast %cst_18 : f32 to vector<50x32xf32>
    %c0_19 = arith.constant 0 : index
    %c0_20 = arith.constant 0 : index
    %36 = vector.load %arg11[%c0_19, %c0_20] : memref<800x16xf32, #tpu.memory_space<vmem>>, vector<50x16xf32>
    %37 = arith.truncf %36 : vector<50x16xf32> to vector<50x16xbf16>
    %c0_21 = arith.constant 0 : index
    %c0_22 = arith.constant 0 : index
    %38 = vector.load %arg5[%c0_21, %c0_22] : memref<256x32xbf16, #tpu.memory_space<vmem>>, vector<16x32xbf16>
    %cst_23 = arith.constant dense<0.000000e+00> : vector<50x32xf32>
    %39 = tpu.matmul %37, %38, %cst_23 {dimension_numbers = #tpu.dot_dimension_numbers<[1], [0], [0], [1], [0, 0, 1, 1], [], []>} : vector<50x16xbf16>, vector<16x32xbf16>, vector<50x32xf32> -> vector<50x32xf32>
    %40 = arith.addf %35, %39 : vector<50x32xf32>
    %c50 = arith.constant 50 : index
    %c0_24 = arith.constant 0 : index
    %41 = vector.load %arg11[%c50, %c0_24] : memref<800x16xf32, #tpu.memory_space<vmem>>, vector<50x16xf32>
    %42 = arith.truncf %41 : vector<50x16xf32> to vector<50x16xbf16>
    %c16 = arith.constant 16 : index
    %c0_25 = arith.constant 0 : index
    %43 = vector.load %arg5[%c16, %c0_25] : memref<256x32xbf16, #tpu.memory_space<vmem>>, vector<16x32xbf16>
    %cst_26 = arith.constant dense<0.000000e+00> : vector<50x32xf32>
    %44 = tpu.matmul %42, %43, %cst_26 {dimension_numbers = #tpu.dot_dimension_numbers<[1], [0], [0], [1], [0, 0, 1, 1], [], []>} : vector<50x16xbf16>, vector<16x32xbf16>, vector<50x32xf32> -> vector<50x32xf32>
    %45 = arith.addf %40, %44 : vector<50x32xf32>
    %c100 = arith.constant 100 : index
    %c0_27 = arith.constant 0 : index
    %46 = vector.load %arg11[%c100, %c0_27] : memref<800x16xf32, #tpu.memory_space<vmem>>, vector<50x16xf32>
    %47 = arith.truncf %46 : vector<50x16xf32> to vector<50x16xbf16>
    %c32 = arith.constant 32 : index
    %c0_28 = arith.constant 0 : index
    %48 = vector.load %arg5[%c32, %c0_28] : memref<256x32xbf16, #tpu.memory_space<vmem>>, vector<16x32xbf16>
    %cst_29 = arith.constant dense<0.000000e+00> : vector<50x32xf32>
    %49 = tpu.matmul %47, %48, %cst_29 {dimension_numbers = #tpu.dot_dimension_numbers<[1], [0], [0], [1], [0, 0, 1, 1], [], []>} : vector<50x16xbf16>, vector<16x32xbf16>, vector<50x32xf32> -> vector<50x32xf32>
    %50 = arith.addf %45, %49 : vector<50x32xf32>
    %c150 = arith.constant 150 : index
    %c0_30 = arith.constant 0 : index
    %51 = vector.load %arg11[%c150, %c0_30] : memref<800x16xf32, #tpu.memory_space<vmem>>, vector<50x16xf32>
    %52 = arith.truncf %51 : vector<50x16xf32> to vector<50x16xbf16>
    %c48 = arith.constant 48 : index
    %c0_31 = arith.constant 0 : index
    %53 = vector.load %arg5[%c48, %c0_31] : memref<256x32xbf16, #tpu.memory_space<vmem>>, vector<16x32xbf16>
    %cst_32 = arith.constant dense<0.000000e+00> : vector<50x32xf32>
    %54 = tpu.matmul %52, %53, %cst_32 {dimension_numbers = #tpu.dot_dimension_numbers<[1], [0], [0], [1], [0, 0, 1, 1], [], []>} : vector<50x16xbf16>, vector<16x32xbf16>, vector<50x32xf32> -> vector<50x32xf32>
    %55 = arith.addf %50, %54 : vector<50x32xf32>
    %c200 = arith.constant 200 : index
    %c0_33 = arith.constant 0 : index
    %56 = vector.load %arg11[%c200, %c0_33] : memref<800x16xf32, #tpu.memory_space<vmem>>, vector<50x16xf32>
    %57 = arith.truncf %56 : vector<50x16xf32> to vector<50x16xbf16>
    %c64 = arith.constant 64 : index
    %c0_34 = arith.constant 0 : index
    %58 = vector.load %arg5[%c64, %c0_34] : memref<256x32xbf16, #tpu.memory_space<vmem>>, vector<16x32xbf16>
    %cst_35 = arith.constant dense<0.000000e+00> : vector<50x32xf32>
    %59 = tpu.matmul %57, %58, %cst_35 {dimension_numbers = #tpu.dot_dimension_numbers<[1], [0], [0], [1], [0, 0, 1, 1], [], []>} : vector<50x16xbf16>, vector<16x32xbf16>, vector<50x32xf32> -> vector<50x32xf32>
    %60 = arith.addf %55, %59 : vector<50x32xf32>
    %c250 = arith.constant 250 : index
    %c0_36 = arith.constant 0 : index
    %61 = vector.load %arg11[%c250, %c0_36] : memref<800x16xf32, #tpu.memory_space<vmem>>, vector<50x16xf32>
    %62 = arith.truncf %61 : vector<50x16xf32> to vector<50x16xbf16>
    %c80 = arith.constant 80 : index
    %c0_37 = arith.constant 0 : index
    %63 = vector.load %arg5[%c80, %c0_37] : memref<256x32xbf16, #tpu.memory_space<vmem>>, vector<16x32xbf16>
    %cst_38 = arith.constant dense<0.000000e+00> : vector<50x32xf32>
    %64 = tpu.matmul %62, %63, %cst_38 {dimension_numbers = #tpu.dot_dimension_numbers<[1], [0], [0], [1], [0, 0, 1, 1], [], []>} : vector<50x16xbf16>, vector<16x32xbf16>, vector<50x32xf32> -> vector<50x32xf32>
    %65 = arith.addf %60, %64 : vector<50x32xf32>
    %c300 = arith.constant 300 : index
    %c0_39 = arith.constant 0 : index
    %66 = vector.load %arg11[%c300, %c0_39] : memref<800x16xf32, #tpu.memory_space<vmem>>, vector<50x16xf32>
    %67 = arith.truncf %66 : vector<50x16xf32> to vector<50x16xbf16>
    %c96 = arith.constant 96 : index
    %c0_40 = arith.constant 0 : index
    %68 = vector.load %arg5[%c96, %c0_40] : memref<256x32xbf16, #tpu.memory_space<vmem>>, vector<16x32xbf16>
    %cst_41 = arith.constant dense<0.000000e+00> : vector<50x32xf32>
    %69 = tpu.matmul %67, %68, %cst_41 {dimension_numbers = #tpu.dot_dimension_numbers<[1], [0], [0], [1], [0, 0, 1, 1], [], []>} : vector<50x16xbf16>, vector<16x32xbf16>, vector<50x32xf32> -> vector<50x32xf32>
    %70 = arith.addf %65, %69 : vector<50x32xf32>
    %c350 = arith.constant 350 : index
    %c0_42 = arith.constant 0 : index
    %71 = vector.load %arg11[%c350, %c0_42] : memref<800x16xf32, #tpu.memory_space<vmem>>, vector<50x16xf32>
    %72 = arith.truncf %71 : vector<50x16xf32> to vector<50x16xbf16>
    %c112 = arith.constant 112 : index
    %c0_43 = arith.constant 0 : index
    %73 = vector.load %arg5[%c112, %c0_43] : memref<256x32xbf16, #tpu.memory_space<vmem>>, vector<16x32xbf16>
    %cst_44 = arith.constant dense<0.000000e+00> : vector<50x32xf32>
    %74 = tpu.matmul %72, %73, %cst_44 {dimension_numbers = #tpu.dot_dimension_numbers<[1], [0], [0], [1], [0, 0, 1, 1], [], []>} : vector<50x16xbf16>, vector<16x32xbf16>, vector<50x32xf32> -> vector<50x32xf32>
    %75 = arith.addf %70, %74 : vector<50x32xf32>
    %c400 = arith.constant 400 : index
    %c0_45 = arith.constant 0 : index
    %76 = vector.load %arg11[%c400, %c0_45] : memref<800x16xf32, #tpu.memory_space<vmem>>, vector<50x16xf32>
    %77 = arith.truncf %76 : vector<50x16xf32> to vector<50x16xbf16>
    %c128 = arith.constant 128 : index
    %c0_46 = arith.constant 0 : index
    %78 = vector.load %arg5[%c128, %c0_46] : memref<256x32xbf16, #tpu.memory_space<vmem>>, vector<16x32xbf16>
    %cst_47 = arith.constant dense<0.000000e+00> : vector<50x32xf32>
    %79 = tpu.matmul %77, %78, %cst_47 {dimension_numbers = #tpu.dot_dimension_numbers<[1], [0], [0], [1], [0, 0, 1, 1], [], []>} : vector<50x16xbf16>, vector<16x32xbf16>, vector<50x32xf32> -> vector<50x32xf32>
    %80 = arith.addf %75, %79 : vector<50x32xf32>
    %c450 = arith.constant 450 : index
    %c0_48 = arith.constant 0 : index
    %81 = vector.load %arg11[%c450, %c0_48] : memref<800x16xf32, #tpu.memory_space<vmem>>, vector<50x16xf32>
    %82 = arith.truncf %81 : vector<50x16xf32> to vector<50x16xbf16>
    %c144 = arith.constant 144 : index
    %c0_49 = arith.constant 0 : index
    %83 = vector.load %arg5[%c144, %c0_49] : memref<256x32xbf16, #tpu.memory_space<vmem>>, vector<16x32xbf16>
    %cst_50 = arith.constant dense<0.000000e+00> : vector<50x32xf32>
    %84 = tpu.matmul %82, %83, %cst_50 {dimension_numbers = #tpu.dot_dimension_numbers<[1], [0], [0], [1], [0, 0, 1, 1], [], []>} : vector<50x16xbf16>, vector<16x32xbf16>, vector<50x32xf32> -> vector<50x32xf32>
    %85 = arith.addf %80, %84 : vector<50x32xf32>
    %c500 = arith.constant 500 : index
    %c0_51 = arith.constant 0 : index
    %86 = vector.load %arg11[%c500, %c0_51] : memref<800x16xf32, #tpu.memory_space<vmem>>, vector<50x16xf32>
    %87 = arith.truncf %86 : vector<50x16xf32> to vector<50x16xbf16>
    %c160 = arith.constant 160 : index
    %c0_52 = arith.constant 0 : index
    %88 = vector.load %arg5[%c160, %c0_52] : memref<256x32xbf16, #tpu.memory_space<vmem>>, vector<16x32xbf16>
    %cst_53 = arith.constant dense<0.000000e+00> : vector<50x32xf32>
    %89 = tpu.matmul %87, %88, %cst_53 {dimension_numbers = #tpu.dot_dimension_numbers<[1], [0], [0], [1], [0, 0, 1, 1], [], []>} : vector<50x16xbf16>, vector<16x32xbf16>, vector<50x32xf32> -> vector<50x32xf32>
    %90 = arith.addf %85, %89 : vector<50x32xf32>
    %c550 = arith.constant 550 : index
    %c0_54 = arith.constant 0 : index
    %91 = vector.load %arg11[%c550, %c0_54] : memref<800x16xf32, #tpu.memory_space<vmem>>, vector<50x16xf32>
    %92 = arith.truncf %91 : vector<50x16xf32> to vector<50x16xbf16>
    %c176 = arith.constant 176 : index
    %c0_55 = arith.constant 0 : index
    %93 = vector.load %arg5[%c176, %c0_55] : memref<256x32xbf16, #tpu.memory_space<vmem>>, vector<16x32xbf16>
    %cst_56 = arith.constant dense<0.000000e+00> : vector<50x32xf32>
    %94 = tpu.matmul %92, %93, %cst_56 {dimension_numbers = #tpu.dot_dimension_numbers<[1], [0], [0], [1], [0, 0, 1, 1], [], []>} : vector<50x16xbf16>, vector<16x32xbf16>, vector<50x32xf32> -> vector<50x32xf32>
    %95 = arith.addf %90, %94 : vector<50x32xf32>
    %c600 = arith.constant 600 : index
    %c0_57 = arith.constant 0 : index
    %96 = vector.load %arg11[%c600, %c0_57] : memref<800x16xf32, #tpu.memory_space<vmem>>, vector<50x16xf32>
    %97 = arith.truncf %96 : vector<50x16xf32> to vector<50x16xbf16>
    %c192 = arith.constant 192 : index
    %c0_58 = arith.constant 0 : index
    %98 = vector.load %arg5[%c192, %c0_58] : memref<256x32xbf16, #tpu.memory_space<vmem>>, vector<16x32xbf16>
    %cst_59 = arith.constant dense<0.000000e+00> : vector<50x32xf32>
    %99 = tpu.matmul %97, %98, %cst_59 {dimension_numbers = #tpu.dot_dimension_numbers<[1], [0], [0], [1], [0, 0, 1, 1], [], []>} : vector<50x16xbf16>, vector<16x32xbf16>, vector<50x32xf32> -> vector<50x32xf32>
    %100 = arith.addf %95, %99 : vector<50x32xf32>
    %c650 = arith.constant 650 : index
    %c0_60 = arith.constant 0 : index
    %101 = vector.load %arg11[%c650, %c0_60] : memref<800x16xf32, #tpu.memory_space<vmem>>, vector<50x16xf32>
    %102 = arith.truncf %101 : vector<50x16xf32> to vector<50x16xbf16>
    %c208 = arith.constant 208 : index
    %c0_61 = arith.constant 0 : index
    %103 = vector.load %arg5[%c208, %c0_61] : memref<256x32xbf16, #tpu.memory_space<vmem>>, vector<16x32xbf16>
    %cst_62 = arith.constant dense<0.000000e+00> : vector<50x32xf32>
    %104 = tpu.matmul %102, %103, %cst_62 {dimension_numbers = #tpu.dot_dimension_numbers<[1], [0], [0], [1], [0, 0, 1, 1], [], []>} : vector<50x16xbf16>, vector<16x32xbf16>, vector<50x32xf32> -> vector<50x32xf32>
    %105 = arith.addf %100, %104 : vector<50x32xf32>
    %c700 = arith.constant 700 : index
    %c0_63 = arith.constant 0 : index
    %106 = vector.load %arg11[%c700, %c0_63] : memref<800x16xf32, #tpu.memory_space<vmem>>, vector<50x16xf32>
    %107 = arith.truncf %106 : vector<50x16xf32> to vector<50x16xbf16>
    %c224 = arith.constant 224 : index
    %c0_64 = arith.constant 0 : index
    %108 = vector.load %arg5[%c224, %c0_64] : memref<256x32xbf16, #tpu.memory_space<vmem>>, vector<16x32xbf16>
    %cst_65 = arith.constant dense<0.000000e+00> : vector<50x32xf32>
    %109 = tpu.matmul %107, %108, %cst_65 {dimension_numbers = #tpu.dot_dimension_numbers<[1], [0], [0], [1], [0, 0, 1, 1], [], []>} : vector<50x16xbf16>, vector<16x32xbf16>, vector<50x32xf32> -> vector<50x32xf32>
    %110 = arith.addf %105, %109 : vector<50x32xf32>
    %c750 = arith.constant 750 : index
    %c0_66 = arith.constant 0 : index
    %111 = vector.load %arg11[%c750, %c0_66] : memref<800x16xf32, #tpu.memory_space<vmem>>, vector<50x16xf32>
    %112 = arith.truncf %111 : vector<50x16xf32> to vector<50x16xbf16>
    %c240 = arith.constant 240 : index
    %c0_67 = arith.constant 0 : index
    %113 = vector.load %arg5[%c240, %c0_67] : memref<256x32xbf16, #tpu.memory_space<vmem>>, vector<16x32xbf16>
    %cst_68 = arith.constant dense<0.000000e+00> : vector<50x32xf32>
    %114 = tpu.matmul %112, %113, %cst_68 {dimension_numbers = #tpu.dot_dimension_numbers<[1], [0], [0], [1], [0, 0, 1, 1], [], []>} : vector<50x16xbf16>, vector<16x32xbf16>, vector<50x32xf32> -> vector<50x32xf32>
    %115 = arith.addf %110, %114 : vector<50x32xf32>
    %c0_69 = arith.constant 0 : index
    %c0_70 = arith.constant 0 : index
    %116 = vector.load %arg6[%c0_69, %c0_70] : memref<3x32xf32, #tpu.memory_space<vmem>>, vector<1x32xf32>
    %117 = vector.broadcast %116 : vector<1x32xf32> to vector<50x32xf32>
    %118 = arith.addf %115, %117 : vector<50x32xf32>
    %cst_71 = arith.constant dense<0.000000e+00> : vector<32xf32>
    %119 = vector.multi_reduction <add>, %118, %cst_71 [0] : vector<50x32xf32> to vector<32xf32>
    %120 = vector.shape_cast %119 : vector<32xf32> to vector<1x32xf32>
    %cst_72 = arith.constant 2.000000e-02 : f32
    %121 = vector.broadcast %cst_72 : f32 to vector<1x32xf32>
    %122 = arith.mulf %120, %121 : vector<1x32xf32>
    %123 = vector.broadcast %122 : vector<1x32xf32> to vector<50x32xf32>
    %124 = arith.subf %118, %123 : vector<50x32xf32>
    %125 = arith.mulf %124, %124 : vector<50x32xf32>
    %cst_73 = arith.constant dense<0.000000e+00> : vector<32xf32>
    %126 = vector.multi_reduction <add>, %125, %cst_73 [0] : vector<50x32xf32> to vector<32xf32>
    %127 = vector.shape_cast %126 : vector<32xf32> to vector<1x32xf32>
    %cst_74 = arith.constant 2.000000e-02 : f32
    %128 = vector.broadcast %cst_74 : f32 to vector<1x32xf32>
    %129 = arith.mulf %127, %128 : vector<1x32xf32>
    %cst_75 = arith.constant 9.99999974E-6 : f32
    %130 = vector.broadcast %cst_75 : f32 to vector<1x32xf32>
    %131 = arith.addf %129, %130 : vector<1x32xf32>
    %132 = math.rsqrt %131 : vector<1x32xf32>
    %133 = vector.broadcast %132 : vector<1x32xf32> to vector<50x32xf32>
    %134 = arith.mulf %124, %133 : vector<50x32xf32>
    %c1_76 = arith.constant 1 : index
    %c0_77 = arith.constant 0 : index
    %135 = vector.load %arg6[%c1_76, %c0_77] : memref<3x32xf32, #tpu.memory_space<vmem>>, vector<1x32xf32>
    %136 = vector.broadcast %135 : vector<1x32xf32> to vector<50x32xf32>
    %137 = arith.mulf %134, %136 : vector<50x32xf32>
    %c2_78 = arith.constant 2 : index
    %c0_79 = arith.constant 0 : index
    %138 = vector.load %arg6[%c2_78, %c0_79] : memref<3x32xf32, #tpu.memory_space<vmem>>, vector<1x32xf32>
    %139 = vector.broadcast %138 : vector<1x32xf32> to vector<50x32xf32>
    %140 = arith.addf %137, %139 : vector<50x32xf32>
    %cst_80 = arith.constant 2.000000e-01 : f32
    %141 = vector.broadcast %cst_80 : f32 to vector<50x32xf32>
    %142 = arith.mulf %141, %140 : vector<50x32xf32>
    %143 = arith.maximumf %140, %142 : vector<50x32xf32>
    %144 = arith.truncf %143 : vector<50x32xf32> to vector<50x32xbf16>
    %c0_81 = arith.constant 0 : index
    %c0_82 = arith.constant 0 : index
    %145 = vector.load %arg7[%c0_81, %c0_82] : memref<32x50xbf16, #tpu.memory_space<vmem>>, vector<32x50xbf16>
    %cst_83 = arith.constant dense<0.000000e+00> : vector<32x32xf32>
    %146 = tpu.matmul %145, %144, %cst_83 {dimension_numbers = #tpu.dot_dimension_numbers<[1], [0], [0], [1], [0, 0, 1, 1], [], []>} : vector<32x50xbf16>, vector<50x32xbf16>, vector<32x32xf32> -> vector<32x32xf32>
    %c0_84 = arith.constant 0 : index
    %c0_85 = arith.constant 0 : index
    %147 = vector.load %arg12[%c0_84, %c0_85] : memref<32x32xf32, #tpu.memory_space<vmem>>, vector<32x32xf32>
    tpu.vector_store %arg12[%c0_84, %c0_85], %146 {strides = array<i32>} : memref<32x32xf32, #tpu.memory_space<vmem>>, vector<32x32xf32>,
    %cst_86 = arith.constant 0.000000e+00 : f32
    %148 = vector.broadcast %cst_86 : f32 to vector<2x1xf32>
    %c0_87 = arith.constant 0 : index
    %c0_88 = arith.constant 0 : index
    %149 = vector.load %arg12[%c0_87, %c0_88] : memref<32x32xf32, #tpu.memory_space<vmem>>, vector<2x32xf32>
    %150 = arith.truncf %149 : vector<2x32xf32> to vector<2x32xbf16>
    %c0_89 = arith.constant 0 : index
    %c0_90 = arith.constant 0 : index
    %151 = vector.load %arg8[%c0_89, %c0_90] : memref<512x1xbf16, #tpu.memory_space<vmem>>, vector<32x1xbf16>
    %cst_91 = arith.constant dense<0.000000e+00> : vector<2x1xf32>
    %152 = tpu.matmul %150, %151, %cst_91 {dimension_numbers = #tpu.dot_dimension_numbers<[1], [0], [0], [1], [0, 0, 1, 1], [], []>} : vector<2x32xbf16>, vector<32x1xbf16>, vector<2x1xf32> -> vector<2x1xf32>
    %153 = arith.addf %148, %152 : vector<2x1xf32>
    %c2_92 = arith.constant 2 : index
    %c0_93 = arith.constant 0 : index
    %154 = vector.load %arg12[%c2_92, %c0_93] : memref<32x32xf32, #tpu.memory_space<vmem>>, vector<2x32xf32>
    %155 = arith.truncf %154 : vector<2x32xf32> to vector<2x32xbf16>
    %c32_94 = arith.constant 32 : index
    %c0_95 = arith.constant 0 : index
    %156 = vector.load %arg8[%c32_94, %c0_95] : memref<512x1xbf16, #tpu.memory_space<vmem>>, vector<32x1xbf16>
    %cst_96 = arith.constant dense<0.000000e+00> : vector<2x1xf32>
    %157 = tpu.matmul %155, %156, %cst_96 {dimension_numbers = #tpu.dot_dimension_numbers<[1], [0], [0], [1], [0, 0, 1, 1], [], []>} : vector<2x32xbf16>, vector<32x1xbf16>, vector<2x1xf32> -> vector<2x1xf32>
    %158 = arith.addf %153, %157 : vector<2x1xf32>
    %c4 = arith.constant 4 : index
    %c0_97 = arith.constant 0 : index
    %159 = vector.load %arg12[%c4, %c0_97] : memref<32x32xf32, #tpu.memory_space<vmem>>, vector<2x32xf32>
    %160 = arith.truncf %159 : vector<2x32xf32> to vector<2x32xbf16>
    %c64_98 = arith.constant 64 : index
    %c0_99 = arith.constant 0 : index
    %161 = vector.load %arg8[%c64_98, %c0_99] : memref<512x1xbf16, #tpu.memory_space<vmem>>, vector<32x1xbf16>
    %cst_100 = arith.constant dense<0.000000e+00> : vector<2x1xf32>
    %162 = tpu.matmul %160, %161, %cst_100 {dimension_numbers = #tpu.dot_dimension_numbers<[1], [0], [0], [1], [0, 0, 1, 1], [], []>} : vector<2x32xbf16>, vector<32x1xbf16>, vector<2x1xf32> -> vector<2x1xf32>
    %163 = arith.addf %158, %162 : vector<2x1xf32>
    %c6 = arith.constant 6 : index
    %c0_101 = arith.constant 0 : index
    %164 = vector.load %arg12[%c6, %c0_101] : memref<32x32xf32, #tpu.memory_space<vmem>>, vector<2x32xf32>
    %165 = arith.truncf %164 : vector<2x32xf32> to vector<2x32xbf16>
    %c96_102 = arith.constant 96 : index
    %c0_103 = arith.constant 0 : index
    %166 = vector.load %arg8[%c96_102, %c0_103] : memref<512x1xbf16, #tpu.memory_space<vmem>>, vector<32x1xbf16>
    %cst_104 = arith.constant dense<0.000000e+00> : vector<2x1xf32>
    %167 = tpu.matmul %165, %166, %cst_104 {dimension_numbers = #tpu.dot_dimension_numbers<[1], [0], [0], [1], [0, 0, 1, 1], [], []>} : vector<2x32xbf16>, vector<32x1xbf16>, vector<2x1xf32> -> vector<2x1xf32>
    %168 = arith.addf %163, %167 : vector<2x1xf32>
    %c8 = arith.constant 8 : index
    %c0_105 = arith.constant 0 : index
    %169 = vector.load %arg12[%c8, %c0_105] : memref<32x32xf32, #tpu.memory_space<vmem>>, vector<2x32xf32>
    %170 = arith.truncf %169 : vector<2x32xf32> to vector<2x32xbf16>
    %c128_106 = arith.constant 128 : index
    %c0_107 = arith.constant 0 : index
    %171 = vector.load %arg8[%c128_106, %c0_107] : memref<512x1xbf16, #tpu.memory_space<vmem>>, vector<32x1xbf16>
    %cst_108 = arith.constant dense<0.000000e+00> : vector<2x1xf32>
    %172 = tpu.matmul %170, %171, %cst_108 {dimension_numbers = #tpu.dot_dimension_numbers<[1], [0], [0], [1], [0, 0, 1, 1], [], []>} : vector<2x32xbf16>, vector<32x1xbf16>, vector<2x1xf32> -> vector<2x1xf32>
    %173 = arith.addf %168, %172 : vector<2x1xf32>
    %c10 = arith.constant 10 : index
    %c0_109 = arith.constant 0 : index
    %174 = vector.load %arg12[%c10, %c0_109] : memref<32x32xf32, #tpu.memory_space<vmem>>, vector<2x32xf32>
    %175 = arith.truncf %174 : vector<2x32xf32> to vector<2x32xbf16>
    %c160_110 = arith.constant 160 : index
    %c0_111 = arith.constant 0 : index
    %176 = vector.load %arg8[%c160_110, %c0_111] : memref<512x1xbf16, #tpu.memory_space<vmem>>, vector<32x1xbf16>
    %cst_112 = arith.constant dense<0.000000e+00> : vector<2x1xf32>
    %177 = tpu.matmul %175, %176, %cst_112 {dimension_numbers = #tpu.dot_dimension_numbers<[1], [0], [0], [1], [0, 0, 1, 1], [], []>} : vector<2x32xbf16>, vector<32x1xbf16>, vector<2x1xf32> -> vector<2x1xf32>
    %178 = arith.addf %173, %177 : vector<2x1xf32>
    %c12 = arith.constant 12 : index
    %c0_113 = arith.constant 0 : index
    %179 = vector.load %arg12[%c12, %c0_113] : memref<32x32xf32, #tpu.memory_space<vmem>>, vector<2x32xf32>
    %180 = arith.truncf %179 : vector<2x32xf32> to vector<2x32xbf16>
    %c192_114 = arith.constant 192 : index
    %c0_115 = arith.constant 0 : index
    %181 = vector.load %arg8[%c192_114, %c0_115] : memref<512x1xbf16, #tpu.memory_space<vmem>>, vector<32x1xbf16>
    %cst_116 = arith.constant dense<0.000000e+00> : vector<2x1xf32>
    %182 = tpu.matmul %180, %181, %cst_116 {dimension_numbers = #tpu.dot_dimension_numbers<[1], [0], [0], [1], [0, 0, 1, 1], [], []>} : vector<2x32xbf16>, vector<32x1xbf16>, vector<2x1xf32> -> vector<2x1xf32>
    %183 = arith.addf %178, %182 : vector<2x1xf32>
    %c14 = arith.constant 14 : index
    %c0_117 = arith.constant 0 : index
    %184 = vector.load %arg12[%c14, %c0_117] : memref<32x32xf32, #tpu.memory_space<vmem>>, vector<2x32xf32>
    %185 = arith.truncf %184 : vector<2x32xf32> to vector<2x32xbf16>
    %c224_118 = arith.constant 224 : index
    %c0_119 = arith.constant 0 : index
    %186 = vector.load %arg8[%c224_118, %c0_119] : memref<512x1xbf16, #tpu.memory_space<vmem>>, vector<32x1xbf16>
    %cst_120 = arith.constant dense<0.000000e+00> : vector<2x1xf32>
    %187 = tpu.matmul %185, %186, %cst_120 {dimension_numbers = #tpu.dot_dimension_numbers<[1], [0], [0], [1], [0, 0, 1, 1], [], []>} : vector<2x32xbf16>, vector<32x1xbf16>, vector<2x1xf32> -> vector<2x1xf32>
    %188 = arith.addf %183, %187 : vector<2x1xf32>
    %c16_121 = arith.constant 16 : index
    %c0_122 = arith.constant 0 : index
    %189 = vector.load %arg12[%c16_121, %c0_122] : memref<32x32xf32, #tpu.memory_space<vmem>>, vector<2x32xf32>
    %190 = arith.truncf %189 : vector<2x32xf32> to vector<2x32xbf16>
    %c256 = arith.constant 256 : index
    %c0_123 = arith.constant 0 : index
    %191 = vector.load %arg8[%c256, %c0_123] : memref<512x1xbf16, #tpu.memory_space<vmem>>, vector<32x1xbf16>
    %cst_124 = arith.constant dense<0.000000e+00> : vector<2x1xf32>
    %192 = tpu.matmul %190, %191, %cst_124 {dimension_numbers = #tpu.dot_dimension_numbers<[1], [0], [0], [1], [0, 0, 1, 1], [], []>} : vector<2x32xbf16>, vector<32x1xbf16>, vector<2x1xf32> -> vector<2x1xf32>
    %193 = arith.addf %188, %192 : vector<2x1xf32>
    %c18 = arith.constant 18 : index
    %c0_125 = arith.constant 0 : index
    %194 = vector.load %arg12[%c18, %c0_125] : memref<32x32xf32, #tpu.memory_space<vmem>>, vector<2x32xf32>
    %195 = arith.truncf %194 : vector<2x32xf32> to vector<2x32xbf16>
    %c288 = arith.constant 288 : index
    %c0_126 = arith.constant 0 : index
    %196 = vector.load %arg8[%c288, %c0_126] : memref<512x1xbf16, #tpu.memory_space<vmem>>, vector<32x1xbf16>
    %cst_127 = arith.constant dense<0.000000e+00> : vector<2x1xf32>
    %197 = tpu.matmul %195, %196, %cst_127 {dimension_numbers = #tpu.dot_dimension_numbers<[1], [0], [0], [1], [0, 0, 1, 1], [], []>} : vector<2x32xbf16>, vector<32x1xbf16>, vector<2x1xf32> -> vector<2x1xf32>
    %198 = arith.addf %193, %197 : vector<2x1xf32>
    %c20 = arith.constant 20 : index
    %c0_128 = arith.constant 0 : index
    %199 = vector.load %arg12[%c20, %c0_128] : memref<32x32xf32, #tpu.memory_space<vmem>>, vector<2x32xf32>
    %200 = arith.truncf %199 : vector<2x32xf32> to vector<2x32xbf16>
    %c320 = arith.constant 320 : index
    %c0_129 = arith.constant 0 : index
    %201 = vector.load %arg8[%c320, %c0_129] : memref<512x1xbf16, #tpu.memory_space<vmem>>, vector<32x1xbf16>
    %cst_130 = arith.constant dense<0.000000e+00> : vector<2x1xf32>
    %202 = tpu.matmul %200, %201, %cst_130 {dimension_numbers = #tpu.dot_dimension_numbers<[1], [0], [0], [1], [0, 0, 1, 1], [], []>} : vector<2x32xbf16>, vector<32x1xbf16>, vector<2x1xf32> -> vector<2x1xf32>
    %203 = arith.addf %198, %202 : vector<2x1xf32>
    %c22 = arith.constant 22 : index
    %c0_131 = arith.constant 0 : index
    %204 = vector.load %arg12[%c22, %c0_131] : memref<32x32xf32, #tpu.memory_space<vmem>>, vector<2x32xf32>
    %205 = arith.truncf %204 : vector<2x32xf32> to vector<2x32xbf16>
    %c352 = arith.constant 352 : index
    %c0_132 = arith.constant 0 : index
    %206 = vector.load %arg8[%c352, %c0_132] : memref<512x1xbf16, #tpu.memory_space<vmem>>, vector<32x1xbf16>
    %cst_133 = arith.constant dense<0.000000e+00> : vector<2x1xf32>
    %207 = tpu.matmul %205, %206, %cst_133 {dimension_numbers = #tpu.dot_dimension_numbers<[1], [0], [0], [1], [0, 0, 1, 1], [], []>} : vector<2x32xbf16>, vector<32x1xbf16>, vector<2x1xf32> -> vector<2x1xf32>
    %208 = arith.addf %203, %207 : vector<2x1xf32>
    %c24 = arith.constant 24 : index
    %c0_134 = arith.constant 0 : index
    %209 = vector.load %arg12[%c24, %c0_134] : memref<32x32xf32, #tpu.memory_space<vmem>>, vector<2x32xf32>
    %210 = arith.truncf %209 : vector<2x32xf32> to vector<2x32xbf16>
    %c384 = arith.constant 384 : index
    %c0_135 = arith.constant 0 : index
    %211 = vector.load %arg8[%c384, %c0_135] : memref<512x1xbf16, #tpu.memory_space<vmem>>, vector<32x1xbf16>
    %cst_136 = arith.constant dense<0.000000e+00> : vector<2x1xf32>
    %212 = tpu.matmul %210, %211, %cst_136 {dimension_numbers = #tpu.dot_dimension_numbers<[1], [0], [0], [1], [0, 0, 1, 1], [], []>} : vector<2x32xbf16>, vector<32x1xbf16>, vector<2x1xf32> -> vector<2x1xf32>
    %213 = arith.addf %208, %212 : vector<2x1xf32>
    %c26 = arith.constant 26 : index
    %c0_137 = arith.constant 0 : index
    %214 = vector.load %arg12[%c26, %c0_137] : memref<32x32xf32, #tpu.memory_space<vmem>>, vector<2x32xf32>
    %215 = arith.truncf %214 : vector<2x32xf32> to vector<2x32xbf16>
    %c416 = arith.constant 416 : index
    %c0_138 = arith.constant 0 : index
    %216 = vector.load %arg8[%c416, %c0_138] : memref<512x1xbf16, #tpu.memory_space<vmem>>, vector<32x1xbf16>
    %cst_139 = arith.constant dense<0.000000e+00> : vector<2x1xf32>
    %217 = tpu.matmul %215, %216, %cst_139 {dimension_numbers = #tpu.dot_dimension_numbers<[1], [0], [0], [1], [0, 0, 1, 1], [], []>} : vector<2x32xbf16>, vector<32x1xbf16>, vector<2x1xf32> -> vector<2x1xf32>
    %218 = arith.addf %213, %217 : vector<2x1xf32>
    %c28 = arith.constant 28 : index
    %c0_140 = arith.constant 0 : index
    %219 = vector.load %arg12[%c28, %c0_140] : memref<32x32xf32, #tpu.memory_space<vmem>>, vector<2x32xf32>
    %220 = arith.truncf %219 : vector<2x32xf32> to vector<2x32xbf16>
    %c448 = arith.constant 448 : index
    %c0_141 = arith.constant 0 : index
    %221 = vector.load %arg8[%c448, %c0_141] : memref<512x1xbf16, #tpu.memory_space<vmem>>, vector<32x1xbf16>
    %cst_142 = arith.constant dense<0.000000e+00> : vector<2x1xf32>
    %222 = tpu.matmul %220, %221, %cst_142 {dimension_numbers = #tpu.dot_dimension_numbers<[1], [0], [0], [1], [0, 0, 1, 1], [], []>} : vector<2x32xbf16>, vector<32x1xbf16>, vector<2x1xf32> -> vector<2x1xf32>
    %223 = arith.addf %218, %222 : vector<2x1xf32>
    %c30 = arith.constant 30 : index
    %c0_143 = arith.constant 0 : index
    %224 = vector.load %arg12[%c30, %c0_143] : memref<32x32xf32, #tpu.memory_space<vmem>>, vector<2x32xf32>
    %225 = arith.truncf %224 : vector<2x32xf32> to vector<2x32xbf16>
    %c480 = arith.constant 480 : index
    %c0_144 = arith.constant 0 : index
    %226 = vector.load %arg8[%c480, %c0_144] : memref<512x1xbf16, #tpu.memory_space<vmem>>, vector<32x1xbf16>
    %cst_145 = arith.constant dense<0.000000e+00> : vector<2x1xf32>
    %227 = tpu.matmul %225, %226, %cst_145 {dimension_numbers = #tpu.dot_dimension_numbers<[1], [0], [0], [1], [0, 0, 1, 1], [], []>} : vector<2x32xbf16>, vector<32x1xbf16>, vector<2x1xf32> -> vector<2x1xf32>
    %228 = arith.addf %223, %227 : vector<2x1xf32>
    %c0_146 = arith.constant 0 : index
    %c0_147 = arith.constant 0 : index
    %229 = vector.load %arg9[%c0_146, %c0_147] : memref<1x1xf32, #tpu.memory_space<vmem>>, vector<1x1xf32>
    %230 = vector.broadcast %229 : vector<1x1xf32> to vector<2x1xf32>
    %231 = arith.addf %228, %230 : vector<2x1xf32>
    %c0_148 = arith.constant 0 : index
    %c0_149 = arith.constant 0 : index
    %232 = vector.load %arg10[%c0_148, %c0_149] : memref<2x1xf32, #tpu.memory_space<vmem>>, vector<2x1xf32>
    tpu.vector_store %arg10[%c0_148, %c0_149], %231 {strides = array<i32>} : memref<2x1xf32, #tpu.memory_space<vmem>>, vector<2x1xf32>,
    return
  }
  func.func @transform_0(%arg0: i32) -> (i32, i32) {
    %c0_i32 = arith.constant 0 : i32
    %c0_i32_0 = arith.constant 0 : i32
    %c0_i32_1 = arith.constant 0 : i32
    return %c0_i32, %c0_i32_0 : i32, i32
  }
  func.func @transform_1(%arg0: i32) -> (i32, i32) {
    %c0_i32 = arith.constant 0 : i32
    %c0_i32_0 = arith.constant 0 : i32
    %c0_i32_1 = arith.constant 0 : i32
    return %c0_i32, %c0_i32_0 : i32, i32
  }
  func.func @transform_2(%arg0: i32) -> (i32, i32) {
    %c0_i32 = arith.constant 0 : i32
    %c0_i32_0 = arith.constant 0 : i32
    %c0_i32_1 = arith.constant 0 : i32
    return %c0_i32, %c0_i32_0 : i32, i32
  }
  func.func @transform_3(%arg0: i32) -> (i32, i32) {
    %c0_i32 = arith.constant 0 : i32
    %c0_i32_0 = arith.constant 0 : i32
    %c0_i32_1 = arith.constant 0 : i32
    return %c0_i32, %c0_i32_0 : i32, i32
  }
  func.func @transform_4(%arg0: i32) -> (i32, i32) {
    %c0_i32 = arith.constant 0 : i32
    %c0_i32_0 = arith.constant 0 : i32
    %c0_i32_1 = arith.constant 0 : i32
    return %c0_i32, %c0_i32_0 : i32, i32
  }
  func.func @transform_5(%arg0: i32) -> (i32, i32) {
    %c0_i32 = arith.constant 0 : i32
    %c0_i32_0 = arith.constant 0 : i32
    %c0_i32_1 = arith.constant 0 : i32
    return %c0_i32, %c0_i32_0 : i32, i32
  }
  func.func @transform_6(%arg0: i32) -> (i32, i32) {
    %c0_i32 = arith.constant 0 : i32
    %c0_i32_0 = arith.constant 0 : i32
    %c0_i32_1 = arith.constant 0 : i32
    return %c0_i32, %c0_i32_0 : i32, i32
  }
  func.func @transform_7(%arg0: i32) -> (i32, i32) {
    %c0_i32 = arith.constant 0 : i32
    %c0_i32_0 = arith.constant 0 : i32
    %c0_i32_1 = arith.constant 0 : i32
    return %c0_i32, %c0_i32_0 : i32, i32
  }
  func.func @transform_8(%arg0: i32) -> (i32, i32) {
    %c0_i32 = arith.constant 0 : i32
    %c0_i32_0 = arith.constant 0 : i32
    %c0_i32_1 = arith.constant 0 : i32
    return %c0_i32, %c0_i32_0 : i32, i32
  }
  func.func @transform_9(%arg0: i32) -> (i32, i32) {
    %c0_i32 = arith.constant 0 : i32
    %c0_i32_0 = arith.constant 0 : i32
    %c0_i32_1 = arith.constant 0 : i32
    return %c0_i32, %c0_i32_0 : i32, i32
  }
}

</mosaic_0001>

<llo_original>
// kernel: discriminator_forward.1
$region0: #{discriminator_forward.1}
  #allocation0 [shape = 'u32[]', space=smem, size = 0x4, offset = 0x4, fixed_abs, tag = 'smem constant byte address 0x4 - core index']
  #allocation1 [shape = 'u32[144,128]{1,0:T(1,128)}', space=vmem, size = 0x12000, scoped, tag = 'internal scratch']
  #allocation2 [shape = 'f32[800,16]{1,0:T(8,128)}', space=vmem, size = 0x64000, scoped, tag = 'scratch operand']
  #allocation3 [shape = 'f32[32,32]{1,0:T(8,128)}', space=vmem, size = 0x4000, scoped, tag = 'scratch operand']
  #allocation4 [shape = 'f32[1,1]{1,0:T(1,128)S(1)}', space=vmem, size = 0x200, scoped, tag = 'scoped memory for discriminator_forward.1']
  %s0 = inlined_call_operand.vmem [shape: bf16[338,16], index: 0, kind: input, shape index: {}]
  %s1 = inlined_call_operand.vmem [shape: bf16[16,16], index: 1, kind: input, shape index: {}]
  %s2 = inlined_call_operand.vmem [shape: f32[3,16], index: 2, kind: input, shape index: {}]
  %s3 = inlined_call_operand.vmem [shape: bf16[800,338], index: 3, kind: input, shape index: {}]
  %s4 = inlined_call_operand.vmem [shape: bf16[256,32], index: 4, kind: input, shape index: {}]
  %s5 = inlined_call_operand.vmem [shape: f32[3,32], index: 5, kind: input, shape index: {}]
  %s6 = inlined_call_operand.vmem [shape: bf16[32,50], index: 6, kind: input, shape index: {}]
  %s7 = inlined_call_operand.vmem [shape: bf16[512,1], index: 7, kind: input, shape index: {}]
  %s8 = inlined_call_operand.<no memory space> [shape: f32[1,1], index: 8, kind: input, shape index: {}]
  %s9 = inlined_call_operand.vmem [shape: f32[2,1], index: 9, kind: output, shape index: {}]
  %s10 = sld [smem:[#allocation0]]
  $region46: #{discriminator_forward.1} parent=0
    _
  %s12 = ssub.s32 1, %s10
  %s13 = scalar_select 0, %s12, %s10
  %v14 = vstv %s8
  %15 = vst [vmem:[#allocation4] sm:$0x1] %v14
  // Predicated region
  $region2: #{discriminator_forward.1} parent=0 // pred_check
    _
  $region3: #{discriminator_forward.1} parent=0 // pred_check_branch
    %17 = sbr.rel (0) target = $region5
  $region4: #{discriminator_forward.1} parent=0 // pred_region
    _
  $region5: #{discriminator_forward.1} parent=0 // pred_fallthru
    _
  // Predicated region
  $region6: #{discriminator_forward.1} parent=0 // pred_check
    _
  $region7: #{discriminator_forward.1} parent=0 // pred_check_branch
    %19 = sbr.rel (0) target = $region9
  $region8: #{discriminator_forward.1} parent=0 // pred_region
    _
  $region9: #{discriminator_forward.1} parent=0 // pred_fallthru
    _
  // Predicated region
  $region10: #{discriminator_forward.1} parent=0 // pred_check
    _
  $region11: #{discriminator_forward.1} parent=0 // pred_check_branch
    %21 = sbr.rel (0) target = $region13
  $region12: #{discriminator_forward.1} parent=0 // pred_region
    _
  $region13: #{discriminator_forward.1} parent=0 // pred_fallthru
    _
  // Predicated region
  $region14: #{discriminator_forward.1} parent=0 // pred_check
    _
  $region15: #{discriminator_forward.1} parent=0 // pred_check_branch
    %23 = sbr.rel (0) target = $region17
  $region16: #{discriminator_forward.1} parent=0 // pred_region
    _
  $region17: #{discriminator_forward.1} parent=0 // pred_fallthru
    _
  // Predicated region
  $region18: #{discriminator_forward.1} parent=0 // pred_check
    _
  $region19: #{discriminator_forward.1} parent=0 // pred_check_branch
    %25 = sbr.rel (0) target = $region21
  $region20: #{discriminator_forward.1} parent=0 // pred_region
    _
  $region21: #{discriminator_forward.1} parent=0 // pred_fallthru
    _
  // Predicated region
  $region22: #{discriminator_forward.1} parent=0 // pred_check
    _
  $region23: #{discriminator_forward.1} parent=0 // pred_check_branch
    %27 = sbr.rel (0) target = $region25
  $region24: #{discriminator_forward.1} parent=0 // pred_region
    _
  $region25: #{discriminator_forward.1} parent=0 // pred_fallthru
    _
  // Predicated region
  $region26: #{discriminator_forward.1} parent=0 // pred_check
    _
  $region27: #{discriminator_forward.1} parent=0 // pred_check_branch
    %29 = sbr.rel (0) target = $region29
  $region28: #{discriminator_forward.1} parent=0 // pred_region
    _
  $region29: #{discriminator_forward.1} parent=0 // pred_fallthru
    _
  // Predicated region
  $region30: #{discriminator_forward.1} parent=0 // pred_check
    _
  $region31: #{discriminator_forward.1} parent=0 // pred_check_branch
    %31 = sbr.rel (0) target = $region33
  $region32: #{discriminator_forward.1} parent=0 // pred_region
    _
  $region33: #{discriminator_forward.1} parent=0 // pred_fallthru
    _
  // Predicated region
  $region34: #{discriminator_forward.1} parent=0 // pred_check
    _
  $region35: #{discriminator_forward.1} parent=0 // pred_check_branch
    %33 = sbr.rel (0) target = $region37
  $region36: #{discriminator_forward.1} parent=0 // pred_region
    _
  $region37: #{discriminator_forward.1} parent=0 // pred_fallthru
    _
  %v35 = vld [vmem:[%s0] sm:$0xf]
  %v36 = vld [vmem:[%s0 + $0x4] sm:$0xf]
  %v37 = vld [vmem:[%s0 + $0x8] sm:$0xf]
  %v38 = vld [vmem:[%s0 + $0xc] sm:$0xf]
  %v39 = vld [vmem:[%s0 + $0x10] sm:$0xf]
  %v40 = vld [vmem:[%s0 + $0x14] sm:$0xf]
  %v41 = vld [vmem:[%s0 + $0x18] sm:$0xf]
  %v42 = vld [vmem:[%s0 + $0x1c] sm:$0xf]
  %v43 = vld [vmem:[%s0 + $0x20] sm:$0xf]
  %v44 = vld [vmem:[%s0 + $0x24] sm:$0xf]
  %v45 = vld [vmem:[%s0 + $0x28] sm:$0xf]
  %v46 = vld [vmem:[%s0 + $0x2c] sm:$0xf]
  %v47 = vld [vmem:[%s0 + $0x30] sm:$0xf]
  %v48 = vld [vmem:[%s0 + $0x34] sm:$0xf]
  %v49 = vld [vmem:[%s0 + $0x38] sm:$0xf]
  %v50 = vld [vmem:[%s0 + $0x3c] sm:$0xf]
  %v51 = vld [vmem:[%s0 + $0x40] sm:$0xf]
  %v52 = vld [vmem:[%s0 + $0x44] sm:$0xf]
  %v53 = vld [vmem:[%s0 + $0x48] sm:$0xf]
  %v54 = vld [vmem:[%s0 + $0x4c] sm:$0xf]
  %v55 = vld [vmem:[%s0 + $0x50] sm:$0xf]
  %v56 = vld [vmem:[%s0 + $0x54] sm:$0xf]
  %v57 = vld [vmem:[%s0 + $0x58] sm:$0xf]
  %v58 = vld [vmem:[%s0 + $0x5c] sm:$0xf]
  %v59 = vld [vmem:[%s0 + $0x60] sm:$0xf]
  %v60 = vld [vmem:[%s0 + $0x64] sm:$0xf]
  %v61 = vld [vmem:[%s0 + $0x68] sm:$0xf]
  %v62 = vld [vmem:[%s0 + $0x6c] sm:$0xf]
  %v63 = vld [vmem:[%s0 + $0x70] sm:$0xf]
  %v64 = vld [vmem:[%s0 + $0x74] sm:$0xf]
  %v65 = vld [vmem:[%s0 + $0x78] sm:$0xf]
  %v66 = vld [vmem:[%s0 + $0x7c] sm:$0xf]
  %v67 = vld [vmem:[%s0 + $0x80] sm:$0xf]
  %v68 = vld [vmem:[%s0 + $0x84] sm:$0xf]
  %v69 = vld [vmem:[%s0 + $0x88] sm:$0xf]
  %v70 = vld [vmem:[%s0 + $0x8c] sm:$0xf]
  %v71 = vld [vmem:[%s0 + $0x90] sm:$0xf]
  %v72 = vld [vmem:[%s0 + $0x94] sm:$0xf]
  %v73 = vld [vmem:[%s0 + $0x98] sm:$0xf]
  %v74 = vld [vmem:[%s0 + $0x9c] sm:$0xf]
  %v75 = vld [vmem:[%s0 + $0xa0] sm:$0xf]
  %v76 = vld [vmem:[%s0 + $0xa4] sm:$0xf]
  %v77 = vld [vmem:[%s0 + $0xa8] sm:$0x1]
  %v78 = vld [vmem:[%s1] sm:$0xf]
  %v79 = vld [vmem:[%s1 + $0x4] sm:$0xf]
  %v80 = vld [vmem:[%s2] sm:$0x1]
  %v81 = vlaneseq
  %v82 = vshrl.u32 %v81, 7
  %v83 = vsub.s32 0, %v82
  %v84 = vrot.slane %v80, %v83
  %v128 = vunpack.c.l.b16 %v35
  %v129 = vunpack.c.l.b16 %v36
  %v130 = vunpack.c.l.b16 %v37
  %v131 = vunpack.c.l.b16 %v38
  %v132 = vunpack.c.l.b16 %v39
  %v133 = vunpack.c.l.b16 %v40
  %v134 = vunpack.c.l.b16 %v41
  %v135 = vunpack.c.l.b16 %v42
  %v136 = vunpack.c.l.b16 %v43
  %v137 = vunpack.c.l.b16 %v44
  %v138 = vunpack.c.l.b16 %v45
  %v139 = vunpack.c.l.b16 %v46
  %v140 = vunpack.c.l.b16 %v47
  %v141 = vunpack.c.l.b16 %v48
  %v142 = vunpack.c.l.b16 %v49
  %v143 = vunpack.c.l.b16 %v50
  %v144 = vunpack.c.l.b16 %v51
  %v145 = vunpack.c.l.b16 %v52
  %v146 = vunpack.c.l.b16 %v53
  %v147 = vunpack.c.l.b16 %v54
  %v148 = vunpack.c.l.b16 %v55
  %v149 = vunpack.c.l.b16 %v56
  %v150 = vunpack.c.l.b16 %v57
  %v151 = vunpack.c.l.b16 %v58
  %v152 = vunpack.c.l.b16 %v59
  %v153 = vunpack.c.l.b16 %v60
  %v154 = vunpack.c.l.b16 %v61
  %v155 = vunpack.c.l.b16 %v62
  %v156 = vunpack.c.l.b16 %v63
  %v157 = vunpack.c.l.b16 %v64
  %v158 = vunpack.c.l.b16 %v65
  %v159 = vunpack.c.l.b16 %v66
  %v160 = vunpack.c.l.b16 %v67
  %v161 = vunpack.c.l.b16 %v68
  %v162 = vunpack.c.l.b16 %v69
  %v163 = vunpack.c.l.b16 %v70
  %v164 = vunpack.c.l.b16 %v71
  %v165 = vunpack.c.l.b16 %v72
  %v166 = vunpack.c.l.b16 %v73
  %v167 = vunpack.c.l.b16 %v74
  %v168 = vunpack.c.l.b16 %v75
  %v169 = vunpack.c.l.b16 %v76
  %v170 = vunpack.c.l.b16 %v77
  %v171 = vpack.c.b16 %v129, %v128
  %v172 = vpack.c.b16 %v131, %v130
  %v173 = vpack.c.b16 %v133, %v132
  %v174 = vpack.c.b16 %v135, %v134
  %v175 = vpack.c.b16 %v137, %v136
  %v176 = vpack.c.b16 %v139, %v138
  %v177 = vpack.c.b16 %v141, %v140
  %v178 = vpack.c.b16 %v143, %v142
  %v179 = vpack.c.b16 %v145, %v144
  %v180 = vpack.c.b16 %v147, %v146
  %v181 = vpack.c.b16 %v149, %v148
  %v182 = vpack.c.b16 %v151, %v150
  %v183 = vpack.c.b16 %v153, %v152
  %v184 = vpack.c.b16 %v155, %v154
  %v185 = vpack.c.b16 %v157, %v156
  %v186 = vpack.c.b16 %v159, %v158
  %v187 = vpack.c.b16 %v161, %v160
  %v188 = vpack.c.b16 %v163, %v162
  %v189 = vpack.c.b16 %v165, %v164
  %v190 = vpack.c.b16 %v167, %v166
  %v191 = vpack.c.b16 %v169, %v168
  %v192 = vpack.c.b16 %v170, %v170
  %v195 = vunpack.c.l.b16 %v78
  %v196 = vunpack.c.l.b16 %v79
  %v197 = vpack.c.b16 %v196, %v195
  %vm199 = vcmask 130048
  %v201 = vsel %vm199, %v171, 0
  %v204 = vsel %vm199, %v172, 0
  %v207 = vsel %vm199, %v173, 0
  %v210 = vsel %vm199, %v174, 0
  %v213 = vsel %vm199, %v175, 0
  %v216 = vsel %vm199, %v176, 0
  %v219 = vsel %vm199, %v177, 0
  %v222 = vsel %vm199, %v178, 0
  %v225 = vsel %vm199, %v179, 0
  %v228 = vsel %vm199, %v180, 0
  %v231 = vsel %vm199, %v181, 0
  %v234 = vsel %vm199, %v182, 0
  %v237 = vsel %vm199, %v183, 0
  %v240 = vsel %vm199, %v184, 0
  %v243 = vsel %vm199, %v185, 0
  %v246 = vsel %vm199, %v186, 0
  %v249 = vsel %vm199, %v187, 0
  %v252 = vsel %vm199, %v188, 0
  %v255 = vsel %vm199, %v189, 0
  %v258 = vsel %vm199, %v190, 0
  %v261 = vsel %vm199, %v191, 0
  %v264 = vsel %vm199, %v192, 0
  %266 = vmatprep.subr.bf16.mxu0 0
  %267 = vmatpush1.bf16.msra.mxu0 %v197
  %268 = vmatprep.subr.bf16.mxu0 0
  %269 = vmatpush1.bf16.msra.mxu0 0
  %270 = vmatprep.subr.bf16.mxu0 0
  %271 = vmatpush1.bf16.msra.mxu0 0
  %272 = vmatprep.subr.bf16.mxu0 0
  %273 = vmatpush1.bf16.msra.mxu0 0
  %274 = vmatprep.subr.bf16.mxu0 0
  %275 = vmatpush1.bf16.msra.mxu0 0
  %276 = vmatprep.subr.bf16.mxu0 0
  %277 = vmatpush1.bf16.msra.mxu0 0
  %278 = vmatprep.subr.bf16.mxu0 0
  %279 = vmatpush1.bf16.msra.mxu0 0
  %280 = vmatprep.subr.bf16.mxu0 0
  %281 = vmatpush1.bf16.msra.mxu0 0
  %282 = vmatprep.subr.bf16.mxu0 0
  %283 = vmatpush1.bf16.msra.mxu0 0
  %284 = vmatprep.subr.bf16.mxu0 0
  %285 = vmatpush1.bf16.msra.mxu0 0
  %286 = vmatprep.subr.bf16.mxu0 0
  %287 = vmatpush1.bf16.msra.mxu0 0
  %288 = vmatprep.subr.bf16.mxu0 0
  %289 = vmatpush1.bf16.msra.mxu0 0
  %290 = vmatprep.subr.bf16.mxu0 0
  %291 = vmatpush1.bf16.msra.mxu0 0
  %292 = vmatprep.subr.bf16.mxu0 0
  %293 = vmatpush1.bf16.msra.mxu0 0
  %294 = vmatprep.subr.bf16.mxu0 0
  %295 = vmatpush1.bf16.msra.mxu0 0
  %296 = vmatprep.subr.bf16.mxu0 0
  %297 = vmatpush1.bf16.msra.mxu0 0
  %298 = vmatprep.mubr.bf16.mxu0 0
  %299 = vmatmul.mubr.bf16.gmra.mrb[0].mxu0 %v201
  %v300 = vpop.f32.mrb[0].mxu0
  %v301 = vadd.f32 %v84, %v300
  %v302 = vpop.f32.mrb[0].mxu0
  %v303 = vpop.f32.mrb[0].mxu0
  %v304 = vadd.f32 %v84, %v303
  %v305 = vpop.f32.mrb[0].mxu0
  %306 = vmatprep.mubr.bf16.mxu0 0
  %307 = vmatmul.mubr.bf16.gmra.mrb[0].mxu0 %v204
  %v308 = vpop.f32.mrb[0].mxu0
  %v309 = vadd.f32 %v84, %v308
  %v310 = vpop.f32.mrb[0].mxu0
  %v311 = vpop.f32.mrb[0].mxu0
  %v312 = vadd.f32 %v84, %v311
  %v313 = vpop.f32.mrb[0].mxu0
  %314 = vmatprep.mubr.bf16.mxu0 0
  %315 = vmatmul.mubr.bf16.gmra.mrb[0].mxu0 %v207
  %v316 = vpop.f32.mrb[0].mxu0
  %v317 = vadd.f32 %v84, %v316
  %v318 = vpop.f32.mrb[0].mxu0
  %v319 = vpop.f32.mrb[0].mxu0
  %v320 = vadd.f32 %v84, %v319
  %v321 = vpop.f32.mrb[0].mxu0
  %322 = vmatprep.mubr.bf16.mxu0 0
  %323 = vmatmul.mubr.bf16.gmra.mrb[0].mxu0 %v210
  %v324 = vpop.f32.mrb[0].mxu0
  %v325 = vadd.f32 %v84, %v324
  %v326 = vpop.f32.mrb[0].mxu0
  %v327 = vpop.f32.mrb[0].mxu0
  %v328 = vadd.f32 %v84, %v327
  %v329 = vpop.f32.mrb[0].mxu0
  %330 = vmatprep.mubr.bf16.mxu0 0
  %331 = vmatmul.mubr.bf16.gmra.mrb[0].mxu0 %v213
  %v332 = vpop.f32.mrb[0].mxu0
  %v333 = vadd.f32 %v84, %v332
  %v334 = vpop.f32.mrb[0].mxu0
  %v335 = vpop.f32.mrb[0].mxu0
  %v336 = vadd.f32 %v84, %v335
  %v337 = vpop.f32.mrb[0].mxu0
  %338 = vmatprep.mubr.bf16.mxu0 0
  %339 = vmatmul.mubr.bf16.gmra.mrb[0].mxu0 %v216
  %v340 = vpop.f32.mrb[0].mxu0
  %v341 = vadd.f32 %v84, %v340
  %v342 = vpop.f32.mrb[0].mxu0
  %v343 = vpop.f32.mrb[0].mxu0
  %v344 = vadd.f32 %v84, %v343
  %v345 = vpop.f32.mrb[0].mxu0
  %346 = vmatprep.mubr.bf16.mxu0 0
  %347 = vmatmul.mubr.bf16.gmra.mrb[0].mxu0 %v219
  %v348 = vpop.f32.mrb[0].mxu0
  %v349 = vadd.f32 %v84, %v348
  %v350 = vpop.f32.mrb[0].mxu0
  %v351 = vpop.f32.mrb[0].mxu0
  %v352 = vadd.f32 %v84, %v351
  %v353 = vpop.f32.mrb[0].mxu0
  %354 = vmatprep.mubr.bf16.mxu0 0
  %355 = vmatmul.mubr.bf16.gmra.mrb[0].mxu0 %v222
  %v356 = vpop.f32.mrb[0].mxu0
  %v357 = vadd.f32 %v84, %v356
  %v358 = vpop.f32.mrb[0].mxu0
  %v359 = vpop.f32.mrb[0].mxu0
  %v360 = vadd.f32 %v84, %v359
  %v361 = vpop.f32.mrb[0].mxu0
  %362 = vmatprep.mubr.bf16.mxu0 0
  %363 = vmatmul.mubr.bf16.gmra.mrb[0].mxu0 %v225
  %v364 = vpop.f32.mrb[0].mxu0
  %v365 = vadd.f32 %v84, %v364
  %v366 = vpop.f32.mrb[0].mxu0
  %v367 = vpop.f32.mrb[0].mxu0
  %v368 = vadd.f32 %v84, %v367
  %v369 = vpop.f32.mrb[0].mxu0
  %370 = vmatprep.mubr.bf16.mxu0 0
  %371 = vmatmul.mubr.bf16.gmra.mrb[0].mxu0 %v228
  %v372 = vpop.f32.mrb[0].mxu0
  %v373 = vadd.f32 %v84, %v372
  %v374 = vpop.f32.mrb[0].mxu0
  %v375 = vpop.f32.mrb[0].mxu0
  %v376 = vadd.f32 %v84, %v375
  %v377 = vpop.f32.mrb[0].mxu0
  %378 = vmatprep.mubr.bf16.mxu0 0
  %379 = vmatmul.mubr.bf16.gmra.mrb[0].mxu0 %v231
  %v380 = vpop.f32.mrb[0].mxu0
  %v381 = vadd.f32 %v84, %v380
  %v382 = vpop.f32.mrb[0].mxu0
  %v383 = vpop.f32.mrb[0].mxu0
  %v384 = vadd.f32 %v84, %v383
  %v385 = vpop.f32.mrb[0].mxu0
  %386 = vmatprep.mubr.bf16.mxu0 0
  %387 = vmatmul.mubr.bf16.gmra.mrb[0].mxu0 %v234
  %v388 = vpop.f32.mrb[0].mxu0
  %v389 = vadd.f32 %v84, %v388
  %v390 = vpop.f32.mrb[0].mxu0
  %v391 = vpop.f32.mrb[0].mxu0
  %v392 = vadd.f32 %v84, %v391
  %v393 = vpop.f32.mrb[0].mxu0
  %394 = vmatprep.mubr.bf16.mxu0 0
  %395 = vmatmul.mubr.bf16.gmra.mrb[0].mxu0 %v237
  %v396 = vpop.f32.mrb[0].mxu0
  %v397 = vadd.f32 %v84, %v396
  %v398 = vpop.f32.mrb[0].mxu0
  %v399 = vpop.f32.mrb[0].mxu0
  %v400 = vadd.f32 %v84, %v399
  %v401 = vpop.f32.mrb[0].mxu0
  %402 = vmatprep.mubr.bf16.mxu0 0
  %403 = vmatmul.mubr.bf16.gmra.mrb[0].mxu0 %v240
  %v404 = vpop.f32.mrb[0].mxu0
  %v405 = vadd.f32 %v84, %v404
  %v406 = vpop.f32.mrb[0].mxu0
  %v407 = vpop.f32.mrb[0].mxu0
  %v408 = vadd.f32 %v84, %v407
  %v409 = vpop.f32.mrb[0].mxu0
  %410 = vmatprep.mubr.bf16.mxu0 0
  %411 = vmatmul.mubr.bf16.gmra.mrb[0].mxu0 %v243
  %v412 = vpop.f32.mrb[0].mxu0
  %v413 = vadd.f32 %v84, %v412
  %v414 = vpop.f32.mrb[0].mxu0
  %v415 = vpop.f32.mrb[0].mxu0
  %v416 = vadd.f32 %v84, %v415
  %v417 = vpop.f32.mrb[0].mxu0
  %418 = vmatprep.mubr.bf16.mxu0 0
  %419 = vmatmul.mubr.bf16.gmra.mrb[0].mxu0 %v246
  %v420 = vpop.f32.mrb[0].mxu0
  %v421 = vadd.f32 %v84, %v420
  %v422 = vpop.f32.mrb[0].mxu0
  %v423 = vpop.f32.mrb[0].mxu0
  %v424 = vadd.f32 %v84, %v423
  %v425 = vpop.f32.mrb[0].mxu0
  %426 = vmatprep.mubr.bf16.mxu0 0
  %427 = vmatmul.mubr.bf16.gmra.mrb[0].mxu0 %v249
  %v428 = vpop.f32.mrb[0].mxu0
  %v429 = vadd.f32 %v84, %v428
  %v430 = vpop.f32.mrb[0].mxu0
  %v431 = vpop.f32.mrb[0].mxu0
  %v432 = vadd.f32 %v84, %v431
  %v433 = vpop.f32.mrb[0].mxu0
  %434 = vmatprep.mubr.bf16.mxu0 0
  %435 = vmatmul.mubr.bf16.gmra.mrb[0].mxu0 %v252
  %v436 = vpop.f32.mrb[0].mxu0
  %v437 = vadd.f32 %v84, %v436
  %v438 = vpop.f32.mrb[0].mxu0
  %v439 = vpop.f32.mrb[0].mxu0
  %v440 = vadd.f32 %v84, %v439
  %v441 = vpop.f32.mrb[0].mxu0
  %442 = vmatprep.mubr.bf16.mxu0 0
  %443 = vmatmul.mubr.bf16.gmra.mrb[0].mxu0 %v255
  %v444 = vpop.f32.mrb[0].mxu0
  %v445 = vadd.f32 %v84, %v444
  %v446 = vpop.f32.mrb[0].mxu0
  %v447 = vpop.f32.mrb[0].mxu0
  %v448 = vadd.f32 %v84, %v447
  %v449 = vpop.f32.mrb[0].mxu0
  %450 = vmatprep.mubr.bf16.mxu0 0
  %451 = vmatmul.mubr.bf16.gmra.mrb[0].mxu0 %v258
  %v452 = vpop.f32.mrb[0].mxu0
  %v453 = vadd.f32 %v84, %v452
  %v454 = vpop.f32.mrb[0].mxu0
  %v455 = vpop.f32.mrb[0].mxu0
  %v456 = vadd.f32 %v84, %v455
  %v457 = vpop.f32.mrb[0].mxu0
  %458 = vmatprep.mubr.bf16.mxu0 0
  %459 = vmatmul.mubr.bf16.gmra.mrb[0].mxu0 %v261
  %v460 = vpop.f32.mrb[0].mxu0
  %v461 = vadd.f32 %v84, %v460
  %v462 = vpop.f32.mrb[0].mxu0
  %v463 = vpop.f32.mrb[0].mxu0
  %v464 = vadd.f32 %v84, %v463
  %v465 = vpop.f32.mrb[0].mxu0
  %466 = vmatprep.mubr.bf16.mxu0 0
  %467 = vmatmul.mubr.bf16.gmra.mrb[0].mxu0 %v264
  %v468 = vpop.f32.mrb[0].mxu0
  %v469 = vadd.f32 %v84, %v468
  %v470 = vpop.f32.mrb[0].mxu0
  %v471 = vpop.f32.mrb[0].mxu0
  %v472 = vpop.f32.mrb[0].mxu0
  %473 = vdwg.mxu0
  %v474 = vsel %vm199, %v301, 0.0
  %v475 = vsel %vm199, %v304, 0.0
  %v476 = vadd.f32 %v474, %v475
  %v477 = vsel %vm199, %v309, 0.0
  %v478 = vadd.f32 %v476, %v477
  %v479 = vsel %vm199, %v312, 0.0
  %v480 = vadd.f32 %v478, %v479
  %v481 = vsel %vm199, %v317, 0.0
  %v482 = vadd.f32 %v480, %v481
  %v483 = vsel %vm199, %v320, 0.0
  %v484 = vadd.f32 %v482, %v483
  %v485 = vsel %vm199, %v325, 0.0
  %v486 = vadd.f32 %v484, %v485
  %v487 = vsel %vm199, %v328, 0.0
  %v488 = vadd.f32 %v486, %v487
  %v489 = vsel %vm199, %v333, 0.0
  %v490 = vadd.f32 %v488, %v489
  %v491 = vsel %vm199, %v336, 0.0
  %v492 = vadd.f32 %v490, %v491
  %v493 = vsel %vm199, %v341, 0.0
  %v494 = vadd.f32 %v492, %v493
  %v495 = vsel %vm199, %v344, 0.0
  %v496 = vadd.f32 %v494, %v495
  %v497 = vsel %vm199, %v349, 0.0
  %v498 = vadd.f32 %v496, %v497
  %v499 = vsel %vm199, %v352, 0.0
  %v500 = vadd.f32 %v498, %v499
  %v501 = vsel %vm199, %v357, 0.0
  %v502 = vadd.f32 %v500, %v501
  %v503 = vsel %vm199, %v360, 0.0
  %v504 = vadd.f32 %v502, %v503
  %v505 = vsel %vm199, %v365, 0.0
  %v506 = vadd.f32 %v504, %v505
  %v507 = vsel %vm199, %v368, 0.0
  %v508 = vadd.f32 %v506, %v507
  %v509 = vsel %vm199, %v373, 0.0
  %v510 = vadd.f32 %v508, %v509
  %v511 = vsel %vm199, %v376, 0.0
  %v512 = vadd.f32 %v510, %v511
  %v513 = vsel %vm199, %v381, 0.0
  %v514 = vadd.f32 %v512, %v513
  %v515 = vsel %vm199, %v384, 0.0
  %v516 = vadd.f32 %v514, %v515
  %v517 = vsel %vm199, %v389, 0.0
  %v518 = vadd.f32 %v516, %v517
  %v519 = vsel %vm199, %v392, 0.0
  %v520 = vadd.f32 %v518, %v519
  %v521 = vsel %vm199, %v397, 0.0
  %v522 = vadd.f32 %v520, %v521
  %v523 = vsel %vm199, %v400, 0.0
  %v524 = vadd.f32 %v522, %v523
  %v525 = vsel %vm199, %v405, 0.0
  %v526 = vadd.f32 %v524, %v525
  %v527 = vsel %vm199, %v408, 0.0
  %v528 = vadd.f32 %v526, %v527
  %v529 = vsel %vm199, %v413, 0.0
  %v530 = vadd.f32 %v528, %v529
  %v531 = vsel %vm199, %v416, 0.0
  %v532 = vadd.f32 %v530, %v531
  %v533 = vsel %vm199, %v421, 0.0
  %v534 = vadd.f32 %v532, %v533
  %v535 = vsel %vm199, %v424, 0.0
  %v536 = vadd.f32 %v534, %v535
  %v537 = vsel %vm199, %v429, 0.0
  %v538 = vadd.f32 %v536, %v537
  %v539 = vsel %vm199, %v432, 0.0
  %v540 = vadd.f32 %v538, %v539
  %v541 = vsel %vm199, %v437, 0.0
  %v542 = vadd.f32 %v540, %v541
  %v543 = vsel %vm199, %v440, 0.0
  %v544 = vadd.f32 %v542, %v543
  %v545 = vsel %vm199, %v445, 0.0
  %v546 = vadd.f32 %v544, %v545
  %v547 = vsel %vm199, %v448, 0.0
  %v548 = vadd.f32 %v546, %v547
  %v549 = vsel %vm199, %v453, 0.0
  %v550 = vadd.f32 %v548, %v549
  %v551 = vsel %vm199, %v456, 0.0
  %v552 = vadd.f32 %v550, %v551
  %v553 = vsel %vm199, %v461, 0.0
  %v554 = vadd.f32 %v552, %v553
  %v555 = vsel %vm199, %v464, 0.0
  %v556 = vadd.f32 %v554, %v555
  %vm557 = vcmask 123904
  %v558 = vsel %vm557, %v469, 0.0
  %v559 = vadd.f32 %v556, %v558
  %v560 = vrot.slane %v559, 4
  %v561 = vadd.f32 %v559, %v560
  %v562 = vrot.slane %v561, 2
  %v563 = vadd.f32 %v561, %v562
  %v564 = vrot.slane %v563, 1
  %v565 = vadd.f32 %v563, %v564
  %v566 = vmul.f32 %v565, 0.00295858
  %v567 = vsub.f32 %v301, %v566
  %v568 = vsub.f32 %v304, %v566
  %v569 = vsub.f32 %v309, %v566
  %v570 = vsub.f32 %v312, %v566
  %v571 = vsub.f32 %v317, %v566
  %v572 = vsub.f32 %v320, %v566
  %v573 = vsub.f32 %v325, %v566
  %v574 = vsub.f32 %v328, %v566
  %v575 = vsub.f32 %v333, %v566
  %v576 = vsub.f32 %v336, %v566
  %v577 = vsub.f32 %v341, %v566
  %v578 = vsub.f32 %v344, %v566
  %v579 = vsub.f32 %v349, %v566
  %v580 = vsub.f32 %v352, %v566
  %v581 = vsub.f32 %v357, %v566
  %v582 = vsub.f32 %v360, %v566
  %v583 = vsub.f32 %v365, %v566
  %v584 = vsub.f32 %v368, %v566
  %v585 = vsub.f32 %v373, %v566
  %v586 = vsub.f32 %v376, %v566
  %v587 = vsub.f32 %v381, %v566
  %v588 = vsub.f32 %v384, %v566
  %v589 = vsub.f32 %v389, %v566
  %v590 = vsub.f32 %v392, %v566
  %v591 = vsub.f32 %v397, %v566
  %v592 = vsub.f32 %v400, %v566
  %v593 = vsub.f32 %v405, %v566
  %v594 = vsub.f32 %v408, %v566
  %v595 = vsub.f32 %v413, %v566
  %v596 = vsub.f32 %v416, %v566
  %v597 = vsub.f32 %v421, %v566
  %v598 = vsub.f32 %v424, %v566
  %v599 = vsub.f32 %v429, %v566
  %v600 = vsub.f32 %v432, %v566
  %v601 = vsub.f32 %v437, %v566
  %v602 = vsub.f32 %v440, %v566
  %v603 = vsub.f32 %v445, %v566
  %v604 = vsub.f32 %v448, %v566
  %v605 = vsub.f32 %v453, %v566
  %v606 = vsub.f32 %v456, %v566
  %v607 = vsub.f32 %v461, %v566
  %v608 = vsub.f32 %v464, %v566
  %v609 = vsub.f32 %v469, %v566
  %v610 = vmul.f32 %v567, %v567
  %v611 = vmul.f32 %v568, %v568
  %v612 = vmul.f32 %v569, %v569
  %v613 = vmul.f32 %v570, %v570
  %v614 = vmul.f32 %v571, %v571
  %v615 = vmul.f32 %v572, %v572
  %v616 = vmul.f32 %v573, %v573
  %v617 = vmul.f32 %v574, %v574
  %v618 = vmul.f32 %v575, %v575
  %v619 = vmul.f32 %v576, %v576
  %v620 = vmul.f32 %v577, %v577
  %v621 = vmul.f32 %v578, %v578
  %v622 = vmul.f32 %v579, %v579
  %v623 = vmul.f32 %v580, %v580
  %v624 = vmul.f32 %v581, %v581
  %v625 = vmul.f32 %v582, %v582
  %v626 = vmul.f32 %v583, %v583
  %v627 = vmul.f32 %v584, %v584
  %v628 = vmul.f32 %v585, %v585
  %v629 = vmul.f32 %v586, %v586
  %v630 = vmul.f32 %v587, %v587
  %v631 = vmul.f32 %v588, %v588
  %v632 = vmul.f32 %v589, %v589
  %v633 = vmul.f32 %v590, %v590
  %v634 = vmul.f32 %v591, %v591
  %v635 = vmul.f32 %v592, %v592
  %v636 = vmul.f32 %v593, %v593
  %v637 = vmul.f32 %v594, %v594
  %v638 = vmul.f32 %v595, %v595
  %v639 = vmul.f32 %v596, %v596
  %v640 = vmul.f32 %v597, %v597
  %v641 = vmul.f32 %v598, %v598
  %v642 = vmul.f32 %v599, %v599
  %v643 = vmul.f32 %v600, %v600
  %v644 = vmul.f32 %v601, %v601
  %v645 = vmul.f32 %v602, %v602
  %v646 = vmul.f32 %v603, %v603
  %v647 = vmul.f32 %v604, %v604
  %v648 = vmul.f32 %v605, %v605
  %v649 = vmul.f32 %v606, %v606
  %v650 = vmul.f32 %v607, %v607
  %v651 = vmul.f32 %v608, %v608
  %v652 = vmul.f32 %v609, %v609
  %v653 = vsel %vm199, %v610, 0.0
  %v654 = vsel %vm199, %v611, 0.0
  %v655 = vadd.f32 %v653, %v654
  %v656 = vsel %vm199, %v612, 0.0
  %v657 = vadd.f32 %v655, %v656
  %v658 = vsel %vm199, %v613, 0.0
  %v659 = vadd.f32 %v657, %v658
  %v660 = vsel %vm199, %v614, 0.0
  %v661 = vadd.f32 %v659, %v660
  %v662 = vsel %vm199, %v615, 0.0
  %v663 = vadd.f32 %v661, %v662
  %v664 = vsel %vm199, %v616, 0.0
  %v665 = vadd.f32 %v663, %v664
  %v666 = vsel %vm199, %v617, 0.0
  %v667 = vadd.f32 %v665, %v666
  %v668 = vsel %vm199, %v618, 0.0
  %v669 = vadd.f32 %v667, %v668
  %v670 = vsel %vm199, %v619, 0.0
  %v671 = vadd.f32 %v669, %v670
  %v672 = vsel %vm199, %v620, 0.0
  %v673 = vadd.f32 %v671, %v672
  %v674 = vsel %vm199, %v621, 0.0
  %v675 = vadd.f32 %v673, %v674
  %v676 = vsel %vm199, %v622, 0.0
  %v677 = vadd.f32 %v675, %v676
  %v678 = vsel %vm199, %v623, 0.0
  %v679 = vadd.f32 %v677, %v678
  %v680 = vsel %vm199, %v624, 0.0
  %v681 = vadd.f32 %v679, %v680
  %v682 = vsel %vm199, %v625, 0.0
  %v683 = vadd.f32 %v681, %v682
  %v684 = vsel %vm199, %v626, 0.0
  %v685 = vadd.f32 %v683, %v684
  %v686 = vsel %vm199, %v627, 0.0
  %v687 = vadd.f32 %v685, %v686
  %v688 = vsel %vm199, %v628, 0.0
  %v689 = vadd.f32 %v687, %v688
  %v690 = vsel %vm199, %v629, 0.0
  %v691 = vadd.f32 %v689, %v690
  %v692 = vsel %vm199, %v630, 0.0
  %v693 = vadd.f32 %v691, %v692
  %v694 = vsel %vm199, %v631, 0.0
  %v695 = vadd.f32 %v693, %v694
  %v696 = vsel %vm199, %v632, 0.0
  %v697 = vadd.f32 %v695, %v696
  %v698 = vsel %vm199, %v633, 0.0
  %v699 = vadd.f32 %v697, %v698
  %v700 = vsel %vm199, %v634, 0.0
  %v701 = vadd.f32 %v699, %v700
  %v702 = vsel %vm199, %v635, 0.0
  %v703 = vadd.f32 %v701, %v702
  %v704 = vsel %vm199, %v636, 0.0
  %v705 = vadd.f32 %v703, %v704
  %v706 = vsel %vm199, %v637, 0.0
  %v707 = vadd.f32 %v705, %v706
  %v708 = vsel %vm199, %v638, 0.0
  %v709 = vadd.f32 %v707, %v708
  %v710 = vsel %vm199, %v639, 0.0
  %v711 = vadd.f32 %v709, %v710
  %v712 = vsel %vm199, %v640, 0.0
  %v713 = vadd.f32 %v711, %v712
  %v714 = vsel %vm199, %v641, 0.0
  %v715 = vadd.f32 %v713, %v714
  %v716 = vsel %vm199, %v642, 0.0
  %v717 = vadd.f32 %v715, %v716
  %v718 = vsel %vm199, %v643, 0.0
  %v719 = vadd.f32 %v717, %v718
  %v720 = vsel %vm199, %v644, 0.0
  %v721 = vadd.f32 %v719, %v720
  %v722 = vsel %vm199, %v645, 0.0
  %v723 = vadd.f32 %v721, %v722
  %v724 = vsel %vm199, %v646, 0.0
  %v725 = vadd.f32 %v723, %v724
  %v726 = vsel %vm199, %v647, 0.0
  %v727 = vadd.f32 %v725, %v726
  %v728 = vsel %vm199, %v648, 0.0
  %v729 = vadd.f32 %v727, %v728
  %v730 = vsel %vm199, %v649, 0.0
  %v731 = vadd.f32 %v729, %v730
  %v732 = vsel %vm199, %v650, 0.0
  %v733 = vadd.f32 %v731, %v732
  %v734 = vsel %vm199, %v651, 0.0
  %v735 = vadd.f32 %v733, %v734
  %v736 = vsel %vm557, %v652, 0.0
  %v737 = vadd.f32 %v735, %v736
  %v738 = vrot.slane %v737, 4
  %v739 = vadd.f32 %v737, %v738
  %v740 = vrot.slane %v739, 2
  %v741 = vadd.f32 %v739, %v740
  %v742 = vrot.slane %v741, 1
  %v743 = vadd.f32 %v741, %v742
  %v744 = vmul.f32 %v743, 0.00295858
  %v745 = vadd.f32 %v744, 1e-05
  %v746 = vrsqrt.pop %v745
  %v747 = vmul.f32 %v567, %v746
  %v748 = vmul.f32 %v568, %v746
  %v749 = vmul.f32 %v569, %v746
  %v750 = vmul.f32 %v570, %v746
  %v751 = vmul.f32 %v571, %v746
  %v752 = vmul.f32 %v572, %v746
  %v753 = vmul.f32 %v573, %v746
  %v754 = vmul.f32 %v574, %v746
  %v755 = vmul.f32 %v575, %v746
  %v756 = vmul.f32 %v576, %v746
  %v757 = vmul.f32 %v577, %v746
  %v758 = vmul.f32 %v578, %v746
  %v759 = vmul.f32 %v579, %v746
  %v760 = vmul.f32 %v580, %v746
  %v761 = vmul.f32 %v581, %v746
  %v762 = vmul.f32 %v582, %v746
  %v763 = vmul.f32 %v583, %v746
  %v764 = vmul.f32 %v584, %v746
  %v765 = vmul.f32 %v585, %v746
  %v766 = vmul.f32 %v586, %v746
  %v767 = vmul.f32 %v587, %v746
  %v768 = vmul.f32 %v588, %v746
  %v769 = vmul.f32 %v589, %v746
  %v770 = vmul.f32 %v590, %v746
  %v771 = vmul.f32 %v591, %v746
  %v772 = vmul.f32 %v592, %v746
  %v773 = vmul.f32 %v593, %v746
  %v774 = vmul.f32 %v594, %v746
  %v775 = vmul.f32 %v595, %v746
  %v776 = vmul.f32 %v596, %v746
  %v777 = vmul.f32 %v597, %v746
  %v778 = vmul.f32 %v598, %v746
  %v779 = vmul.f32 %v599, %v746
  %v780 = vmul.f32 %v600, %v746
  %v781 = vmul.f32 %v601, %v746
  %v782 = vmul.f32 %v602, %v746
  %v783 = vmul.f32 %v603, %v746
  %v784 = vmul.f32 %v604, %v746
  %v785 = vmul.f32 %v605, %v746
  %v786 = vmul.f32 %v606, %v746
  %v787 = vmul.f32 %v607, %v746
  %v788 = vmul.f32 %v608, %v746
  %v789 = vmul.f32 %v609, %v746
  %v790 = vld [vmem:[%s2 + $0x1] sm:$0x1]
  %v791 = vlaneseq
  %v792 = vshrl.u32 %v791, 7
  %v793 = vsub.s32 0, %v792
  %v794 = vrot.slane %v790, %v793
  %v795 = vmul.f32 %v747, %v794
  %v796 = vmul.f32 %v748, %v794
  %v797 = vmul.f32 %v749, %v794
  %v798 = vmul.f32 %v750, %v794
  %v799 = vmul.f32 %v751, %v794
  %v800 = vmul.f32 %v752, %v794
  %v801 = vmul.f32 %v753, %v794
  %v802 = vmul.f32 %v754, %v794
  %v803 = vmul.f32 %v755, %v794
  %v804 = vmul.f32 %v756, %v794
  %v805 = vmul.f32 %v757, %v794
  %v806 = vmul.f32 %v758, %v794
  %v807 = vmul.f32 %v759, %v794
  %v808 = vmul.f32 %v760, %v794
  %v809 = vmul.f32 %v761, %v794
  %v810 = vmul.f32 %v762, %v794
  %v811 = vmul.f32 %v763, %v794
  %v812 = vmul.f32 %v764, %v794
  %v813 = vmul.f32 %v765, %v794
  %v814 = vmul.f32 %v766, %v794
  %v815 = vmul.f32 %v767, %v794
  %v816 = vmul.f32 %v768, %v794
  %v817 = vmul.f32 %v769, %v794
  %v818 = vmul.f32 %v770, %v794
  %v819 = vmul.f32 %v771, %v794
  %v820 = vmul.f32 %v772, %v794
  %v821 = vmul.f32 %v773, %v794
  %v822 = vmul.f32 %v774, %v794
  %v823 = vmul.f32 %v775, %v794
  %v824 = vmul.f32 %v776, %v794
  %v825 = vmul.f32 %v777, %v794
  %v826 = vmul.f32 %v778, %v794
  %v827 = vmul.f32 %v779, %v794
  %v828 = vmul.f32 %v780, %v794
  %v829 = vmul.f32 %v781, %v794
  %v830 = vmul.f32 %v782, %v794
  %v831 = vmul.f32 %v783, %v794
  %v832 = vmul.f32 %v784, %v794
  %v833 = vmul.f32 %v785, %v794
  %v834 = vmul.f32 %v786, %v794
  %v835 = vmul.f32 %v787, %v794
  %v836 = vmul.f32 %v788, %v794
  %v837 = vmul.f32 %v789, %v794
  %v838 = vld [vmem:[%s2 + $0x2] sm:$0x1]
  %v839 = vlaneseq
  %v840 = vshrl.u32 %v839, 7
  %v841 = vsub.s32 0, %v840
  %v842 = vrot.slane %v838, %v841
  %v843 = vadd.f32 %v795, %v842
  %v844 = vadd.f32 %v796, %v842
  %v845 = vadd.f32 %v797, %v842
  %v846 = vadd.f32 %v798, %v842
  %v847 = vadd.f32 %v799, %v842
  %v848 = vadd.f32 %v800, %v842
  %v849 = vadd.f32 %v801, %v842
  %v850 = vadd.f32 %v802, %v842
  %v851 = vadd.f32 %v803, %v842
  %v852 = vadd.f32 %v804, %v842
  %v853 = vadd.f32 %v805, %v842
  %v854 = vadd.f32 %v806, %v842
  %v855 = vadd.f32 %v807, %v842
  %v856 = vadd.f32 %v808, %v842
  %v857 = vadd.f32 %v809, %v842
  %v858 = vadd.f32 %v810, %v842
  %v859 = vadd.f32 %v811, %v842
  %v860 = vadd.f32 %v812, %v842
  %v861 = vadd.f32 %v813, %v842
  %v862 = vadd.f32 %v814, %v842
  %v863 = vadd.f32 %v815, %v842
  %v864 = vadd.f32 %v816, %v842
  %v865 = vadd.f32 %v817, %v842
  %v866 = vadd.f32 %v818, %v842
  %v867 = vadd.f32 %v819, %v842
  %v868 = vadd.f32 %v820, %v842
  %v869 = vadd.f32 %v821, %v842
  %v870 = vadd.f32 %v822, %v842
  %v871 = vadd.f32 %v823, %v842
  %v872 = vadd.f32 %v824, %v842
  %v873 = vadd.f32 %v825, %v842
  %v874 = vadd.f32 %v826, %v842
  %v875 = vadd.f32 %v827, %v842
  %v876 = vadd.f32 %v828, %v842
  %v877 = vadd.f32 %v829, %v842
  %v878 = vadd.f32 %v830, %v842
  %v879 = vadd.f32 %v831, %v842
  %v880 = vadd.f32 %v832, %v842
  %v881 = vadd.f32 %v833, %v842
  %v882 = vadd.f32 %v834, %v842
  %v883 = vadd.f32 %v835, %v842
  %v884 = vadd.f32 %v836, %v842
  %v885 = vadd.f32 %v837, %v842
  %v886 = vmul.f32 %v843, 0.2
  %v887 = vmul.f32 %v844, 0.2
  %v888 = vmul.f32 %v845, 0.2
  %v889 = vmul.f32 %v846, 0.2
  %v890 = vmul.f32 %v847, 0.2
  %v891 = vmul.f32 %v848, 0.2
  %v892 = vmul.f32 %v849, 0.2
  %v893 = vmul.f32 %v850, 0.2
  %v894 = vmul.f32 %v851, 0.2
  %v895 = vmul.f32 %v852, 0.2
  %v896 = vmul.f32 %v853, 0.2
  %v897 = vmul.f32 %v854, 0.2
  %v898 = vmul.f32 %v855, 0.2
  %v899 = vmul.f32 %v856, 0.2
  %v900 = vmul.f32 %v857, 0.2
  %v901 = vmul.f32 %v858, 0.2
  %v902 = vmul.f32 %v859, 0.2
  %v903 = vmul.f32 %v860, 0.2
  %v904 = vmul.f32 %v861, 0.2
  %v905 = vmul.f32 %v862, 0.2
  %v906 = vmul.f32 %v863, 0.2
  %v907 = vmul.f32 %v864, 0.2
  %v908 = vmul.f32 %v865, 0.2
  %v909 = vmul.f32 %v866, 0.2
  %v910 = vmul.f32 %v867, 0.2
  %v911 = vmul.f32 %v868, 0.2
  %v912 = vmul.f32 %v869, 0.2
  %v913 = vmul.f32 %v870, 0.2
  %v914 = vmul.f32 %v871, 0.2
  %v915 = vmul.f32 %v872, 0.2
  %v916 = vmul.f32 %v873, 0.2
  %v917 = vmul.f32 %v874, 0.2
  %v918 = vmul.f32 %v875, 0.2
  %v919 = vmul.f32 %v876, 0.2
  %v920 = vmul.f32 %v877, 0.2
  %v921 = vmul.f32 %v878, 0.2
  %v922 = vmul.f32 %v879, 0.2
  %v923 = vmul.f32 %v880, 0.2
  %v924 = vmul.f32 %v881, 0.2
  %v925 = vmul.f32 %v882, 0.2
  %v926 = vmul.f32 %v883, 0.2
  %v927 = vmul.f32 %v884, 0.2
  %v928 = vmul.f32 %v885, 0.2
  %v929 = vmax.f32 %v843, %v886
  %v930 = vmax.f32 %v844, %v887
  %v931 = vmax.f32 %v845, %v888
  %v932 = vmax.f32 %v846, %v889
  %v933 = vmax.f32 %v847, %v890
  %v934 = vmax.f32 %v848, %v891
  %v935 = vmax.f32 %v849, %v892
  %v936 = vmax.f32 %v850, %v893
  %v937 = vmax.f32 %v851, %v894
  %v938 = vmax.f32 %v852, %v895
  %v939 = vmax.f32 %v853, %v896
  %v940 = vmax.f32 %v854, %v897
  %v941 = vmax.f32 %v855, %v898
  %v942 = vmax.f32 %v856, %v899
  %v943 = vmax.f32 %v857, %v900
  %v944 = vmax.f32 %v858, %v901
  %v945 = vmax.f32 %v859, %v902
  %v946 = vmax.f32 %v860, %v903
  %v947 = vmax.f32 %v861, %v904
  %v948 = vmax.f32 %v862, %v905
  %v949 = vmax.f32 %v863, %v906
  %v950 = vmax.f32 %v864, %v907
  %v951 = vmax.f32 %v865, %v908
  %v952 = vmax.f32 %v866, %v909
  %v953 = vmax.f32 %v867, %v910
  %v954 = vmax.f32 %v868, %v911
  %v955 = vmax.f32 %v869, %v912
  %v956 = vmax.f32 %v870, %v913
  %v957 = vmax.f32 %v871, %v914
  %v958 = vmax.f32 %v872, %v915
  %v959 = vmax.f32 %v873, %v916
  %v960 = vmax.f32 %v874, %v917
  %v961 = vmax.f32 %v875, %v918
  %v962 = vmax.f32 %v876, %v919
  %v963 = vmax.f32 %v877, %v920
  %v964 = vmax.f32 %v878, %v921
  %v965 = vmax.f32 %v879, %v922
  %v966 = vmax.f32 %v880, %v923
  %v967 = vmax.f32 %v881, %v924
  %v968 = vmax.f32 %v882, %v925
  %v969 = vmax.f32 %v883, %v926
  %v970 = vmax.f32 %v884, %v927
  %v971 = vmax.f32 %v885, %v928
  %v972 = vpack.c.bf16 %v930, %v929
  %v973 = vpack.c.bf16 %v932, %v931
  %v974 = vpack.c.bf16 %v934, %v933
  %v975 = vpack.c.bf16 %v936, %v935
  %v976 = vpack.c.bf16 %v938, %v937
  %v977 = vpack.c.bf16 %v940, %v939
  %v978 = vpack.c.bf16 %v942, %v941
  %v979 = vpack.c.bf16 %v944, %v943
  %v980 = vpack.c.bf16 %v946, %v945
  %v981 = vpack.c.bf16 %v948, %v947
  %v982 = vpack.c.bf16 %v950, %v949
  %v983 = vpack.c.bf16 %v952, %v951
  %v984 = vpack.c.bf16 %v954, %v953
  %v985 = vpack.c.bf16 %v956, %v955
  %v986 = vpack.c.bf16 %v958, %v957
  %v987 = vpack.c.bf16 %v960, %v959
  %v988 = vpack.c.bf16 %v962, %v961
  %v989 = vpack.c.bf16 %v964, %v963
  %v990 = vpack.c.bf16 %v966, %v965
  %v991 = vpack.c.bf16 %v968, %v967
  %v992 = vpack.c.bf16 %v970, %v969
  %v993 = vpack.c.bf16 %v971, %v971
  %v994 = vld [vmem:[%s3] sm:$0xff]
  %v995 = vld [vmem:[%s3 + $0x8] sm:$0xf]
  %v996 = vld [vmem:[%s3 + $0xc] sm:$0xff]
  %v997 = vld [vmem:[%s3 + $0x14] sm:$0xf]
  %v998 = vld [vmem:[%s3 + $0x18] sm:$0xff]
  %v999 = vld [vmem:[%s3 + $0x20] sm:$0xf]
  %v1000 = vld [vmem:[%s3 + $0x24] sm:$0xff]
  %v1001 = vld [vmem:[%s3 + $0x2c] sm:$0xf]
  %v1002 = vld [vmem:[%s3 + $0x30] sm:$0xff]
  %v1003 = vld [vmem:[%s3 + $0x38] sm:$0xf]
  %v1004 = vld [vmem:[%s3 + $0x3c] sm:$0xff]
  %v1005 = vld [vmem:[%s3 + $0x44] sm:$0xf]
  %v1006 = vld [vmem:[%s3 + $0x48] sm:$0xff]
  %v1007 = vld [vmem:[%s3 + $0x50] sm:$0xf]
  %v1008 = vld [vmem:[%s3 + $0x54] sm:$0xff]
  %v1009 = vld [vmem:[%s3 + $0x5c] sm:$0xf]
  %v1010 = vld [vmem:[%s3 + $0x60] sm:$0xff]
  %v1011 = vld [vmem:[%s3 + $0x68] sm:$0xf]
  %v1012 = vld [vmem:[%s3 + $0x6c] sm:$0xff]
  %v1013 = vld [vmem:[%s3 + $0x74] sm:$0xf]
  %v1014 = vld [vmem:[%s3 + $0x78] sm:$0xff]
  %v1015 = vld [vmem:[%s3 + $0x80] sm:$0xf]
  %v1016 = vld [vmem:[%s3 + $0x84] sm:$0xff]
  %v1017 = vld [vmem:[%s3 + $0x8c] sm:$0xf]
  %v1018 = vld [vmem:[%s3 + $0x90] sm:$0xff]
  %v1019 = vld [vmem:[%s3 + $0x98] sm:$0xf]
  %v1020 = vld [vmem:[%s3 + $0x9c] sm:$0xff]
  %v1021 = vld [vmem:[%s3 + $0xa4] sm:$0xf]
  %v1022 = vld [vmem:[%s3 + $0xa8] sm:$0xff]
  %v1023 = vld [vmem:[%s3 + $0xb0] sm:$0xf]
  %v1024 = vld [vmem:[%s3 + $0xb4] sm:$0xff]
  %v1025 = vld [vmem:[%s3 + $0xbc] sm:$0xf]
  %v1026 = vld [vmem:[%s3 + $0xc0] sm:$0xff]
  %v1027 = vld [vmem:[%s3 + $0xc8] sm:$0xf]
  %v1028 = vld [vmem:[%s3 + $0xcc] sm:$0xff]
  %v1029 = vld [vmem:[%s3 + $0xd4] sm:$0xf]
  %v1030 = vld [vmem:[%s3 + $0xd8] sm:$0xff]
  %v1031 = vld [vmem:[%s3 + $0xe0] sm:$0xf]
  %v1032 = vld [vmem:[%s3 + $0xe4] sm:$0xff]
  %v1033 = vld [vmem:[%s3 + $0xec] sm:$0xf]
  %v1034 = vld [vmem:[%s3 + $0xf0] sm:$0xff]
  %v1035 = vld [vmem:[%s3 + $0xf8] sm:$0xf]
  %v1036 = vld [vmem:[%s3 + $0xfc] sm:$0xff]
  %v1037 = vld [vmem:[%s3 + $0x104] sm:$0xf]
  %v1038 = vld [vmem:[%s3 + $0x108] sm:$0xff]
  %v1039 = vld [vmem:[%s3 + $0x110] sm:$0xf]
  %v1040 = vld [vmem:[%s3 + $0x114] sm:$0xff]
  %v1041 = vld [vmem:[%s3 + $0x11c] sm:$0xf]
  %v1042 = vld [vmem:[%s3 + $0x120] sm:$0xff]
  %v1043 = vld [vmem:[%s3 + $0x128] sm:$0xf]
  %v1044 = vld [vmem:[%s3 + $0x12c] sm:$0xff]
  %v1045 = vld [vmem:[%s3 + $0x134] sm:$0xf]
  %v1046 = vld [vmem:[%s3 + $0x138] sm:$0xff]
  %v1047 = vld [vmem:[%s3 + $0x140] sm:$0xf]
  %v1048 = vld [vmem:[%s3 + $0x144] sm:$0xff]
  %v1049 = vld [vmem:[%s3 + $0x14c] sm:$0xf]
  %v1050 = vld [vmem:[%s3 + $0x150] sm:$0xff]
  %v1051 = vld [vmem:[%s3 + $0x158] sm:$0xf]
  %v1052 = vld [vmem:[%s3 + $0x15c] sm:$0xff]
  %v1053 = vld [vmem:[%s3 + $0x164] sm:$0xf]
  %v1054 = vld [vmem:[%s3 + $0x168] sm:$0xff]
  %v1055 = vld [vmem:[%s3 + $0x170] sm:$0xf]
  %v1056 = vld [vmem:[%s3 + $0x174] sm:$0xff]
  %v1057 = vld [vmem:[%s3 + $0x17c] sm:$0xf]
  %v1058 = vld [vmem:[%s3 + $0x180] sm:$0xff]
  %v1059 = vld [vmem:[%s3 + $0x188] sm:$0xf]
  %v1060 = vld [vmem:[%s3 + $0x18c] sm:$0xff]
  %v1061 = vld [vmem:[%s3 + $0x194] sm:$0xf]
  %v1062 = vld [vmem:[%s3 + $0x198] sm:$0xff]
  %v1063 = vld [vmem:[%s3 + $0x1a0] sm:$0xf]
  %v1064 = vld [vmem:[%s3 + $0x1a4] sm:$0xff]
  %v1065 = vld [vmem:[%s3 + $0x1ac] sm:$0xf]
  %v1066 = vld [vmem:[%s3 + $0x1b0] sm:$0xff]
  %v1067 = vld [vmem:[%s3 + $0x1b8] sm:$0xf]
  %v1068 = vld [vmem:[%s3 + $0x1bc] sm:$0xff]
  %v1069 = vld [vmem:[%s3 + $0x1c4] sm:$0xf]
  %v1070 = vld [vmem:[%s3 + $0x1c8] sm:$0xff]
  %v1071 = vld [vmem:[%s3 + $0x1d0] sm:$0xf]
  %v1072 = vld [vmem:[%s3 + $0x1d4] sm:$0xff]
  %v1073 = vld [vmem:[%s3 + $0x1dc] sm:$0xf]
  %v1074 = vld [vmem:[%s3 + $0x1e0] sm:$0xff]
  %v1075 = vld [vmem:[%s3 + $0x1e8] sm:$0xf]
  %v1076 = vld [vmem:[%s3 + $0x1ec] sm:$0xff]
  %v1077 = vld [vmem:[%s3 + $0x1f4] sm:$0xf]
  %v1078 = vld [vmem:[%s3 + $0x1f8] sm:$0xff]
  %v1079 = vld [vmem:[%s3 + $0x200] sm:$0xf]
  %v1080 = vld [vmem:[%s3 + $0x204] sm:$0xff]
  %v1081 = vld [vmem:[%s3 + $0x20c] sm:$0xf]
  %v1082 = vld [vmem:[%s3 + $0x210] sm:$0xff]
  %v1083 = vld [vmem:[%s3 + $0x218] sm:$0xf]
  %v1084 = vld [vmem:[%s3 + $0x21c] sm:$0xff]
  %v1085 = vld [vmem:[%s3 + $0x224] sm:$0xf]
  %v1086 = vld [vmem:[%s3 + $0x228] sm:$0xff]
  %v1087 = vld [vmem:[%s3 + $0x230] sm:$0xf]
  %v1088 = vld [vmem:[%s3 + $0x234] sm:$0xff]
  %v1089 = vld [vmem:[%s3 + $0x23c] sm:$0xf]
  %v1090 = vld [vmem:[%s3 + $0x240] sm:$0xff]
  %v1091 = vld [vmem:[%s3 + $0x248] sm:$0xf]
  %v1092 = vld [vmem:[%s3 + $0x24c] sm:$0xff]
  %v1093 = vld [vmem:[%s3 + $0x254] sm:$0xf]
  %v1094 = vld [vmem:[%s3 + $0x258] sm:$0xff]
  %v1095 = vld [vmem:[%s3 + $0x260] sm:$0xf]
  %v1096 = vld [vmem:[%s3 + $0x264] sm:$0xff]
  %v1097 = vld [vmem:[%s3 + $0x26c] sm:$0xf]
  %v1098 = vld [vmem:[%s3 + $0x270] sm:$0xff]
  %v1099 = vld [vmem:[%s3 + $0x278] sm:$0xf]
  %v1100 = vld [vmem:[%s3 + $0x27c] sm:$0xff]
  %v1101 = vld [vmem:[%s3 + $0x284] sm:$0xf]
  %v1102 = vld [vmem:[%s3 + $0x288] sm:$0xff]
  %v1103 = vld [vmem:[%s3 + $0x290] sm:$0xf]
  %v1104 = vld [vmem:[%s3 + $0x294] sm:$0xff]
  %v1105 = vld [vmem:[%s3 + $0x29c] sm:$0xf]
  %v1106 = vld [vmem:[%s3 + $0x2a0] sm:$0xff]
  %v1107 = vld [vmem:[%s3 + $0x2a8] sm:$0xf]
  %v1108 = vld [vmem:[%s3 + $0x2ac] sm:$0xff]
  %v1109 = vld [vmem:[%s3 + $0x2b4] sm:$0xf]
  %v1110 = vld [vmem:[%s3 + $0x2b8] sm:$0xff]
  %v1111 = vld [vmem:[%s3 + $0x2c0] sm:$0xf]
  %v1112 = vld [vmem:[%s3 + $0x2c4] sm:$0xff]
  %v1113 = vld [vmem:[%s3 + $0x2cc] sm:$0xf]
  %v1114 = vld [vmem:[%s3 + $0x2d0] sm:$0xff]
  %v1115 = vld [vmem:[%s3 + $0x2d8] sm:$0xf]
  %v1116 = vld [vmem:[%s3 + $0x2dc] sm:$0xff]
  %v1117 = vld [vmem:[%s3 + $0x2e4] sm:$0xf]
  %v1118 = vld [vmem:[%s3 + $0x2e8] sm:$0xff]
  %v1119 = vld [vmem:[%s3 + $0x2f0] sm:$0xf]
  %v1120 = vld [vmem:[%s3 + $0x2f4] sm:$0xff]
  %v1121 = vld [vmem:[%s3 + $0x2fc] sm:$0xf]
  %v1122 = vld [vmem:[%s3 + $0x300] sm:$0xff]
  %v1123 = vld [vmem:[%s3 + $0x308] sm:$0xf]
  %v1124 = vld [vmem:[%s3 + $0x30c] sm:$0xff]
  %v1125 = vld [vmem:[%s3 + $0x314] sm:$0xf]
  %v1126 = vld [vmem:[%s3 + $0x318] sm:$0xff]
  %v1127 = vld [vmem:[%s3 + $0x320] sm:$0xf]
  %v1128 = vld [vmem:[%s3 + $0x324] sm:$0xff]
  %v1129 = vld [vmem:[%s3 + $0x32c] sm:$0xf]
  %v1130 = vld [vmem:[%s3 + $0x330] sm:$0xff]
  %v1131 = vld [vmem:[%s3 + $0x338] sm:$0xf]
  %v1132 = vld [vmem:[%s3 + $0x33c] sm:$0xff]
  %v1133 = vld [vmem:[%s3 + $0x344] sm:$0xf]
  %v1134 = vld [vmem:[%s3 + $0x348] sm:$0xff]
  %v1135 = vld [vmem:[%s3 + $0x350] sm:$0xf]
  %v1136 = vld [vmem:[%s3 + $0x354] sm:$0xff]
  %v1137 = vld [vmem:[%s3 + $0x35c] sm:$0xf]
  %v1138 = vld [vmem:[%s3 + $0x360] sm:$0xff]
  %v1139 = vld [vmem:[%s3 + $0x368] sm:$0xf]
  %v1140 = vld [vmem:[%s3 + $0x36c] sm:$0xff]
  %v1141 = vld [vmem:[%s3 + $0x374] sm:$0xf]
  %v1142 = vld [vmem:[%s3 + $0x378] sm:$0xff]
  %v1143 = vld [vmem:[%s3 + $0x380] sm:$0xf]
  %v1144 = vld [vmem:[%s3 + $0x384] sm:$0xff]
  %v1145 = vld [vmem:[%s3 + $0x38c] sm:$0xf]
  %v1146 = vld [vmem:[%s3 + $0x390] sm:$0xff]
  %v1147 = vld [vmem:[%s3 + $0x398] sm:$0xf]
  %v1148 = vld [vmem:[%s3 + $0x39c] sm:$0xff]
  %v1149 = vld [vmem:[%s3 + $0x3a4] sm:$0xf]
  %v1150 = vld [vmem:[%s3 + $0x3a8] sm:$0xff]
  %v1151 = vld [vmem:[%s3 + $0x3b0] sm:$0xf]
  %v1152 = vld [vmem:[%s3 + $0x3b4] sm:$0xff]
  %v1153 = vld [vmem:[%s3 + $0x3bc] sm:$0xf]
  %v1154 = vld [vmem:[%s3 + $0x3c0] sm:$0xff]
  %v1155 = vld [vmem:[%s3 + $0x3c8] sm:$0xf]
  %v1156 = vld [vmem:[%s3 + $0x3cc] sm:$0xff]
  %v1157 = vld [vmem:[%s3 + $0x3d4] sm:$0xf]
  %v1158 = vld [vmem:[%s3 + $0x3d8] sm:$0xff]
  %v1159 = vld [vmem:[%s3 + $0x3e0] sm:$0xf]
  %v1160 = vld [vmem:[%s3 + $0x3e4] sm:$0xff]
  %v1161 = vld [vmem:[%s3 + $0x3ec] sm:$0xf]
  %v1162 = vld [vmem:[%s3 + $0x3f0] sm:$0xff]
  %v1163 = vld [vmem:[%s3 + $0x3f8] sm:$0xf]
  %v1164 = vld [vmem:[%s3 + $0x3fc] sm:$0xff]
  %v1165 = vld [vmem:[%s3 + $0x404] sm:$0xf]
  %v1166 = vld [vmem:[%s3 + $0x408] sm:$0xff]
  %v1167 = vld [vmem:[%s3 + $0x410] sm:$0xf]
  %v1168 = vld [vmem:[%s3 + $0x414] sm:$0xff]
  %v1169 = vld [vmem:[%s3 + $0x41c] sm:$0xf]
  %v1170 = vld [vmem:[%s3 + $0x420] sm:$0xff]
  %v1171 = vld [vmem:[%s3 + $0x428] sm:$0xf]
  %v1172 = vld [vmem:[%s3 + $0x42c] sm:$0xff]
  %v1173 = vld [vmem:[%s3 + $0x434] sm:$0xf]
  %v1174 = vld [vmem:[%s3 + $0x438] sm:$0xff]
  %v1175 = vld [vmem:[%s3 + $0x440] sm:$0xf]
  %v1176 = vld [vmem:[%s3 + $0x444] sm:$0xff]
  %v1177 = vld [vmem:[%s3 + $0x44c] sm:$0xf]
  %v1178 = vld [vmem:[%s3 + $0x450] sm:$0xff]
  %v1179 = vld [vmem:[%s3 + $0x458] sm:$0xf]
  %v1180 = vld [vmem:[%s3 + $0x45c] sm:$0xff]
  %v1181 = vld [vmem:[%s3 + $0x464] sm:$0xf]
  %v1182 = vld [vmem:[%s3 + $0x468] sm:$0xff]
  %v1183 = vld [vmem:[%s3 + $0x470] sm:$0xf]
  %v1184 = vld [vmem:[%s3 + $0x474] sm:$0xff]
  %v1185 = vld [vmem:[%s3 + $0x47c] sm:$0xf]
  %v1186 = vld [vmem:[%s3 + $0x480] sm:$0xff]
  %v1187 = vld [vmem:[%s3 + $0x488] sm:$0xf]
  %v1188 = vld [vmem:[%s3 + $0x48c] sm:$0xff]
  %v1189 = vld [vmem:[%s3 + $0x494] sm:$0xf]
  %v1190 = vld [vmem:[%s3 + $0x498] sm:$0xff]
  %v1191 = vld [vmem:[%s3 + $0x4a0] sm:$0xf]
  %v1192 = vld [vmem:[%s3 + $0x4a4] sm:$0xff]
  %v1193 = vld [vmem:[%s3 + $0x4ac] sm:$0xf]
  %v1394 = vunpack.c.l.b16 %v994
  %v1395 = vunpack.c.h.b16 %v994
  %v1396 = vunpack.c.l.b16 %v995
  %v1397 = vunpack.c.l.b16 %v996
  %v1398 = vunpack.c.h.b16 %v996
  %v1399 = vunpack.c.l.b16 %v997
  %v1400 = vunpack.c.l.b16 %v998
  %v1401 = vunpack.c.h.b16 %v998
  %v1402 = vunpack.c.l.b16 %v999
  %v1403 = vunpack.c.l.b16 %v1000
  %v1404 = vunpack.c.h.b16 %v1000
  %v1405 = vunpack.c.l.b16 %v1001
  %v1406 = vunpack.c.l.b16 %v1002
  %v1407 = vunpack.c.h.b16 %v1002
  %v1408 = vunpack.c.l.b16 %v1003
  %v1409 = vunpack.c.l.b16 %v1004
  %v1410 = vunpack.c.h.b16 %v1004
  %v1411 = vunpack.c.l.b16 %v1005
  %v1412 = vunpack.c.l.b16 %v1006
  %v1413 = vunpack.c.h.b16 %v1006
  %v1414 = vunpack.c.l.b16 %v1007
  %v1415 = vunpack.c.l.b16 %v1008
  %v1416 = vunpack.c.h.b16 %v1008
  %v1417 = vunpack.c.l.b16 %v1009
  %v1418 = vunpack.c.l.b16 %v1010
  %v1419 = vunpack.c.h.b16 %v1010
  %v1420 = vunpack.c.l.b16 %v1011
  %v1421 = vunpack.c.l.b16 %v1012
  %v1422 = vunpack.c.h.b16 %v1012
  %v1423 = vunpack.c.l.b16 %v1013
  %v1424 = vunpack.c.l.b16 %v1014
  %v1425 = vunpack.c.h.b16 %v1014
  %v1426 = vunpack.c.l.b16 %v1015
  %v1427 = vunpack.c.l.b16 %v1016
  %v1428 = vunpack.c.h.b16 %v1016
  %v1429 = vunpack.c.l.b16 %v1017
  %v1430 = vunpack.c.l.b16 %v1018
  %v1431 = vunpack.c.h.b16 %v1018
  %v1432 = vunpack.c.l.b16 %v1019
  %v1433 = vunpack.c.l.b16 %v1020
  %v1434 = vunpack.c.h.b16 %v1020
  %v1435 = vunpack.c.l.b16 %v1021
  %v1436 = vunpack.c.l.b16 %v1022
  %v1437 = vunpack.c.h.b16 %v1022
  %v1438 = vunpack.c.l.b16 %v1023
  %v1439 = vunpack.c.l.b16 %v1024
  %v1440 = vunpack.c.h.b16 %v1024
  %v1441 = vunpack.c.l.b16 %v1025
  %v1442 = vunpack.c.l.b16 %v1026
  %v1443 = vunpack.c.h.b16 %v1026
  %v1444 = vunpack.c.l.b16 %v1027
  %v1445 = vunpack.c.l.b16 %v1028
  %v1446 = vunpack.c.h.b16 %v1028
  %v1447 = vunpack.c.l.b16 %v1029
  %v1448 = vunpack.c.l.b16 %v1030
  %v1449 = vunpack.c.h.b16 %v1030
  %v1450 = vunpack.c.l.b16 %v1031
  %v1451 = vunpack.c.l.b16 %v1032
  %v1452 = vunpack.c.h.b16 %v1032
  %v1453 = vunpack.c.l.b16 %v1033
  %v1454 = vunpack.c.l.b16 %v1034
  %v1455 = vunpack.c.h.b16 %v1034
  %v1456 = vunpack.c.l.b16 %v1035
  %v1457 = vunpack.c.l.b16 %v1036
  %v1458 = vunpack.c.h.b16 %v1036
  %v1459 = vunpack.c.l.b16 %v1037
  %v1460 = vunpack.c.l.b16 %v1038
  %v1461 = vunpack.c.h.b16 %v1038
  %v1462 = vunpack.c.l.b16 %v1039
  %v1463 = vunpack.c.l.b16 %v1040
  %v1464 = vunpack.c.h.b16 %v1040
  %v1465 = vunpack.c.l.b16 %v1041
  %v1466 = vunpack.c.l.b16 %v1042
  %v1467 = vunpack.c.h.b16 %v1042
  %v1468 = vunpack.c.l.b16 %v1043
  %v1469 = vunpack.c.l.b16 %v1044
  %v1470 = vunpack.c.h.b16 %v1044
  %v1471 = vunpack.c.l.b16 %v1045
  %v1472 = vunpack.c.l.b16 %v1046
  %v1473 = vunpack.c.h.b16 %v1046
  %v1474 = vunpack.c.l.b16 %v1047
  %v1475 = vunpack.c.l.b16 %v1048
  %v1476 = vunpack.c.h.b16 %v1048
  %v1477 = vunpack.c.l.b16 %v1049
  %v1478 = vunpack.c.l.b16 %v1050
  %v1479 = vunpack.c.h.b16 %v1050
  %v1480 = vunpack.c.l.b16 %v1051
  %v1481 = vunpack.c.l.b16 %v1052
  %v1482 = vunpack.c.h.b16 %v1052
  %v1483 = vunpack.c.l.b16 %v1053
  %v1484 = vunpack.c.l.b16 %v1054
  %v1485 = vunpack.c.h.b16 %v1054
  %v1486 = vunpack.c.l.b16 %v1055
  %v1487 = vunpack.c.l.b16 %v1056
  %v1488 = vunpack.c.h.b16 %v1056
  %v1489 = vunpack.c.l.b16 %v1057
  %v1490 = vunpack.c.l.b16 %v1058
  %v1491 = vunpack.c.h.b16 %v1058
  %v1492 = vunpack.c.l.b16 %v1059
  %v1493 = vunpack.c.l.b16 %v1060
  %v1494 = vunpack.c.h.b16 %v1060
  %v1495 = vunpack.c.l.b16 %v1061
  %v1496 = vunpack.c.l.b16 %v1062
  %v1497 = vunpack.c.h.b16 %v1062
  %v1498 = vunpack.c.l.b16 %v1063
  %v1499 = vunpack.c.l.b16 %v1064
  %v1500 = vunpack.c.h.b16 %v1064
  %v1501 = vunpack.c.l.b16 %v1065
  %v1502 = vunpack.c.l.b16 %v1066
  %v1503 = vunpack.c.h.b16 %v1066
  %v1504 = vunpack.c.l.b16 %v1067
  %v1505 = vunpack.c.l.b16 %v1068
  %v1506 = vunpack.c.h.b16 %v1068
  %v1507 = vunpack.c.l.b16 %v1069
  %v1508 = vunpack.c.l.b16 %v1070
  %v1509 = vunpack.c.h.b16 %v1070
  %v1510 = vunpack.c.l.b16 %v1071
  %v1511 = vunpack.c.l.b16 %v1072
  %v1512 = vunpack.c.h.b16 %v1072
  %v1513 = vunpack.c.l.b16 %v1073
  %v1514 = vunpack.c.l.b16 %v1074
  %v1515 = vunpack.c.h.b16 %v1074
  %v1516 = vunpack.c.l.b16 %v1075
  %v1517 = vunpack.c.l.b16 %v1076
  %v1518 = vunpack.c.h.b16 %v1076
  %v1519 = vunpack.c.l.b16 %v1077
  %v1520 = vunpack.c.l.b16 %v1078
  %v1521 = vunpack.c.h.b16 %v1078
  %v1522 = vunpack.c.l.b16 %v1079
  %v1523 = vunpack.c.l.b16 %v1080
  %v1524 = vunpack.c.h.b16 %v1080
  %v1525 = vunpack.c.l.b16 %v1081
  %v1526 = vunpack.c.l.b16 %v1082
  %v1527 = vunpack.c.h.b16 %v1082
  %v1528 = vunpack.c.l.b16 %v1083
  %v1529 = vunpack.c.l.b16 %v1084
  %v1530 = vunpack.c.h.b16 %v1084
  %v1531 = vunpack.c.l.b16 %v1085
  %v1532 = vunpack.c.l.b16 %v1086
  %v1533 = vunpack.c.h.b16 %v1086
  %v1534 = vunpack.c.l.b16 %v1087
  %v1535 = vunpack.c.l.b16 %v1088
  %v1536 = vunpack.c.h.b16 %v1088
  %v1537 = vunpack.c.l.b16 %v1089
  %v1538 = vunpack.c.l.b16 %v1090
  %v1539 = vunpack.c.h.b16 %v1090
  %v1540 = vunpack.c.l.b16 %v1091
  %v1541 = vunpack.c.l.b16 %v1092
  %v1542 = vunpack.c.h.b16 %v1092
  %v1543 = vunpack.c.l.b16 %v1093
  %v1544 = vunpack.c.l.b16 %v1094
  %v1545 = vunpack.c.h.b16 %v1094
  %v1546 = vunpack.c.l.b16 %v1095
  %v1547 = vunpack.c.l.b16 %v1096
  %v1548 = vunpack.c.h.b16 %v1096
  %v1549 = vunpack.c.l.b16 %v1097
  %v1550 = vunpack.c.l.b16 %v1098
  %v1551 = vunpack.c.h.b16 %v1098
  %v1552 = vunpack.c.l.b16 %v1099
  %v1553 = vunpack.c.l.b16 %v1100
  %v1554 = vunpack.c.h.b16 %v1100
  %v1555 = vunpack.c.l.b16 %v1101
  %v1556 = vunpack.c.l.b16 %v1102
  %v1557 = vunpack.c.h.b16 %v1102
  %v1558 = vunpack.c.l.b16 %v1103
  %v1559 = vunpack.c.l.b16 %v1104
  %v1560 = vunpack.c.h.b16 %v1104
  %v1561 = vunpack.c.l.b16 %v1105
  %v1562 = vunpack.c.l.b16 %v1106
  %v1563 = vunpack.c.h.b16 %v1106
  %v1564 = vunpack.c.l.b16 %v1107
  %v1565 = vunpack.c.l.b16 %v1108
  %v1566 = vunpack.c.h.b16 %v1108
  %v1567 = vunpack.c.l.b16 %v1109
  %v1568 = vunpack.c.l.b16 %v1110
  %v1569 = vunpack.c.h.b16 %v1110
  %v1570 = vunpack.c.l.b16 %v1111
  %v1571 = vunpack.c.l.b16 %v1112
  %v1572 = vunpack.c.h.b16 %v1112
  %v1573 = vunpack.c.l.b16 %v1113
  %v1574 = vunpack.c.l.b16 %v1114
  %v1575 = vunpack.c.h.b16 %v1114
  %v1576 = vunpack.c.l.b16 %v1115
  %v1577 = vunpack.c.l.b16 %v1116
  %v1578 = vunpack.c.h.b16 %v1116
  %v1579 = vunpack.c.l.b16 %v1117
  %v1580 = vunpack.c.l.b16 %v1118
  %v1581 = vunpack.c.h.b16 %v1118
  %v1582 = vunpack.c.l.b16 %v1119
  %v1583 = vunpack.c.l.b16 %v1120
  %v1584 = vunpack.c.h.b16 %v1120
  %v1585 = vunpack.c.l.b16 %v1121
  %v1586 = vunpack.c.l.b16 %v1122
  %v1587 = vunpack.c.h.b16 %v1122
  %v1588 = vunpack.c.l.b16 %v1123
  %v1589 = vunpack.c.l.b16 %v1124
  %v1590 = vunpack.c.h.b16 %v1124
  %v1591 = vunpack.c.l.b16 %v1125
  %v1592 = vunpack.c.l.b16 %v1126
  %v1593 = vunpack.c.h.b16 %v1126
  %v1594 = vunpack.c.l.b16 %v1127
  %v1595 = vunpack.c.l.b16 %v1128
  %v1596 = vunpack.c.h.b16 %v1128
  %v1597 = vunpack.c.l.b16 %v1129
  %v1598 = vunpack.c.l.b16 %v1130
  %v1599 = vunpack.c.h.b16 %v1130
  %v1600 = vunpack.c.l.b16 %v1131
  %v1601 = vunpack.c.l.b16 %v1132
  %v1602 = vunpack.c.h.b16 %v1132
  %v1603 = vunpack.c.l.b16 %v1133
  %v1604 = vunpack.c.l.b16 %v1134
  %v1605 = vunpack.c.h.b16 %v1134
  %v1606 = vunpack.c.l.b16 %v1135
  %v1607 = vunpack.c.l.b16 %v1136
  %v1608 = vunpack.c.h.b16 %v1136
  %v1609 = vunpack.c.l.b16 %v1137
  %v1610 = vunpack.c.l.b16 %v1138
  %v1611 = vunpack.c.h.b16 %v1138
  %v1612 = vunpack.c.l.b16 %v1139
  %v1613 = vunpack.c.l.b16 %v1140
  %v1614 = vunpack.c.h.b16 %v1140
  %v1615 = vunpack.c.l.b16 %v1141
  %v1616 = vunpack.c.l.b16 %v1142
  %v1617 = vunpack.c.h.b16 %v1142
  %v1618 = vunpack.c.l.b16 %v1143
  %v1619 = vunpack.c.l.b16 %v1144
  %v1620 = vunpack.c.h.b16 %v1144
  %v1621 = vunpack.c.l.b16 %v1145
  %v1622 = vunpack.c.l.b16 %v1146
  %v1623 = vunpack.c.h.b16 %v1146
  %v1624 = vunpack.c.l.b16 %v1147
  %v1625 = vunpack.c.l.b16 %v1148
  %v1626 = vunpack.c.h.b16 %v1148
  %v1627 = vunpack.c.l.b16 %v1149
  %v1628 = vunpack.c.l.b16 %v1150
  %v1629 = vunpack.c.h.b16 %v1150
  %v1630 = vunpack.c.l.b16 %v1151
  %v1631 = vunpack.c.l.b16 %v1152
  %v1632 = vunpack.c.h.b16 %v1152
  %v1633 = vunpack.c.l.b16 %v1153
  %v1634 = vunpack.c.l.b16 %v1154
  %v1635 = vunpack.c.h.b16 %v1154
  %v1636 = vunpack.c.l.b16 %v1155
  %v1637 = vunpack.c.l.b16 %v1156
  %v1638 = vunpack.c.h.b16 %v1156
  %v1639 = vunpack.c.l.b16 %v1157
  %v1640 = vunpack.c.l.b16 %v1158
  %v1641 = vunpack.c.h.b16 %v1158
  %v1642 = vunpack.c.l.b16 %v1159
  %v1643 = vunpack.c.l.b16 %v1160
  %v1644 = vunpack.c.h.b16 %v1160
  %v1645 = vunpack.c.l.b16 %v1161
  %v1646 = vunpack.c.l.b16 %v1162
  %v1647 = vunpack.c.h.b16 %v1162
  %v1648 = vunpack.c.l.b16 %v1163
  %v1649 = vunpack.c.l.b16 %v1164
  %v1650 = vunpack.c.h.b16 %v1164
  %v1651 = vunpack.c.l.b16 %v1165
  %v1652 = vunpack.c.l.b16 %v1166
  %v1653 = vunpack.c.h.b16 %v1166
  %v1654 = vunpack.c.l.b16 %v1167
  %v1655 = vunpack.c.l.b16 %v1168
  %v1656 = vunpack.c.h.b16 %v1168
  %v1657 = vunpack.c.l.b16 %v1169
  %v1658 = vunpack.c.l.b16 %v1170
  %v1659 = vunpack.c.h.b16 %v1170
  %v1660 = vunpack.c.l.b16 %v1171
  %v1661 = vunpack.c.l.b16 %v1172
  %v1662 = vunpack.c.h.b16 %v1172
  %v1663 = vunpack.c.l.b16 %v1173
  %v1664 = vunpack.c.l.b16 %v1174
  %v1665 = vunpack.c.h.b16 %v1174
  %v1666 = vunpack.c.l.b16 %v1175
  %v1667 = vunpack.c.l.b16 %v1176
  %v1668 = vunpack.c.h.b16 %v1176
  %v1669 = vunpack.c.l.b16 %v1177
  %v1670 = vunpack.c.l.b16 %v1178
  %v1671 = vunpack.c.h.b16 %v1178
  %v1672 = vunpack.c.l.b16 %v1179
  %v1673 = vunpack.c.l.b16 %v1180
  %v1674 = vunpack.c.h.b16 %v1180
  %v1675 = vunpack.c.l.b16 %v1181
  %v1676 = vunpack.c.l.b16 %v1182
  %v1677 = vunpack.c.h.b16 %v1182
  %v1678 = vunpack.c.l.b16 %v1183
  %v1679 = vunpack.c.l.b16 %v1184
  %v1680 = vunpack.c.h.b16 %v1184
  %v1681 = vunpack.c.l.b16 %v1185
  %v1682 = vunpack.c.l.b16 %v1186
  %v1683 = vunpack.c.h.b16 %v1186
  %v1684 = vunpack.c.l.b16 %v1187
  %v1685 = vunpack.c.l.b16 %v1188
  %v1686 = vunpack.c.h.b16 %v1188
  %v1687 = vunpack.c.l.b16 %v1189
  %v1688 = vunpack.c.l.b16 %v1190
  %v1689 = vunpack.c.h.b16 %v1190
  %v1690 = vunpack.c.l.b16 %v1191
  %v1691 = vunpack.c.l.b16 %v1192
  %v1692 = vunpack.c.h.b16 %v1192
  %v1693 = vunpack.c.l.b16 %v1193
  %v1694 = vpack.c.b16 %v1397, %v1394
  %v1695 = vpack.c.b16 %v1398, %v1395
  %v1696 = vpack.c.b16 %v1399, %v1396
  %v1697 = vpack.c.b16 %v1403, %v1400
  %v1698 = vpack.c.b16 %v1404, %v1401
  %v1699 = vpack.c.b16 %v1405, %v1402
  %v1700 = vpack.c.b16 %v1409, %v1406
  %v1701 = vpack.c.b16 %v1410, %v1407
  %v1702 = vpack.c.b16 %v1411, %v1408
  %v1703 = vpack.c.b16 %v1415, %v1412
  %v1704 = vpack.c.b16 %v1416, %v1413
  %v1705 = vpack.c.b16 %v1417, %v1414
  %v1706 = vpack.c.b16 %v1421, %v1418
  %v1707 = vpack.c.b16 %v1422, %v1419
  %v1708 = vpack.c.b16 %v1423, %v1420
  %v1709 = vpack.c.b16 %v1427, %v1424
  %v1710 = vpack.c.b16 %v1428, %v1425
  %v1711 = vpack.c.b16 %v1429, %v1426
  %v1712 = vpack.c.b16 %v1433, %v1430
  %v1713 = vpack.c.b16 %v1434, %v1431
  %v1714 = vpack.c.b16 %v1435, %v1432
  %v1715 = vpack.c.b16 %v1439, %v1436
  %v1716 = vpack.c.b16 %v1440, %v1437
  %v1717 = vpack.c.b16 %v1441, %v1438
  %v1718 = vpack.c.b16 %v1445, %v1442
  %v1719 = vpack.c.b16 %v1446, %v1443
  %v1720 = vpack.c.b16 %v1447, %v1444
  %v1721 = vpack.c.b16 %v1451, %v1448
  %v1722 = vpack.c.b16 %v1452, %v1449
  %v1723 = vpack.c.b16 %v1453, %v1450
  %v1724 = vpack.c.b16 %v1457, %v1454
  %v1725 = vpack.c.b16 %v1458, %v1455
  %v1726 = vpack.c.b16 %v1459, %v1456
  %v1727 = vpack.c.b16 %v1463, %v1460
  %v1728 = vpack.c.b16 %v1464, %v1461
  %v1729 = vpack.c.b16 %v1465, %v1462
  %v1730 = vpack.c.b16 %v1469, %v1466
  %v1731 = vpack.c.b16 %v1470, %v1467
  %v1732 = vpack.c.b16 %v1471, %v1468
  %v1733 = vpack.c.b16 %v1475, %v1472
  %v1734 = vpack.c.b16 %v1476, %v1473
  %v1735 = vpack.c.b16 %v1477, %v1474
  %v1736 = vpack.c.b16 %v1481, %v1478
  %v1737 = vpack.c.b16 %v1482, %v1479
  %v1738 = vpack.c.b16 %v1483, %v1480
  %v1739 = vpack.c.b16 %v1487, %v1484
  %v1740 = vpack.c.b16 %v1488, %v1485
  %v1741 = vpack.c.b16 %v1489, %v1486
  %v1742 = vpack.c.b16 %v1493, %v1490
  %v1743 = vpack.c.b16 %v1494, %v1491
  %v1744 = vpack.c.b16 %v1495, %v1492
  %v1745 = vpack.c.b16 %v1499, %v1496
  %v1746 = vpack.c.b16 %v1500, %v1497
  %v1747 = vpack.c.b16 %v1501, %v1498
  %v1748 = vpack.c.b16 %v1505, %v1502
  %v1749 = vpack.c.b16 %v1506, %v1503
  %v1750 = vpack.c.b16 %v1507, %v1504
  %v1751 = vpack.c.b16 %v1511, %v1508
  %v1752 = vpack.c.b16 %v1512, %v1509
  %v1753 = vpack.c.b16 %v1513, %v1510
  %v1754 = vpack.c.b16 %v1517, %v1514
  %v1755 = vpack.c.b16 %v1518, %v1515
  %v1756 = vpack.c.b16 %v1519, %v1516
  %v1757 = vpack.c.b16 %v1523, %v1520
  %v1758 = vpack.c.b16 %v1524, %v1521
  %v1759 = vpack.c.b16 %v1525, %v1522
  %v1760 = vpack.c.b16 %v1529, %v1526
  %v1761 = vpack.c.b16 %v1530, %v1527
  %v1762 = vpack.c.b16 %v1531, %v1528
  %v1763 = vpack.c.b16 %v1535, %v1532
  %v1764 = vpack.c.b16 %v1536, %v1533
  %v1765 = vpack.c.b16 %v1537, %v1534
  %v1766 = vpack.c.b16 %v1541, %v1538
  %v1767 = vpack.c.b16 %v1542, %v1539
  %v1768 = vpack.c.b16 %v1543, %v1540
  %v1769 = vpack.c.b16 %v1547, %v1544
  %v1770 = vpack.c.b16 %v1548, %v1545
  %v1771 = vpack.c.b16 %v1549, %v1546
  %v1772 = vpack.c.b16 %v1553, %v1550
  %v1773 = vpack.c.b16 %v1554, %v1551
  %v1774 = vpack.c.b16 %v1555, %v1552
  %v1775 = vpack.c.b16 %v1559, %v1556
  %v1776 = vpack.c.b16 %v1560, %v1557
  %v1777 = vpack.c.b16 %v1561, %v1558
  %v1778 = vpack.c.b16 %v1565, %v1562
  %v1779 = vpack.c.b16 %v1566, %v1563
  %v1780 = vpack.c.b16 %v1567, %v1564
  %v1781 = vpack.c.b16 %v1571, %v1568
  %v1782 = vpack.c.b16 %v1572, %v1569
  %v1783 = vpack.c.b16 %v1573, %v1570
  %v1784 = vpack.c.b16 %v1577, %v1574
  %v1785 = vpack.c.b16 %v1578, %v1575
  %v1786 = vpack.c.b16 %v1579, %v1576
  %v1787 = vpack.c.b16 %v1583, %v1580
  %v1788 = vpack.c.b16 %v1584, %v1581
  %v1789 = vpack.c.b16 %v1585, %v1582
  %v1790 = vpack.c.b16 %v1589, %v1586
  %v1791 = vpack.c.b16 %v1590, %v1587
  %v1792 = vpack.c.b16 %v1591, %v1588
  %v1793 = vpack.c.b16 %v1595, %v1592
  %v1794 = vpack.c.b16 %v1596, %v1593
  %v1795 = vpack.c.b16 %v1597, %v1594
  %v1796 = vpack.c.b16 %v1601, %v1598
  %v1797 = vpack.c.b16 %v1602, %v1599
  %v1798 = vpack.c.b16 %v1603, %v1600
  %v1799 = vpack.c.b16 %v1607, %v1604
  %v1800 = vpack.c.b16 %v1608, %v1605
  %v1801 = vpack.c.b16 %v1609, %v1606
  %v1802 = vpack.c.b16 %v1613, %v1610
  %v1803 = vpack.c.b16 %v1614, %v1611
  %v1804 = vpack.c.b16 %v1615, %v1612
  %v1805 = vpack.c.b16 %v1619, %v1616
  %v1806 = vpack.c.b16 %v1620, %v1617
  %v1807 = vpack.c.b16 %v1621, %v1618
  %v1808 = vpack.c.b16 %v1625, %v1622
  %v1809 = vpack.c.b16 %v1626, %v1623
  %v1810 = vpack.c.b16 %v1627, %v1624
  %v1811 = vpack.c.b16 %v1631, %v1628
  %v1812 = vpack.c.b16 %v1632, %v1629
  %v1813 = vpack.c.b16 %v1633, %v1630
  %v1814 = vpack.c.b16 %v1637, %v1634
  %v1815 = vpack.c.b16 %v1638, %v1635
  %v1816 = vpack.c.b16 %v1639, %v1636
  %v1817 = vpack.c.b16 %v1643, %v1640
  %v1818 = vpack.c.b16 %v1644, %v1641
  %v1819 = vpack.c.b16 %v1645, %v1642
  %v1820 = vpack.c.b16 %v1649, %v1646
  %v1821 = vpack.c.b16 %v1650, %v1647
  %v1822 = vpack.c.b16 %v1651, %v1648
  %v1823 = vpack.c.b16 %v1655, %v1652
  %v1824 = vpack.c.b16 %v1656, %v1653
  %v1825 = vpack.c.b16 %v1657, %v1654
  %v1826 = vpack.c.b16 %v1661, %v1658
  %v1827 = vpack.c.b16 %v1662, %v1659
  %v1828 = vpack.c.b16 %v1663, %v1660
  %v1829 = vpack.c.b16 %v1667, %v1664
  %v1830 = vpack.c.b16 %v1668, %v1665
  %v1831 = vpack.c.b16 %v1669, %v1666
  %v1832 = vpack.c.b16 %v1673, %v1670
  %v1833 = vpack.c.b16 %v1674, %v1671
  %v1834 = vpack.c.b16 %v1675, %v1672
  %v1835 = vpack.c.b16 %v1679, %v1676
  %v1836 = vpack.c.b16 %v1680, %v1677
  %v1837 = vpack.c.b16 %v1681, %v1678
  %v1838 = vpack.c.b16 %v1685, %v1682
  %v1839 = vpack.c.b16 %v1686, %v1683
  %v1840 = vpack.c.b16 %v1687, %v1684
  %v1841 = vpack.c.b16 %v1691, %v1688
  %v1842 = vpack.c.b16 %v1692, %v1689
  %v1843 = vpack.c.b16 %v1693, %v1690
  %vm1944 = vcmask 670720
  %v1946 = vsel %vm1944, %v1696, 0
  %v1949 = vsel %vm1944, %v1699, 0
  %v1952 = vsel %vm1944, %v1702, 0
  %v1955 = vsel %vm1944, %v1705, 0
  %v1958 = vsel %vm1944, %v1708, 0
  %v1961 = vsel %vm1944, %v1711, 0
  %v1964 = vsel %vm1944, %v1714, 0
  %v1967 = vsel %vm1944, %v1717, 0
  %v1970 = vsel %vm1944, %v1720, 0
  %v1973 = vsel %vm1944, %v1723, 0
  %v1976 = vsel %vm1944, %v1726, 0
  %v1979 = vsel %vm1944, %v1729, 0
  %v1982 = vsel %vm1944, %v1732, 0
  %v1985 = vsel %vm1944, %v1735, 0
  %v1988 = vsel %vm1944, %v1738, 0
  %v1991 = vsel %vm1944, %v1741, 0
  %v1994 = vsel %vm1944, %v1744, 0
  %v1997 = vsel %vm1944, %v1747, 0
  %v2000 = vsel %vm1944, %v1750, 0
  %v2003 = vsel %vm1944, %v1753, 0
  %v2006 = vsel %vm1944, %v1756, 0
  %v2009 = vsel %vm1944, %v1759, 0
  %v2012 = vsel %vm1944, %v1762, 0
  %v2015 = vsel %vm1944, %v1765, 0
  %v2018 = vsel %vm1944, %v1768, 0
  %v2021 = vsel %vm1944, %v1771, 0
  %v2024 = vsel %vm1944, %v1774, 0
  %v2027 = vsel %vm1944, %v1777, 0
  %v2030 = vsel %vm1944, %v1780, 0
  %v2033 = vsel %vm1944, %v1783, 0
  %v2036 = vsel %vm1944, %v1786, 0
  %v2039 = vsel %vm1944, %v1789, 0
  %v2042 = vsel %vm1944, %v1792, 0
  %v2045 = vsel %vm1944, %v1795, 0
  %v2048 = vsel %vm1944, %v1798, 0
  %v2051 = vsel %vm1944, %v1801, 0
  %v2054 = vsel %vm1944, %v1804, 0
  %v2057 = vsel %vm1944, %v1807, 0
  %v2060 = vsel %vm1944, %v1810, 0
  %v2063 = vsel %vm1944, %v1813, 0
  %v2066 = vsel %vm1944, %v1816, 0
  %v2069 = vsel %vm1944, %v1819, 0
  %v2072 = vsel %vm1944, %v1822, 0
  %v2075 = vsel %vm1944, %v1825, 0
  %v2078 = vsel %vm1944, %v1828, 0
  %v2081 = vsel %vm1944, %v1831, 0
  %v2084 = vsel %vm1944, %v1834, 0
  %v2087 = vsel %vm1944, %v1837, 0
  %v2090 = vsel %vm1944, %v1840, 0
  %v2093 = vsel %vm1944, %v1843, 0
  %vm2095 = vcmask 1040384
  %v2097 = vsel %vm2095, %v993, 0
  %2099 = vmatprep.subr.bf16.mxu0 0
  %2100 = vmatpush1.bf16.msra.mxu0 %v972
  %2101 = vmatprep.subr.bf16.mxu0 0
  %2102 = vmatpush1.bf16.msra.mxu0 %v973
  %2103 = vmatprep.subr.bf16.mxu0 0
  %2104 = vmatpush1.bf16.msra.mxu0 %v974
  %2105 = vmatprep.subr.bf16.mxu0 0
  %2106 = vmatpush1.bf16.msra.mxu0 %v975
  %2107 = vmatprep.subr.bf16.mxu0 0
  %2108 = vmatpush1.bf16.msra.mxu0 %v976
  %2109 = vmatprep.subr.bf16.mxu0 0
  %2110 = vmatpush1.bf16.msra.mxu0 %v977
  %2111 = vmatprep.subr.bf16.mxu0 0
  %2112 = vmatpush1.bf16.msra.mxu0 %v978
  %2113 = vmatprep.subr.bf16.mxu0 0
  %2114 = vmatpush1.bf16.msra.mxu0 %v979
  %2115 = vmatprep.subr.bf16.mxu0 0
  %2116 = vmatpush1.bf16.msra.mxu0 %v980
  %2117 = vmatprep.subr.bf16.mxu0 0
  %2118 = vmatpush1.bf16.msra.mxu0 %v981
  %2119 = vmatprep.subr.bf16.mxu0 0
  %2120 = vmatpush1.bf16.msra.mxu0 %v982
  %2121 = vmatprep.subr.bf16.mxu0 0
  %2122 = vmatpush1.bf16.msra.mxu0 %v983
  %2123 = vmatprep.subr.bf16.mxu0 0
  %2124 = vmatpush1.bf16.msra.mxu0 %v984
  %2125 = vmatprep.subr.bf16.mxu0 0
  %2126 = vmatpush1.bf16.msra.mxu0 %v985
  %2127 = vmatprep.subr.bf16.mxu0 0
  %2128 = vmatpush1.bf16.msra.mxu0 %v986
  %2129 = vmatprep.subr.bf16.mxu0 0
  %2130 = vmatpush1.bf16.msra.mxu0 %v987
  %2131 = vmatprep.mubr.bf16.mxu0 %v1695
  %2132 = vmatmul.mubr.bf16.gmra.mrb[0].mxu0 %v1694
  %v2133 = vpop.f32.mrb[0].mxu0
  %v2134 = vadd.f32 0.0, %v2133
  %v2135 = vpop.f32.mrb[0].mxu0
  %v2136 = vpop.f32.mrb[0].mxu0
  %v2137 = vadd.f32 0.0, %v2136
  %v2138 = vpop.f32.mrb[0].mxu0
  %2139 = vmatprep.mubr.bf16.mxu0 %v1698
  %2140 = vmatmul.mubr.bf16.gmra.mrb[0].mxu0 %v1697
  %v2141 = vpop.f32.mrb[0].mxu0
  %v2142 = vadd.f32 0.0, %v2141
  %v2143 = vpop.f32.mrb[0].mxu0
  %v2144 = vpop.f32.mrb[0].mxu0
  %v2145 = vadd.f32 0.0, %v2144
  %v2146 = vpop.f32.mrb[0].mxu0
  %2147 = vmatprep.mubr.bf16.mxu0 %v1701
  %2148 = vmatmul.mubr.bf16.gmra.mrb[0].mxu0 %v1700
  %v2149 = vpop.f32.mrb[0].mxu0
  %v2150 = vadd.f32 0.0, %v2149
  %v2151 = vpop.f32.mrb[0].mxu0
  %v2152 = vpop.f32.mrb[0].mxu0
  %v2153 = vadd.f32 0.0, %v2152
  %v2154 = vpop.f32.mrb[0].mxu0
  %2155 = vmatprep.mubr.bf16.mxu0 %v1704
  %2156 = vmatmul.mubr.bf16.gmra.mrb[0].mxu0 %v1703
  %v2157 = vpop.f32.mrb[0].mxu0
  %v2158 = vadd.f32 0.0, %v2157
  %v2159 = vpop.f32.mrb[0].mxu0
  %v2160 = vpop.f32.mrb[0].mxu0
  %v2161 = vadd.f32 0.0, %v2160
  %v2162 = vpop.f32.mrb[0].mxu0
  %2163 = vmatprep.mubr.bf16.mxu0 %v1707
  %2164 = vmatmul.mubr.bf16.gmra.mrb[0].mxu0 %v1706
  %v2165 = vpop.f32.mrb[0].mxu0
  %v2166 = vadd.f32 0.0, %v2165
  %v2167 = vpop.f32.mrb[0].mxu0
  %v2168 = vpop.f32.mrb[0].mxu0
  %v2169 = vadd.f32 0.0, %v2168
  %v2170 = vpop.f32.mrb[0].mxu0
  %2171 = vmatprep.mubr.bf16.mxu0 %v1710
  %2172 = vmatmul.mubr.bf16.gmra.mrb[0].mxu0 %v1709
  %v2173 = vpop.f32.mrb[0].mxu0
  %v2174 = vadd.f32 0.0, %v2173
  %v2175 = vpop.f32.mrb[0].mxu0
  %v2176 = vpop.f32.mrb[0].mxu0
  %v2177 = vadd.f32 0.0, %v2176
  %v2178 = vpop.f32.mrb[0].mxu0
  %2179 = vmatprep.mubr.bf16.mxu0 %v1713
  %2180 = vmatmul.mubr.bf16.gmra.mrb[0].mxu0 %v1712
  %v2181 = vpop.f32.mrb[0].mxu0
  %v2182 = vadd.f32 0.0, %v2181
  %v2183 = vpop.f32.mrb[0].mxu0
  %v2184 = vpop.f32.mrb[0].mxu0
  %v2185 = vadd.f32 0.0, %v2184
  %v2186 = vpop.f32.mrb[0].mxu0
  %2187 = vmatprep.mubr.bf16.mxu0 %v1716
  %2188 = vmatmul.mubr.bf16.gmra.mrb[0].mxu0 %v1715
  %v2189 = vpop.f32.mrb[0].mxu0
  %v2190 = vadd.f32 0.0, %v2189
  %v2191 = vpop.f32.mrb[0].mxu0
  %v2192 = vpop.f32.mrb[0].mxu0
  %v2193 = vadd.f32 0.0, %v2192
  %v2194 = vpop.f32.mrb[0].mxu0
  %2195 = vmatprep.mubr.bf16.mxu0 %v1719
  %2196 = vmatmul.mubr.bf16.gmra.mrb[0].mxu0 %v1718
  %v2197 = vpop.f32.mrb[0].mxu0
  %v2198 = vadd.f32 0.0, %v2197
  %v2199 = vpop.f32.mrb[0].mxu0
  %v2200 = vpop.f32.mrb[0].mxu0
  %v2201 = vadd.f32 0.0, %v2200
  %v2202 = vpop.f32.mrb[0].mxu0
  %2203 = vmatprep.mubr.bf16.mxu0 %v1722
  %2204 = vmatmul.mubr.bf16.gmra.mrb[0].mxu0 %v1721
  %v2205 = vpop.f32.mrb[0].mxu0
  %v2206 = vadd.f32 0.0, %v2205
  %v2207 = vpop.f32.mrb[0].mxu0
  %v2208 = vpop.f32.mrb[0].mxu0
  %v2209 = vadd.f32 0.0, %v2208
  %v2210 = vpop.f32.mrb[0].mxu0
  %2211 = vmatprep.mubr.bf16.mxu0 %v1725
  %2212 = vmatmul.mubr.bf16.gmra.mrb[0].mxu0 %v1724
  %v2213 = vpop.f32.mrb[0].mxu0
  %v2214 = vadd.f32 0.0, %v2213
  %v2215 = vpop.f32.mrb[0].mxu0
  %v2216 = vpop.f32.mrb[0].mxu0
  %v2217 = vadd.f32 0.0, %v2216
  %v2218 = vpop.f32.mrb[0].mxu0
  %2219 = vmatprep.mubr.bf16.mxu0 %v1728
  %2220 = vmatmul.mubr.bf16.gmra.mrb[0].mxu0 %v1727
  %v2221 = vpop.f32.mrb[0].mxu0
  %v2222 = vadd.f32 0.0, %v2221
  %v2223 = vpop.f32.mrb[0].mxu0
  %v2224 = vpop.f32.mrb[0].mxu0
  %v2225 = vadd.f32 0.0, %v2224
  %v2226 = vpop.f32.mrb[0].mxu0
  %2227 = vmatprep.mubr.bf16.mxu0 %v1731
  %2228 = vmatmul.mubr.bf16.gmra.mrb[0].mxu0 %v1730
  %v2229 = vpop.f32.mrb[0].mxu0
  %v2230 = vadd.f32 0.0, %v2229
  %v2231 = vpop.f32.mrb[0].mxu0
  %v2232 = vpop.f32.mrb[0].mxu0
  %v2233 = vadd.f32 0.0, %v2232
  %v2234 = vpop.f32.mrb[0].mxu0
  %2235 = vmatprep.mubr.bf16.mxu0 %v1734
  %2236 = vmatmul.mubr.bf16.gmra.mrb[0].mxu0 %v1733
  %v2237 = vpop.f32.mrb[0].mxu0
  %v2238 = vadd.f32 0.0, %v2237
  %v2239 = vpop.f32.mrb[0].mxu0
  %v2240 = vpop.f32.mrb[0].mxu0
  %v2241 = vadd.f32 0.0, %v2240
  %v2242 = vpop.f32.mrb[0].mxu0
  %2243 = vmatprep.mubr.bf16.mxu0 %v1737
  %2244 = vmatmul.mubr.bf16.gmra.mrb[0].mxu0 %v1736
  %v2245 = vpop.f32.mrb[0].mxu0
  %v2246 = vadd.f32 0.0, %v2245
  %v2247 = vpop.f32.mrb[0].mxu0
  %v2248 = vpop.f32.mrb[0].mxu0
  %v2249 = vadd.f32 0.0, %v2248
  %v2250 = vpop.f32.mrb[0].mxu0
  %2251 = vmatprep.mubr.bf16.mxu0 %v1740
  %2252 = vmatmul.mubr.bf16.gmra.mrb[0].mxu0 %v1739
  %v2253 = vpop.f32.mrb[0].mxu0
  %v2254 = vadd.f32 0.0, %v2253
  %v2255 = vpop.f32.mrb[0].mxu0
  %v2256 = vpop.f32.mrb[0].mxu0
  %v2257 = vadd.f32 0.0, %v2256
  %v2258 = vpop.f32.mrb[0].mxu0
  %2259 = vmatprep.mubr.bf16.mxu0 %v1743
  %2260 = vmatmul.mubr.bf16.gmra.mrb[0].mxu0 %v1742
  %v2261 = vpop.f32.mrb[0].mxu0
  %v2262 = vadd.f32 0.0, %v2261
  %v2263 = vpop.f32.mrb[0].mxu0
  %v2264 = vpop.f32.mrb[0].mxu0
  %v2265 = vadd.f32 0.0, %v2264
  %v2266 = vpop.f32.mrb[0].mxu0
  %2267 = vmatprep.mubr.bf16.mxu0 %v1746
  %2268 = vmatmul.mubr.bf16.gmra.mrb[0].mxu0 %v1745
  %v2269 = vpop.f32.mrb[0].mxu0
  %v2270 = vadd.f32 0.0, %v2269
  %v2271 = vpop.f32.mrb[0].mxu0
  %v2272 = vpop.f32.mrb[0].mxu0
  %v2273 = vadd.f32 0.0, %v2272
  %v2274 = vpop.f32.mrb[0].mxu0
  %2275 = vmatprep.mubr.bf16.mxu0 %v1749
  %2276 = vmatmul.mubr.bf16.gmra.mrb[0].mxu0 %v1748
  %v2277 = vpop.f32.mrb[0].mxu0
  %v2278 = vadd.f32 0.0, %v2277
  %v2279 = vpop.f32.mrb[0].mxu0
  %v2280 = vpop.f32.mrb[0].mxu0
  %v2281 = vadd.f32 0.0, %v2280
  %v2282 = vpop.f32.mrb[0].mxu0
  %2283 = vmatprep.mubr.bf16.mxu0 %v1752
  %2284 = vmatmul.mubr.bf16.gmra.mrb[0].mxu0 %v1751
  %v2285 = vpop.f32.mrb[0].mxu0
  %v2286 = vadd.f32 0.0, %v2285
  %v2287 = vpop.f32.mrb[0].mxu0
  %v2288 = vpop.f32.mrb[0].mxu0
  %v2289 = vadd.f32 0.0, %v2288
  %v2290 = vpop.f32.mrb[0].mxu0
  %2291 = vmatprep.mubr.bf16.mxu0 %v1755
  %2292 = vmatmul.mubr.bf16.gmra.mrb[0].mxu0 %v1754
  %v2293 = vpop.f32.mrb[0].mxu0
  %v2294 = vadd.f32 0.0, %v2293
  %v2295 = vpop.f32.mrb[0].mxu0
  %v2296 = vpop.f32.mrb[0].mxu0
  %v2297 = vadd.f32 0.0, %v2296
  %v2298 = vpop.f32.mrb[0].mxu0
  %2299 = vmatprep.mubr.bf16.mxu0 %v1758
  %2300 = vmatmul.mubr.bf16.gmra.mrb[0].mxu0 %v1757
  %v2301 = vpop.f32.mrb[0].mxu0
  %v2302 = vadd.f32 0.0, %v2301
  %v2303 = vpop.f32.mrb[0].mxu0
  %v2304 = vpop.f32.mrb[0].mxu0
  %v2305 = vadd.f32 0.0, %v2304
  %v2306 = vpop.f32.mrb[0].mxu0
  %2307 = vmatprep.mubr.bf16.mxu0 %v1761
  %2308 = vmatmul.mubr.bf16.gmra.mrb[0].mxu0 %v1760
  %v2309 = vpop.f32.mrb[0].mxu0
  %v2310 = vadd.f32 0.0, %v2309
  %v2311 = vpop.f32.mrb[0].mxu0
  %v2312 = vpop.f32.mrb[0].mxu0
  %v2313 = vadd.f32 0.0, %v2312
  %v2314 = vpop.f32.mrb[0].mxu0
  %2315 = vmatprep.mubr.bf16.mxu0 %v1764
  %2316 = vmatmul.mubr.bf16.gmra.mrb[0].mxu0 %v1763
  %v2317 = vpop.f32.mrb[0].mxu0
  %v2318 = vadd.f32 0.0, %v2317
  %v2319 = vpop.f32.mrb[0].mxu0
  %v2320 = vpop.f32.mrb[0].mxu0
  %v2321 = vadd.f32 0.0, %v2320
  %v2322 = vpop.f32.mrb[0].mxu0
  %2323 = vmatprep.mubr.bf16.mxu0 %v1767
  %2324 = vmatmul.mubr.bf16.gmra.mrb[0].mxu0 %v1766
  %v2325 = vpop.f32.mrb[0].mxu0
  %v2326 = vadd.f32 0.0, %v2325
  %v2327 = vpop.f32.mrb[0].mxu0
  %v2328 = vpop.f32.mrb[0].mxu0
  %v2329 = vadd.f32 0.0, %v2328
  %v2330 = vpop.f32.mrb[0].mxu0
  %2331 = vmatprep.mubr.bf16.mxu0 %v1770
  %2332 = vmatmul.mubr.bf16.gmra.mrb[0].mxu0 %v1769
  %v2333 = vpop.f32.mrb[0].mxu0
  %v2334 = vadd.f32 0.0, %v2333
  %v2335 = vpop.f32.mrb[0].mxu0
  %v2336 = vpop.f32.mrb[0].mxu0
  %v2337 = vadd.f32 0.0, %v2336
  %v2338 = vpop.f32.mrb[0].mxu0
  %2339 = vmatprep.mubr.bf16.mxu0 %v1773
  %2340 = vmatmul.mubr.bf16.gmra.mrb[0].mxu0 %v1772
  %v2341 = vpop.f32.mrb[0].mxu0
  %v2342 = vadd.f32 0.0, %v2341
  %v2343 = vpop.f32.mrb[0].mxu0
  %v2344 = vpop.f32.mrb[0].mxu0
  %v2345 = vadd.f32 0.0, %v2344
  %v2346 = vpop.f32.mrb[0].mxu0
  %2347 = vmatprep.mubr.bf16.mxu0 %v1776
  %2348 = vmatmul.mubr.bf16.gmra.mrb[0].mxu0 %v1775
  %v2349 = vpop.f32.mrb[0].mxu0
  %v2350 = vadd.f32 0.0, %v2349
  %v2351 = vpop.f32.mrb[0].mxu0
  %v2352 = vpop.f32.mrb[0].mxu0
  %v2353 = vadd.f32 0.0, %v2352
  %v2354 = vpop.f32.mrb[0].mxu0
  %2355 = vmatprep.mubr.bf16.mxu0 %v1779
  %2356 = vmatmul.mubr.bf16.gmra.mrb[0].mxu0 %v1778
  %v2357 = vpop.f32.mrb[0].mxu0
  %v2358 = vadd.f32 0.0, %v2357
  %v2359 = vpop.f32.mrb[0].mxu0
  %v2360 = vpop.f32.mrb[0].mxu0
  %v2361 = vadd.f32 0.0, %v2360
  %v2362 = vpop.f32.mrb[0].mxu0
  %2363 = vmatprep.mubr.bf16.mxu0 %v1782
  %2364 = vmatmul.mubr.bf16.gmra.mrb[0].mxu0 %v1781
  %v2365 = vpop.f32.mrb[0].mxu0
  %v2366 = vadd.f32 0.0, %v2365
  %v2367 = vpop.f32.mrb[0].mxu0
  %v2368 = vpop.f32.mrb[0].mxu0
  %v2369 = vadd.f32 0.0, %v2368
  %v2370 = vpop.f32.mrb[0].mxu0
  %2371 = vmatprep.mubr.bf16.mxu0 %v1785
  %2372 = vmatmul.mubr.bf16.gmra.mrb[0].mxu0 %v1784
  %v2373 = vpop.f32.mrb[0].mxu0
  %v2374 = vadd.f32 0.0, %v2373
  %v2375 = vpop.f32.mrb[0].mxu0
  %v2376 = vpop.f32.mrb[0].mxu0
  %v2377 = vadd.f32 0.0, %v2376
  %v2378 = vpop.f32.mrb[0].mxu0
  %2379 = vmatprep.mubr.bf16.mxu0 %v1788
  %2380 = vmatmul.mubr.bf16.gmra.mrb[0].mxu0 %v1787
  %v2381 = vpop.f32.mrb[0].mxu0
  %v2382 = vadd.f32 0.0, %v2381
  %v2383 = vpop.f32.mrb[0].mxu0
  %v2384 = vpop.f32.mrb[0].mxu0
  %v2385 = vadd.f32 0.0, %v2384
  %v2386 = vpop.f32.mrb[0].mxu0
  %2387 = vmatprep.mubr.bf16.mxu0 %v1791
  %2388 = vmatmul.mubr.bf16.gmra.mrb[0].mxu0 %v1790
  %v2389 = vpop.f32.mrb[0].mxu0
  %v2390 = vadd.f32 0.0, %v2389
  %v2391 = vpop.f32.mrb[0].mxu0
  %v2392 = vpop.f32.mrb[0].mxu0
  %v2393 = vadd.f32 0.0, %v2392
  %v2394 = vpop.f32.mrb[0].mxu0
  %2395 = vmatprep.mubr.bf16.mxu0 %v1794
  %2396 = vmatmul.mubr.bf16.gmra.mrb[0].mxu0 %v1793
  %v2397 = vpop.f32.mrb[0].mxu0
  %v2398 = vadd.f32 0.0, %v2397
  %v2399 = vpop.f32.mrb[0].mxu0
  %v2400 = vpop.f32.mrb[0].mxu0
  %v2401 = vadd.f32 0.0, %v2400
  %v2402 = vpop.f32.mrb[0].mxu0
  %2403 = vmatprep.mubr.bf16.mxu0 %v1797
  %2404 = vmatmul.mubr.bf16.gmra.mrb[0].mxu0 %v1796
  %v2405 = vpop.f32.mrb[0].mxu0
  %v2406 = vadd.f32 0.0, %v2405
  %v2407 = vpop.f32.mrb[0].mxu0
  %v2408 = vpop.f32.mrb[0].mxu0
  %v2409 = vadd.f32 0.0, %v2408
  %v2410 = vpop.f32.mrb[0].mxu0
  %2411 = vmatprep.mubr.bf16.mxu0 %v1800
  %2412 = vmatmul.mubr.bf16.gmra.mrb[0].mxu0 %v1799
  %v2413 = vpop.f32.mrb[0].mxu0
  %v2414 = vadd.f32 0.0, %v2413
  %v2415 = vpop.f32.mrb[0].mxu0
  %v2416 = vpop.f32.mrb[0].mxu0
  %v2417 = vadd.f32 0.0, %v2416
  %v2418 = vpop.f32.mrb[0].mxu0
  %2419 = vmatprep.mubr.bf16.mxu0 %v1803
  %2420 = vmatmul.mubr.bf16.gmra.mrb[0].mxu0 %v1802
  %v2421 = vpop.f32.mrb[0].mxu0
  %v2422 = vadd.f32 0.0, %v2421
  %v2423 = vpop.f32.mrb[0].mxu0
  %v2424 = vpop.f32.mrb[0].mxu0
  %v2425 = vadd.f32 0.0, %v2424
  %v2426 = vpop.f32.mrb[0].mxu0
  %2427 = vmatprep.mubr.bf16.mxu0 %v1806
  %2428 = vmatmul.mubr.bf16.gmra.mrb[0].mxu0 %v1805
  %v2429 = vpop.f32.mrb[0].mxu0
  %v2430 = vadd.f32 0.0, %v2429
  %v2431 = vpop.f32.mrb[0].mxu0
  %v2432 = vpop.f32.mrb[0].mxu0
  %v2433 = vadd.f32 0.0, %v2432
  %v2434 = vpop.f32.mrb[0].mxu0
  %2435 = vmatprep.mubr.bf16.mxu0 %v1809
  %2436 = vmatmul.mubr.bf16.gmra.mrb[0].mxu0 %v1808
  %v2437 = vpop.f32.mrb[0].mxu0
  %v2438 = vadd.f32 0.0, %v2437
  %v2439 = vpop.f32.mrb[0].mxu0
  %v2440 = vpop.f32.mrb[0].mxu0
  %v2441 = vadd.f32 0.0, %v2440
  %v2442 = vpop.f32.mrb[0].mxu0
  %2443 = vmatprep.mubr.bf16.mxu0 %v1812
  %2444 = vmatmul.mubr.bf16.gmra.mrb[0].mxu0 %v1811
  %v2445 = vpop.f32.mrb[0].mxu0
  %v2446 = vadd.f32 0.0, %v2445
  %v2447 = vpop.f32.mrb[0].mxu0
  %v2448 = vpop.f32.mrb[0].mxu0
  %v2449 = vadd.f32 0.0, %v2448
  %v2450 = vpop.f32.mrb[0].mxu0
  %2451 = vmatprep.mubr.bf16.mxu0 %v1815
  %2452 = vmatmul.mubr.bf16.gmra.mrb[0].mxu0 %v1814
  %v2453 = vpop.f32.mrb[0].mxu0
  %v2454 = vadd.f32 0.0, %v2453
  %v2455 = vpop.f32.mrb[0].mxu0
  %v2456 = vpop.f32.mrb[0].mxu0
  %v2457 = vadd.f32 0.0, %v2456
  %v2458 = vpop.f32.mrb[0].mxu0
  %2459 = vmatprep.mubr.bf16.mxu0 %v1818
  %2460 = vmatmul.mubr.bf16.gmra.mrb[0].mxu0 %v1817
  %v2461 = vpop.f32.mrb[0].mxu0
  %v2462 = vadd.f32 0.0, %v2461
  %v2463 = vpop.f32.mrb[0].mxu0
  %v2464 = vpop.f32.mrb[0].mxu0
  %v2465 = vadd.f32 0.0, %v2464
  %v2466 = vpop.f32.mrb[0].mxu0
  %2467 = vmatprep.mubr.bf16.mxu0 %v1821
  %2468 = vmatmul.mubr.bf16.gmra.mrb[0].mxu0 %v1820
  %v2469 = vpop.f32.mrb[0].mxu0
  %v2470 = vadd.f32 0.0, %v2469
  %v2471 = vpop.f32.mrb[0].mxu0
  %v2472 = vpop.f32.mrb[0].mxu0
  %v2473 = vadd.f32 0.0, %v2472
  %v2474 = vpop.f32.mrb[0].mxu0
  %2475 = vmatprep.mubr.bf16.mxu0 %v1824
  %2476 = vmatmul.mubr.bf16.gmra.mrb[0].mxu0 %v1823
  %v2477 = vpop.f32.mrb[0].mxu0
  %v2478 = vadd.f32 0.0, %v2477
  %v2479 = vpop.f32.mrb[0].mxu0
  %v2480 = vpop.f32.mrb[0].mxu0
  %v2481 = vadd.f32 0.0, %v2480
  %v2482 = vpop.f32.mrb[0].mxu0
  %2483 = vmatprep.mubr.bf16.mxu0 %v1827
  %2484 = vmatmul.mubr.bf16.gmra.mrb[0].mxu0 %v1826
  %v2485 = vpop.f32.mrb[0].mxu0
  %v2486 = vadd.f32 0.0, %v2485
  %v2487 = vpop.f32.mrb[0].mxu0
  %v2488 = vpop.f32.mrb[0].mxu0
  %v2489 = vadd.f32 0.0, %v2488
  %v2490 = vpop.f32.mrb[0].mxu0
  %2491 = vmatprep.mubr.bf16.mxu0 %v1830
  %2492 = vmatmul.mubr.bf16.gmra.mrb[0].mxu0 %v1829
  %v2493 = vpop.f32.mrb[0].mxu0
  %v2494 = vadd.f32 0.0, %v2493
  %v2495 = vpop.f32.mrb[0].mxu0
  %v2496 = vpop.f32.mrb[0].mxu0
  %v2497 = vadd.f32 0.0, %v2496
  %v2498 = vpop.f32.mrb[0].mxu0
  %2499 = vmatprep.mubr.bf16.mxu0 %v1833
  %2500 = vmatmul.mubr.bf16.gmra.mrb[0].mxu0 %v1832
  %v2501 = vpop.f32.mrb[0].mxu0
  %v2502 = vadd.f32 0.0, %v2501
  %v2503 = vpop.f32.mrb[0].mxu0
  %v2504 = vpop.f32.mrb[0].mxu0
  %v2505 = vadd.f32 0.0, %v2504
  %v2506 = vpop.f32.mrb[0].mxu0
  %2507 = vmatprep.mubr.bf16.mxu0 %v1836
  %2508 = vmatmul.mubr.bf16.gmra.mrb[0].mxu0 %v1835
  %v2509 = vpop.f32.mrb[0].mxu0
  %v2510 = vadd.f32 0.0, %v2509
  %v2511 = vpop.f32.mrb[0].mxu0
  %v2512 = vpop.f32.mrb[0].mxu0
  %v2513 = vadd.f32 0.0, %v2512
  %v2514 = vpop.f32.mrb[0].mxu0
  %2515 = vmatprep.mubr.bf16.mxu0 %v1839
  %2516 = vmatmul.mubr.bf16.gmra.mrb[0].mxu0 %v1838
  %v2517 = vpop.f32.mrb[0].mxu0
  %v2518 = vadd.f32 0.0, %v2517
  %v2519 = vpop.f32.mrb[0].mxu0
  %v2520 = vpop.f32.mrb[0].mxu0
  %v2521 = vadd.f32 0.0, %v2520
  %v2522 = vpop.f32.mrb[0].mxu0
  %2523 = vmatprep.mubr.bf16.mxu0 %v1842
  %2524 = vmatmul.mubr.bf16.gmra.mrb[0].mxu0 %v1841
  %v2525 = vpop.f32.mrb[0].mxu0
  %v2526 = vadd.f32 0.0, %v2525
  %v2527 = vpop.f32.mrb[0].mxu0
  %v2528 = vpop.f32.mrb[0].mxu0
  %v2529 = vadd.f32 0.0, %v2528
  %v2530 = vpop.f32.mrb[0].mxu0
  %2531 = vdwg.mxu0
  %2532 = vmatprep.subr.bf16.mxu0 0
  %2533 = vmatpush1.bf16.msra.mxu0 %v988
  %2534 = vmatprep.subr.bf16.mxu0 0
  %2535 = vmatpush1.bf16.msra.mxu0 %v989
  %2536 = vmatprep.subr.bf16.mxu0 0
  %2537 = vmatpush1.bf16.msra.mxu0 %v990
  %2538 = vmatprep.subr.bf16.mxu0 0
  %2539 = vmatpush1.bf16.msra.mxu0 %v991
  %2540 = vmatprep.subr.bf16.mxu0 0
  %2541 = vmatpush1.bf16.msra.mxu0 %v992
  %2542 = vmatprep.subr.bf16.mxu0 0
  %2543 = vmatpush1.bf16.msra.mxu0 %v2097
  %2544 = vmatprep.subr.bf16.mxu0 0
  %2545 = vmatpush1.bf16.msra.mxu0 0
  %2546 = vmatprep.subr.bf16.mxu0 0
  %2547 = vmatpush1.bf16.msra.mxu0 0
  %2548 = vmatprep.subr.bf16.mxu0 0
  %2549 = vmatpush1.bf16.msra.mxu0 0
  %2550 = vmatprep.subr.bf16.mxu0 0
  %2551 = vmatpush1.bf16.msra.mxu0 0
  %2552 = vmatprep.subr.bf16.mxu0 0
  %2553 = vmatpush1.bf16.msra.mxu0 0
  %2554 = vmatprep.subr.bf16.mxu0 0
  %2555 = vmatpush1.bf16.msra.mxu0 0
  %2556 = vmatprep.subr.bf16.mxu0 0
  %2557 = vmatpush1.bf16.msra.mxu0 0
  %2558 = vmatprep.subr.bf16.mxu0 0
  %2559 = vmatpush1.bf16.msra.mxu0 0
  %2560 = vmatprep.subr.bf16.mxu0 0
  %2561 = vmatpush1.bf16.msra.mxu0 0
  %2562 = vmatprep.subr.bf16.mxu0 0
  %2563 = vmatpush1.bf16.msra.mxu0 0
  %2564 = vmatprep.mubr.bf16.mxu0 0
  %2565 = vmatmul.mubr.bf16.gmra.mrb[0].mxu0 %v1946
  %v2566 = vpop.f32.mrb[0].mxu0
  %v2567 = vadd.f32 %v2134, %v2566
  %v2568 = vpop.f32.mrb[0].mxu0
  %v2569 = vpop.f32.mrb[0].mxu0
  %v2570 = vadd.f32 %v2137, %v2569
  %v2571 = vpop.f32.mrb[0].mxu0
  %2572 = vmatprep.mubr.bf16.mxu0 0
  %2573 = vmatmul.mubr.bf16.gmra.mrb[0].mxu0 %v1949
  %v2574 = vpop.f32.mrb[0].mxu0
  %v2575 = vadd.f32 %v2142, %v2574
  %v2576 = vpop.f32.mrb[0].mxu0
  %v2577 = vpop.f32.mrb[0].mxu0
  %v2578 = vadd.f32 %v2145, %v2577
  %v2579 = vpop.f32.mrb[0].mxu0
  %2580 = vmatprep.mubr.bf16.mxu0 0
  %2581 = vmatmul.mubr.bf16.gmra.mrb[0].mxu0 %v1952
  %v2582 = vpop.f32.mrb[0].mxu0
  %v2583 = vadd.f32 %v2150, %v2582
  %v2584 = vpop.f32.mrb[0].mxu0
  %v2585 = vpop.f32.mrb[0].mxu0
  %v2586 = vadd.f32 %v2153, %v2585
  %v2587 = vpop.f32.mrb[0].mxu0
  %2588 = vmatprep.mubr.bf16.mxu0 0
  %2589 = vmatmul.mubr.bf16.gmra.mrb[0].mxu0 %v1955
  %v2590 = vpop.f32.mrb[0].mxu0
  %v2591 = vadd.f32 %v2158, %v2590
  %v2592 = vpop.f32.mrb[0].mxu0
  %v2593 = vpop.f32.mrb[0].mxu0
  %v2594 = vadd.f32 %v2161, %v2593
  %v2595 = vpop.f32.mrb[0].mxu0
  %2596 = vmatprep.mubr.bf16.mxu0 0
  %2597 = vmatmul.mubr.bf16.gmra.mrb[0].mxu0 %v1958
  %v2598 = vpop.f32.mrb[0].mxu0
  %v2599 = vadd.f32 %v2166, %v2598
  %v2600 = vpop.f32.mrb[0].mxu0
  %v2601 = vpop.f32.mrb[0].mxu0
  %v2602 = vadd.f32 %v2169, %v2601
  %v2603 = vpop.f32.mrb[0].mxu0
  %2604 = vmatprep.mubr.bf16.mxu0 0
  %2605 = vmatmul.mubr.bf16.gmra.mrb[0].mxu0 %v1961
  %v2606 = vpop.f32.mrb[0].mxu0
  %v2607 = vadd.f32 %v2174, %v2606
  %v2608 = vpop.f32.mrb[0].mxu0
  %v2609 = vpop.f32.mrb[0].mxu0
  %v2610 = vadd.f32 %v2177, %v2609
  %v2611 = vpop.f32.mrb[0].mxu0
  %2612 = vmatprep.mubr.bf16.mxu0 0
  %2613 = vmatmul.mubr.bf16.gmra.mrb[0].mxu0 %v1964
  %v2614 = vpop.f32.mrb[0].mxu0
  %v2615 = vadd.f32 %v2182, %v2614
  %v2616 = vpop.f32.mrb[0].mxu0
  %v2617 = vpop.f32.mrb[0].mxu0
  %v2618 = vadd.f32 %v2185, %v2617
  %v2619 = vpop.f32.mrb[0].mxu0
  %2620 = vmatprep.mubr.bf16.mxu0 0
  %2621 = vmatmul.mubr.bf16.gmra.mrb[0].mxu0 %v1967
  %v2622 = vpop.f32.mrb[0].mxu0
  %v2623 = vadd.f32 %v2190, %v2622
  %v2624 = vpop.f32.mrb[0].mxu0
  %v2625 = vpop.f32.mrb[0].mxu0
  %v2626 = vadd.f32 %v2193, %v2625
  %v2627 = vpop.f32.mrb[0].mxu0
  %2628 = vmatprep.mubr.bf16.mxu0 0
  %2629 = vmatmul.mubr.bf16.gmra.mrb[0].mxu0 %v1970
  %v2630 = vpop.f32.mrb[0].mxu0
  %v2631 = vadd.f32 %v2198, %v2630
  %v2632 = vpop.f32.mrb[0].mxu0
  %v2633 = vpop.f32.mrb[0].mxu0
  %v2634 = vadd.f32 %v2201, %v2633
  %v2635 = vpop.f32.mrb[0].mxu0
  %2636 = vmatprep.mubr.bf16.mxu0 0
  %2637 = vmatmul.mubr.bf16.gmra.mrb[0].mxu0 %v1973
  %v2638 = vpop.f32.mrb[0].mxu0
  %v2639 = vadd.f32 %v2206, %v2638
  %v2640 = vpop.f32.mrb[0].mxu0
  %v2641 = vpop.f32.mrb[0].mxu0
  %v2642 = vadd.f32 %v2209, %v2641
  %v2643 = vpop.f32.mrb[0].mxu0
  %2644 = vmatprep.mubr.bf16.mxu0 0
  %2645 = vmatmul.mubr.bf16.gmra.mrb[0].mxu0 %v1976
  %v2646 = vpop.f32.mrb[0].mxu0
  %v2647 = vadd.f32 %v2214, %v2646
  %v2648 = vpop.f32.mrb[0].mxu0
  %v2649 = vpop.f32.mrb[0].mxu0
  %v2650 = vadd.f32 %v2217, %v2649
  %v2651 = vpop.f32.mrb[0].mxu0
  %2652 = vmatprep.mubr.bf16.mxu0 0
  %2653 = vmatmul.mubr.bf16.gmra.mrb[0].mxu0 %v1979
  %v2654 = vpop.f32.mrb[0].mxu0
  %v2655 = vadd.f32 %v2222, %v2654
  %v2656 = vpop.f32.mrb[0].mxu0
  %v2657 = vpop.f32.mrb[0].mxu0
  %v2658 = vadd.f32 %v2225, %v2657
  %v2659 = vpop.f32.mrb[0].mxu0
  %2660 = vmatprep.mubr.bf16.mxu0 0
  %2661 = vmatmul.mubr.bf16.gmra.mrb[0].mxu0 %v1982
  %v2662 = vpop.f32.mrb[0].mxu0
  %v2663 = vadd.f32 %v2230, %v2662
  %v2664 = vpop.f32.mrb[0].mxu0
  %v2665 = vpop.f32.mrb[0].mxu0
  %v2666 = vadd.f32 %v2233, %v2665
  %v2667 = vpop.f32.mrb[0].mxu0
  %2668 = vmatprep.mubr.bf16.mxu0 0
  %2669 = vmatmul.mubr.bf16.gmra.mrb[0].mxu0 %v1985
  %v2670 = vpop.f32.mrb[0].mxu0
  %v2671 = vadd.f32 %v2238, %v2670
  %v2672 = vpop.f32.mrb[0].mxu0
  %v2673 = vpop.f32.mrb[0].mxu0
  %v2674 = vadd.f32 %v2241, %v2673
  %v2675 = vpop.f32.mrb[0].mxu0
  %2676 = vmatprep.mubr.bf16.mxu0 0
  %2677 = vmatmul.mubr.bf16.gmra.mrb[0].mxu0 %v1988
  %v2678 = vpop.f32.mrb[0].mxu0
  %v2679 = vadd.f32 %v2246, %v2678
  %v2680 = vpop.f32.mrb[0].mxu0
  %v2681 = vpop.f32.mrb[0].mxu0
  %v2682 = vadd.f32 %v2249, %v2681
  %v2683 = vpop.f32.mrb[0].mxu0
  %2684 = vmatprep.mubr.bf16.mxu0 0
  %2685 = vmatmul.mubr.bf16.gmra.mrb[0].mxu0 %v1991
  %v2686 = vpop.f32.mrb[0].mxu0
  %v2687 = vadd.f32 %v2254, %v2686
  %v2688 = vpop.f32.mrb[0].mxu0
  %v2689 = vpop.f32.mrb[0].mxu0
  %v2690 = vadd.f32 %v2257, %v2689
  %v2691 = vpop.f32.mrb[0].mxu0
  %2692 = vmatprep.mubr.bf16.mxu0 0
  %2693 = vmatmul.mubr.bf16.gmra.mrb[0].mxu0 %v1994
  %v2694 = vpop.f32.mrb[0].mxu0
  %v2695 = vadd.f32 %v2262, %v2694
  %v2696 = vpop.f32.mrb[0].mxu0
  %v2697 = vpop.f32.mrb[0].mxu0
  %v2698 = vadd.f32 %v2265, %v2697
  %v2699 = vpop.f32.mrb[0].mxu0
  %2700 = vmatprep.mubr.bf16.mxu0 0
  %2701 = vmatmul.mubr.bf16.gmra.mrb[0].mxu0 %v1997
  %v2702 = vpop.f32.mrb[0].mxu0
  %v2703 = vadd.f32 %v2270, %v2702
  %v2704 = vpop.f32.mrb[0].mxu0
  %v2705 = vpop.f32.mrb[0].mxu0
  %v2706 = vadd.f32 %v2273, %v2705
  %v2707 = vpop.f32.mrb[0].mxu0
  %2708 = vmatprep.mubr.bf16.mxu0 0
  %2709 = vmatmul.mubr.bf16.gmra.mrb[0].mxu0 %v2000
  %v2710 = vpop.f32.mrb[0].mxu0
  %v2711 = vadd.f32 %v2278, %v2710
  %v2712 = vpop.f32.mrb[0].mxu0
  %v2713 = vpop.f32.mrb[0].mxu0
  %v2714 = vadd.f32 %v2281, %v2713
  %v2715 = vpop.f32.mrb[0].mxu0
  %2716 = vmatprep.mubr.bf16.mxu0 0
  %2717 = vmatmul.mubr.bf16.gmra.mrb[0].mxu0 %v2003
  %v2718 = vpop.f32.mrb[0].mxu0
  %v2719 = vadd.f32 %v2286, %v2718
  %v2720 = vpop.f32.mrb[0].mxu0
  %v2721 = vpop.f32.mrb[0].mxu0
  %v2722 = vadd.f32 %v2289, %v2721
  %v2723 = vpop.f32.mrb[0].mxu0
  %2724 = vmatprep.mubr.bf16.mxu0 0
  %2725 = vmatmul.mubr.bf16.gmra.mrb[0].mxu0 %v2006
  %v2726 = vpop.f32.mrb[0].mxu0
  %v2727 = vadd.f32 %v2294, %v2726
  %v2728 = vpop.f32.mrb[0].mxu0
  %v2729 = vpop.f32.mrb[0].mxu0
  %v2730 = vadd.f32 %v2297, %v2729
  %v2731 = vpop.f32.mrb[0].mxu0
  %2732 = vmatprep.mubr.bf16.mxu0 0
  %2733 = vmatmul.mubr.bf16.gmra.mrb[0].mxu0 %v2009
  %v2734 = vpop.f32.mrb[0].mxu0
  %v2735 = vadd.f32 %v2302, %v2734
  %v2736 = vpop.f32.mrb[0].mxu0
  %v2737 = vpop.f32.mrb[0].mxu0
  %v2738 = vadd.f32 %v2305, %v2737
  %v2739 = vpop.f32.mrb[0].mxu0
  %2740 = vmatprep.mubr.bf16.mxu0 0
  %2741 = vmatmul.mubr.bf16.gmra.mrb[0].mxu0 %v2012
  %v2742 = vpop.f32.mrb[0].mxu0
  %v2743 = vadd.f32 %v2310, %v2742
  %v2744 = vpop.f32.mrb[0].mxu0
  %v2745 = vpop.f32.mrb[0].mxu0
  %v2746 = vadd.f32 %v2313, %v2745
  %v2747 = vpop.f32.mrb[0].mxu0
  %2748 = vmatprep.mubr.bf16.mxu0 0
  %2749 = vmatmul.mubr.bf16.gmra.mrb[0].mxu0 %v2015
  %v2750 = vpop.f32.mrb[0].mxu0
  %v2751 = vadd.f32 %v2318, %v2750
  %v2752 = vpop.f32.mrb[0].mxu0
  %v2753 = vpop.f32.mrb[0].mxu0
  %v2754 = vadd.f32 %v2321, %v2753
  %v2755 = vpop.f32.mrb[0].mxu0
  %2756 = vmatprep.mubr.bf16.mxu0 0
  %2757 = vmatmul.mubr.bf16.gmra.mrb[0].mxu0 %v2018
  %v2758 = vpop.f32.mrb[0].mxu0
  %v2759 = vadd.f32 %v2326, %v2758
  %v2760 = vpop.f32.mrb[0].mxu0
  %v2761 = vpop.f32.mrb[0].mxu0
  %v2762 = vadd.f32 %v2329, %v2761
  %v2763 = vpop.f32.mrb[0].mxu0
  %2764 = vmatprep.mubr.bf16.mxu0 0
  %2765 = vmatmul.mubr.bf16.gmra.mrb[0].mxu0 %v2021
  %v2766 = vpop.f32.mrb[0].mxu0
  %v2767 = vadd.f32 %v2334, %v2766
  %v2768 = vpop.f32.mrb[0].mxu0
  %v2769 = vpop.f32.mrb[0].mxu0
  %v2770 = vadd.f32 %v2337, %v2769
  %v2771 = vpop.f32.mrb[0].mxu0
  %2772 = vmatprep.mubr.bf16.mxu0 0
  %2773 = vmatmul.mubr.bf16.gmra.mrb[0].mxu0 %v2024
  %v2774 = vpop.f32.mrb[0].mxu0
  %v2775 = vadd.f32 %v2342, %v2774
  %v2776 = vpop.f32.mrb[0].mxu0
  %v2777 = vpop.f32.mrb[0].mxu0
  %v2778 = vadd.f32 %v2345, %v2777
  %v2779 = vpop.f32.mrb[0].mxu0
  %2780 = vmatprep.mubr.bf16.mxu0 0
  %2781 = vmatmul.mubr.bf16.gmra.mrb[0].mxu0 %v2027
  %v2782 = vpop.f32.mrb[0].mxu0
  %v2783 = vadd.f32 %v2350, %v2782
  %v2784 = vpop.f32.mrb[0].mxu0
  %v2785 = vpop.f32.mrb[0].mxu0
  %v2786 = vadd.f32 %v2353, %v2785
  %v2787 = vpop.f32.mrb[0].mxu0
  %2788 = vmatprep.mubr.bf16.mxu0 0
  %2789 = vmatmul.mubr.bf16.gmra.mrb[0].mxu0 %v2030
  %v2790 = vpop.f32.mrb[0].mxu0
  %v2791 = vadd.f32 %v2358, %v2790
  %v2792 = vpop.f32.mrb[0].mxu0
  %v2793 = vpop.f32.mrb[0].mxu0
  %v2794 = vadd.f32 %v2361, %v2793
  %v2795 = vpop.f32.mrb[0].mxu0
  %2796 = vmatprep.mubr.bf16.mxu0 0
  %2797 = vmatmul.mubr.bf16.gmra.mrb[0].mxu0 %v2033
  %v2798 = vpop.f32.mrb[0].mxu0
  %v2799 = vadd.f32 %v2366, %v2798
  %v2800 = vpop.f32.mrb[0].mxu0
  %v2801 = vpop.f32.mrb[0].mxu0
  %v2802 = vadd.f32 %v2369, %v2801
  %v2803 = vpop.f32.mrb[0].mxu0
  %2804 = vmatprep.mubr.bf16.mxu0 0
  %2805 = vmatmul.mubr.bf16.gmra.mrb[0].mxu0 %v2036
  %v2806 = vpop.f32.mrb[0].mxu0
  %v2807 = vadd.f32 %v2374, %v2806
  %v2808 = vpop.f32.mrb[0].mxu0
  %v2809 = vpop.f32.mrb[0].mxu0
  %v2810 = vadd.f32 %v2377, %v2809
  %v2811 = vpop.f32.mrb[0].mxu0
  %2812 = vmatprep.mubr.bf16.mxu0 0
  %2813 = vmatmul.mubr.bf16.gmra.mrb[0].mxu0 %v2039
  %v2814 = vpop.f32.mrb[0].mxu0
  %v2815 = vadd.f32 %v2382, %v2814
  %v2816 = vpop.f32.mrb[0].mxu0
  %v2817 = vpop.f32.mrb[0].mxu0
  %v2818 = vadd.f32 %v2385, %v2817
  %v2819 = vpop.f32.mrb[0].mxu0
  %2820 = vmatprep.mubr.bf16.mxu0 0
  %2821 = vmatmul.mubr.bf16.gmra.mrb[0].mxu0 %v2042
  %v2822 = vpop.f32.mrb[0].mxu0
  %v2823 = vadd.f32 %v2390, %v2822
  %v2824 = vpop.f32.mrb[0].mxu0
  %v2825 = vpop.f32.mrb[0].mxu0
  %v2826 = vadd.f32 %v2393, %v2825
  %v2827 = vpop.f32.mrb[0].mxu0
  %2828 = vmatprep.mubr.bf16.mxu0 0
  %2829 = vmatmul.mubr.bf16.gmra.mrb[0].mxu0 %v2045
  %v2830 = vpop.f32.mrb[0].mxu0
  %v2831 = vadd.f32 %v2398, %v2830
  %v2832 = vpop.f32.mrb[0].mxu0
  %v2833 = vpop.f32.mrb[0].mxu0
  %v2834 = vadd.f32 %v2401, %v2833
  %v2835 = vpop.f32.mrb[0].mxu0
  %2836 = vmatprep.mubr.bf16.mxu0 0
  %2837 = vmatmul.mubr.bf16.gmra.mrb[0].mxu0 %v2048
  %v2838 = vpop.f32.mrb[0].mxu0
  %v2839 = vadd.f32 %v2406, %v2838
  %v2840 = vpop.f32.mrb[0].mxu0
  %v2841 = vpop.f32.mrb[0].mxu0
  %v2842 = vadd.f32 %v2409, %v2841
  %v2843 = vpop.f32.mrb[0].mxu0
  %2844 = vmatprep.mubr.bf16.mxu0 0
  %2845 = vmatmul.mubr.bf16.gmra.mrb[0].mxu0 %v2051
  %v2846 = vpop.f32.mrb[0].mxu0
  %v2847 = vadd.f32 %v2414, %v2846
  %v2848 = vpop.f32.mrb[0].mxu0
  %v2849 = vpop.f32.mrb[0].mxu0
  %v2850 = vadd.f32 %v2417, %v2849
  %v2851 = vpop.f32.mrb[0].mxu0
  %2852 = vmatprep.mubr.bf16.mxu0 0
  %2853 = vmatmul.mubr.bf16.gmra.mrb[0].mxu0 %v2054
  %v2854 = vpop.f32.mrb[0].mxu0
  %v2855 = vadd.f32 %v2422, %v2854
  %v2856 = vpop.f32.mrb[0].mxu0
  %v2857 = vpop.f32.mrb[0].mxu0
  %v2858 = vadd.f32 %v2425, %v2857
  %v2859 = vpop.f32.mrb[0].mxu0
  %2860 = vmatprep.mubr.bf16.mxu0 0
  %2861 = vmatmul.mubr.bf16.gmra.mrb[0].mxu0 %v2057
  %v2862 = vpop.f32.mrb[0].mxu0
  %v2863 = vadd.f32 %v2430, %v2862
  %v2864 = vpop.f32.mrb[0].mxu0
  %v2865 = vpop.f32.mrb[0].mxu0
  %v2866 = vadd.f32 %v2433, %v2865
  %v2867 = vpop.f32.mrb[0].mxu0
  %2868 = vmatprep.mubr.bf16.mxu0 0
  %2869 = vmatmul.mubr.bf16.gmra.mrb[0].mxu0 %v2060
  %v2870 = vpop.f32.mrb[0].mxu0
  %v2871 = vadd.f32 %v2438, %v2870
  %v2872 = vpop.f32.mrb[0].mxu0
  %v2873 = vpop.f32.mrb[0].mxu0
  %v2874 = vadd.f32 %v2441, %v2873
  %v2875 = vpop.f32.mrb[0].mxu0
  %2876 = vmatprep.mubr.bf16.mxu0 0
  %2877 = vmatmul.mubr.bf16.gmra.mrb[0].mxu0 %v2063
  %v2878 = vpop.f32.mrb[0].mxu0
  %v2879 = vadd.f32 %v2446, %v2878
  %v2880 = vpop.f32.mrb[0].mxu0
  %v2881 = vpop.f32.mrb[0].mxu0
  %v2882 = vadd.f32 %v2449, %v2881
  %v2883 = vpop.f32.mrb[0].mxu0
  %2884 = vmatprep.mubr.bf16.mxu0 0
  %2885 = vmatmul.mubr.bf16.gmra.mrb[0].mxu0 %v2066
  %v2886 = vpop.f32.mrb[0].mxu0
  %v2887 = vadd.f32 %v2454, %v2886
  %v2888 = vpop.f32.mrb[0].mxu0
  %v2889 = vpop.f32.mrb[0].mxu0
  %v2890 = vadd.f32 %v2457, %v2889
  %v2891 = vpop.f32.mrb[0].mxu0
  %2892 = vmatprep.mubr.bf16.mxu0 0
  %2893 = vmatmul.mubr.bf16.gmra.mrb[0].mxu0 %v2069
  %v2894 = vpop.f32.mrb[0].mxu0
  %v2895 = vadd.f32 %v2462, %v2894
  %v2896 = vpop.f32.mrb[0].mxu0
  %v2897 = vpop.f32.mrb[0].mxu0
  %v2898 = vadd.f32 %v2465, %v2897
  %v2899 = vpop.f32.mrb[0].mxu0
  %2900 = vmatprep.mubr.bf16.mxu0 0
  %2901 = vmatmul.mubr.bf16.gmra.mrb[0].mxu0 %v2072
  %v2902 = vpop.f32.mrb[0].mxu0
  %v2903 = vadd.f32 %v2470, %v2902
  %v2904 = vpop.f32.mrb[0].mxu0
  %v2905 = vpop.f32.mrb[0].mxu0
  %v2906 = vadd.f32 %v2473, %v2905
  %v2907 = vpop.f32.mrb[0].mxu0
  %2908 = vmatprep.mubr.bf16.mxu0 0
  %2909 = vmatmul.mubr.bf16.gmra.mrb[0].mxu0 %v2075
  %v2910 = vpop.f32.mrb[0].mxu0
  %v2911 = vadd.f32 %v2478, %v2910
  %v2912 = vpop.f32.mrb[0].mxu0
  %v2913 = vpop.f32.mrb[0].mxu0
  %v2914 = vadd.f32 %v2481, %v2913
  %v2915 = vpop.f32.mrb[0].mxu0
  %2916 = vmatprep.mubr.bf16.mxu0 0
  %2917 = vmatmul.mubr.bf16.gmra.mrb[0].mxu0 %v2078
  %v2918 = vpop.f32.mrb[0].mxu0
  %v2919 = vadd.f32 %v2486, %v2918
  %v2920 = vpop.f32.mrb[0].mxu0
  %v2921 = vpop.f32.mrb[0].mxu0
  %v2922 = vadd.f32 %v2489, %v2921
  %v2923 = vpop.f32.mrb[0].mxu0
  %2924 = vmatprep.mubr.bf16.mxu0 0
  %2925 = vmatmul.mubr.bf16.gmra.mrb[0].mxu0 %v2081
  %v2926 = vpop.f32.mrb[0].mxu0
  %v2927 = vadd.f32 %v2494, %v2926
  %v2928 = vpop.f32.mrb[0].mxu0
  %v2929 = vpop.f32.mrb[0].mxu0
  %v2930 = vadd.f32 %v2497, %v2929
  %v2931 = vpop.f32.mrb[0].mxu0
  %2932 = vmatprep.mubr.bf16.mxu0 0
  %2933 = vmatmul.mubr.bf16.gmra.mrb[0].mxu0 %v2084
  %v2934 = vpop.f32.mrb[0].mxu0
  %v2935 = vadd.f32 %v2502, %v2934
  %v2936 = vpop.f32.mrb[0].mxu0
  %v2937 = vpop.f32.mrb[0].mxu0
  %v2938 = vadd.f32 %v2505, %v2937
  %v2939 = vpop.f32.mrb[0].mxu0
  %2940 = vmatprep.mubr.bf16.mxu0 0
  %2941 = vmatmul.mubr.bf16.gmra.mrb[0].mxu0 %v2087
  %v2942 = vpop.f32.mrb[0].mxu0
  %v2943 = vadd.f32 %v2510, %v2942
  %v2944 = vpop.f32.mrb[0].mxu0
  %v2945 = vpop.f32.mrb[0].mxu0
  %v2946 = vadd.f32 %v2513, %v2945
  %v2947 = vpop.f32.mrb[0].mxu0
  %2948 = vmatprep.mubr.bf16.mxu0 0
  %2949 = vmatmul.mubr.bf16.gmra.mrb[0].mxu0 %v2090
  %v2950 = vpop.f32.mrb[0].mxu0
  %v2951 = vadd.f32 %v2518, %v2950
  %v2952 = vpop.f32.mrb[0].mxu0
  %v2953 = vpop.f32.mrb[0].mxu0
  %v2954 = vadd.f32 %v2521, %v2953
  %v2955 = vpop.f32.mrb[0].mxu0
  %2956 = vmatprep.mubr.bf16.mxu0 0
  %2957 = vmatmul.mubr.bf16.gmra.mrb[0].mxu0 %v2093
  %v2958 = vpop.f32.mrb[0].mxu0
  %v2959 = vadd.f32 %v2526, %v2958
  %v2960 = vpop.f32.mrb[0].mxu0
  %v2961 = vpop.f32.mrb[0].mxu0
  %v2962 = vadd.f32 %v2529, %v2961
  %v2963 = vpop.f32.mrb[0].mxu0
  %2964 = vdwg.mxu0
  %2965 = vst.msk [vmem:[#allocation2] sm:$0xff] %vm199, %v2567
  %2966 = vst.msk [vmem:[#allocation2 + $0x8] sm:$0xff] %vm199, %v2570
  %2967 = vst.msk [vmem:[#allocation2 + $0x10] sm:$0xff] %vm199, %v2575
  %2968 = vst.msk [vmem:[#allocation2 + $0x18] sm:$0xff] %vm199, %v2578
  %2969 = vst.msk [vmem:[#allocation2 + $0x20] sm:$0xff] %vm199, %v2583
  %2970 = vst.msk [vmem:[#allocation2 + $0x28] sm:$0xff] %vm199, %v2586
  %2971 = vst.msk [vmem:[#allocation2 + $0x30] sm:$0xff] %vm199, %v2591
  %2972 = vst.msk [vmem:[#allocation2 + $0x38] sm:$0xff] %vm199, %v2594
  %2973 = vst.msk [vmem:[#allocation2 + $0x40] sm:$0xff] %vm199, %v2599
  %2974 = vst.msk [vmem:[#allocation2 + $0x48] sm:$0xff] %vm199, %v2602
  %2975 = vst.msk [vmem:[#allocation2 + $0x50] sm:$0xff] %vm199, %v2607
  %2976 = vst.msk [vmem:[#allocation2 + $0x58] sm:$0xff] %vm199, %v2610
  %2977 = vst.msk [vmem:[#allocation2 + $0x60] sm:$0xff] %vm199, %v2615
  %2978 = vst.msk [vmem:[#allocation2 + $0x68] sm:$0xff] %vm199, %v2618
  %2979 = vst.msk [vmem:[#allocation2 + $0x70] sm:$0xff] %vm199, %v2623
  %2980 = vst.msk [vmem:[#allocation2 + $0x78] sm:$0xff] %vm199, %v2626
  %2981 = vst.msk [vmem:[#allocation2 + $0x80] sm:$0xff] %vm199, %v2631
  %2982 = vst.msk [vmem:[#allocation2 + $0x88] sm:$0xff] %vm199, %v2634
  %2983 = vst.msk [vmem:[#allocation2 + $0x90] sm:$0xff] %vm199, %v2639
  %2984 = vst.msk [vmem:[#allocation2 + $0x98] sm:$0xff] %vm199, %v2642
  %2985 = vst.msk [vmem:[#allocation2 + $0xa0] sm:$0xff] %vm199, %v2647
  %2986 = vst.msk [vmem:[#allocation2 + $0xa8] sm:$0xff] %vm199, %v2650
  %2987 = vst.msk [vmem:[#allocation2 + $0xb0] sm:$0xff] %vm199, %v2655
  %2988 = vst.msk [vmem:[#allocation2 + $0xb8] sm:$0xff] %vm199, %v2658
  %2989 = vst.msk [vmem:[#allocation2 + $0xc0] sm:$0xff] %vm199, %v2663
  %2990 = vst.msk [vmem:[#allocation2 + $0xc8] sm:$0xff] %vm199, %v2666
  %2991 = vst.msk [vmem:[#allocation2 + $0xd0] sm:$0xff] %vm199, %v2671
  %2992 = vst.msk [vmem:[#allocation2 + $0xd8] sm:$0xff] %vm199, %v2674
  %2993 = vst.msk [vmem:[#allocation2 + $0xe0] sm:$0xff] %vm199, %v2679
  %2994 = vst.msk [vmem:[#allocation2 + $0xe8] sm:$0xff] %vm199, %v2682
  %2995 = vst.msk [vmem:[#allocation2 + $0xf0] sm:$0xff] %vm199, %v2687
  %2996 = vst.msk [vmem:[#allocation2 + $0xf8] sm:$0xff] %vm199, %v2690
  %2997 = vst.msk [vmem:[#allocation2 + $0x100] sm:$0xff] %vm199, %v2695
  %2998 = vst.msk [vmem:[#allocation2 + $0x108] sm:$0xff] %vm199, %v2698
  %2999 = vst.msk [vmem:[#allocation2 + $0x110] sm:$0xff] %vm199, %v2703
  %3000 = vst.msk [vmem:[#allocation2 + $0x118] sm:$0xff] %vm199, %v2706
  %3001 = vst.msk [vmem:[#allocation2 + $0x120] sm:$0xff] %vm199, %v2711
  %3002 = vst.msk [vmem:[#allocation2 + $0x128] sm:$0xff] %vm199, %v2714
  %3003 = vst.msk [vmem:[#allocation2 + $0x130] sm:$0xff] %vm199, %v2719
  %3004 = vst.msk [vmem:[#allocation2 + $0x138] sm:$0xff] %vm199, %v2722
  %3005 = vst.msk [vmem:[#allocation2 + $0x140] sm:$0xff] %vm199, %v2727
  %3006 = vst.msk [vmem:[#allocation2 + $0x148] sm:$0xff] %vm199, %v2730
  %3007 = vst.msk [vmem:[#allocation2 + $0x150] sm:$0xff] %vm199, %v2735
  %3008 = vst.msk [vmem:[#allocation2 + $0x158] sm:$0xff] %vm199, %v2738
  %3009 = vst.msk [vmem:[#allocation2 + $0x160] sm:$0xff] %vm199, %v2743
  %3010 = vst.msk [vmem:[#allocation2 + $0x168] sm:$0xff] %vm199, %v2746
  %3011 = vst.msk [vmem:[#allocation2 + $0x170] sm:$0xff] %vm199, %v2751
  %3012 = vst.msk [vmem:[#allocation2 + $0x178] sm:$0xff] %vm199, %v2754
  %3013 = vst.msk [vmem:[#allocation2 + $0x180] sm:$0xff] %vm199, %v2759
  %3014 = vst.msk [vmem:[#allocation2 + $0x188] sm:$0xff] %vm199, %v2762
  %3015 = vst.msk [vmem:[#allocation2 + $0x190] sm:$0xff] %vm199, %v2767
  %3016 = vst.msk [vmem:[#allocation2 + $0x198] sm:$0xff] %vm199, %v2770
  %3017 = vst.msk [vmem:[#allocation2 + $0x1a0] sm:$0xff] %vm199, %v2775
  %3018 = vst.msk [vmem:[#allocation2 + $0x1a8] sm:$0xff] %vm199, %v2778
  %3019 = vst.msk [vmem:[#allocation2 + $0x1b0] sm:$0xff] %vm199, %v2783
  %3020 = vst.msk [vmem:[#allocation2 + $0x1b8] sm:$0xff] %vm199, %v2786
  %3021 = vst.msk [vmem:[#allocation2 + $0x1c0] sm:$0xff] %vm199, %v2791
  %3022 = vst.msk [vmem:[#allocation2 + $0x1c8] sm:$0xff] %vm199, %v2794
  %3023 = vst.msk [vmem:[#allocation2 + $0x1d0] sm:$0xff] %vm199, %v2799
  %3024 = vst.msk [vmem:[#allocation2 + $0x1d8] sm:$0xff] %vm199, %v2802
  %3025 = vst.msk [vmem:[#allocation2 + $0x1e0] sm:$0xff] %vm199, %v2807
  %3026 = vst.msk [vmem:[#allocation2 + $0x1e8] sm:$0xff] %vm199, %v2810
  %3027 = vst.msk [vmem:[#allocation2 + $0x1f0] sm:$0xff] %vm199, %v2815
  %3028 = vst.msk [vmem:[#allocation2 + $0x1f8] sm:$0xff] %vm199, %v2818
  %3029 = vst.msk [vmem:[#allocation2 + $0x200] sm:$0xff] %vm199, %v2823
  %3030 = vst.msk [vmem:[#allocation2 + $0x208] sm:$0xff] %vm199, %v2826
  %3031 = vst.msk [vmem:[#allocation2 + $0x210] sm:$0xff] %vm199, %v2831
  %3032 = vst.msk [vmem:[#allocation2 + $0x218] sm:$0xff] %vm199, %v2834
  %3033 = vst.msk [vmem:[#allocation2 + $0x220] sm:$0xff] %vm199, %v2839
  %3034 = vst.msk [vmem:[#allocation2 + $0x228] sm:$0xff] %vm199, %v2842
  %3035 = vst.msk [vmem:[#allocation2 + $0x230] sm:$0xff] %vm199, %v2847
  %3036 = vst.msk [vmem:[#allocation2 + $0x238] sm:$0xff] %vm199, %v2850
  %3037 = vst.msk [vmem:[#allocation2 + $0x240] sm:$0xff] %vm199, %v2855
  %3038 = vst.msk [vmem:[#allocation2 + $0x248] sm:$0xff] %vm199, %v2858
  %3039 = vst.msk [vmem:[#allocation2 + $0x250] sm:$0xff] %vm199, %v2863
  %3040 = vst.msk [vmem:[#allocation2 + $0x258] sm:$0xff] %vm199, %v2866
  %3041 = vst.msk [vmem:[#allocation2 + $0x260] sm:$0xff] %vm199, %v2871
  %3042 = vst.msk [vmem:[#allocation2 + $0x268] sm:$0xff] %vm199, %v2874
  %3043 = vst.msk [vmem:[#allocation2 + $0x270] sm:$0xff] %vm199, %v2879
  %3044 = vst.msk [vmem:[#allocation2 + $0x278] sm:$0xff] %vm199, %v2882
  %3045 = vst.msk [vmem:[#allocation2 + $0x280] sm:$0xff] %vm199, %v2887
  %3046 = vst.msk [vmem:[#allocation2 + $0x288] sm:$0xff] %vm199, %v2890
  %3047 = vst.msk [vmem:[#allocation2 + $0x290] sm:$0xff] %vm199, %v2895
  %3048 = vst.msk [vmem:[#allocation2 + $0x298] sm:$0xff] %vm199, %v2898
  %3049 = vst.msk [vmem:[#allocation2 + $0x2a0] sm:$0xff] %vm199, %v2903
  %3050 = vst.msk [vmem:[#allocation2 + $0x2a8] sm:$0xff] %vm199, %v2906
  %3051 = vst.msk [vmem:[#allocation2 + $0x2b0] sm:$0xff] %vm199, %v2911
  %3052 = vst.msk [vmem:[#allocation2 + $0x2b8] sm:$0xff] %vm199, %v2914
  %3053 = vst.msk [vmem:[#allocation2 + $0x2c0] sm:$0xff] %vm199, %v2919
  %3054 = vst.msk [vmem:[#allocation2 + $0x2c8] sm:$0xff] %vm199, %v2922
  %3055 = vst.msk [vmem:[#allocation2 + $0x2d0] sm:$0xff] %vm199, %v2927
  %3056 = vst.msk [vmem:[#allocation2 + $0x2d8] sm:$0xff] %vm199, %v2930
  %3057 = vst.msk [vmem:[#allocation2 + $0x2e0] sm:$0xff] %vm199, %v2935
  %3058 = vst.msk [vmem:[#allocation2 + $0x2e8] sm:$0xff] %vm199, %v2938
  %3059 = vst.msk [vmem:[#allocation2 + $0x2f0] sm:$0xff] %vm199, %v2943
  %3060 = vst.msk [vmem:[#allocation2 + $0x2f8] sm:$0xff] %vm199, %v2946
  %3061 = vst.msk [vmem:[#allocation2 + $0x300] sm:$0xff] %vm199, %v2951
  %3062 = vst.msk [vmem:[#allocation2 + $0x308] sm:$0xff] %vm199, %v2954
  %3063 = vst.msk [vmem:[#allocation2 + $0x310] sm:$0xff] %vm199, %v2959
  %3064 = vst.msk [vmem:[#allocation2 + $0x318] sm:$0xff] %vm199, %v2962
  %v3065 = vld [vmem:[#allocation2] sm:$0xff]
  %v3066 = vld [vmem:[#allocation2 + $0x8] sm:$0xff]
  %v3067 = vld [vmem:[#allocation2 + $0x10] sm:$0xff]
  %v3068 = vld [vmem:[#allocation2 + $0x18] sm:$0xff]
  %v3069 = vld [vmem:[#allocation2 + $0x20] sm:$0xff]
  %v3070 = vld [vmem:[#allocation2 + $0x28] sm:$0xff]
  %v3071 = vld [vmem:[#allocation2 + $0x30] sm:$0x3]
  %v3072 = vpack.c.bf16 %v3066, %v3065
  %v3073 = vpack.c.bf16 %v3068, %v3067
  %v3074 = vpack.c.bf16 %v3070, %v3069
  %v3075 = vpack.c.bf16 %v3071, %v3071
  %v3076 = vld [vmem:[%s4] sm:$0xf]
  %v3077 = vld [vmem:[%s4 + $0x4] sm:$0xf]
  %v3078 = vld [vmem:[#allocation2 + $0x32] sm:$0xff]
  %v3079 = vld [vmem:[#allocation2 + $0x3a] sm:$0xff]
  %v3080 = vld [vmem:[#allocation2 + $0x42] sm:$0xff]
  %v3081 = vld [vmem:[#allocation2 + $0x4a] sm:$0xff]
  %v3082 = vld [vmem:[#allocation2 + $0x52] sm:$0xff]
  %v3083 = vld [vmem:[#allocation2 + $0x5a] sm:$0xff]
  %v3084 = vld [vmem:[#allocation2 + $0x62] sm:$0x3]
  %v3085 = vpack.c.bf16 %v3079, %v3078
  %v3086 = vpack.c.bf16 %v3081, %v3080
  %v3087 = vpack.c.bf16 %v3083, %v3082
  %v3088 = vpack.c.bf16 %v3084, %v3084
  %v3089 = vld [vmem:[%s4 + $0x8] sm:$0xf]
  %v3090 = vld [vmem:[%s4 + $0xc] sm:$0xf]
  %v3093 = vunpack.c.l.b16 %v3089
  %v3094 = vunpack.c.l.b16 %v3090
  %v3095 = vpack.c.b16 %v3094, %v3093
  %v3098 = vsel %vm199, %v3085, 0
  %v3101 = vsel %vm199, %v3086, 0
  %v3104 = vsel %vm199, %v3087, 0
  %v3107 = vsel %vm199, %v3088, 0
  %3109 = vmatprep.subr.bf16.mxu0 0
  %3110 = vmatpush1.bf16.msra.mxu0 %v3095
  %3111 = vmatprep.subr.bf16.mxu0 0
  %3112 = vmatpush1.bf16.msra.mxu0 0
  %3113 = vmatprep.subr.bf16.mxu0 0
  %3114 = vmatpush1.bf16.msra.mxu0 0
  %3115 = vmatprep.subr.bf16.mxu0 0
  %3116 = vmatpush1.bf16.msra.mxu0 0
  %3117 = vmatprep.subr.bf16.mxu0 0
  %3118 = vmatpush1.bf16.msra.mxu0 0
  %3119 = vmatprep.subr.bf16.mxu0 0
  %3120 = vmatpush1.bf16.msra.mxu0 0
  %3121 = vmatprep.subr.bf16.mxu0 0
  %3122 = vmatpush1.bf16.msra.mxu0 0
  %3123 = vmatprep.subr.bf16.mxu0 0
  %3124 = vmatpush1.bf16.msra.mxu0 0
  %3125 = vmatprep.subr.bf16.mxu0 0
  %3126 = vmatpush1.bf16.msra.mxu0 0
  %3127 = vmatprep.subr.bf16.mxu0 0
  %3128 = vmatpush1.bf16.msra.mxu0 0
  %3129 = vmatprep.subr.bf16.mxu0 0
  %3130 = vmatpush1.bf16.msra.mxu0 0
  %3131 = vmatprep.subr.bf16.mxu0 0
  %3132 = vmatpush1.bf16.msra.mxu0 0
  %3133 = vmatprep.subr.bf16.mxu0 0
  %3134 = vmatpush1.bf16.msra.mxu0 0
  %3135 = vmatprep.subr.bf16.mxu0 0
  %3136 = vmatpush1.bf16.msra.mxu0 0
  %3137 = vmatprep.subr.bf16.mxu0 0
  %3138 = vmatpush1.bf16.msra.mxu0 0
  %3139 = vmatprep.subr.bf16.mxu0 0
  %3140 = vmatpush1.bf16.msra.mxu0 0
  %3141 = vmatprep.mubr.bf16.mxu0 0
  %3142 = vmatmul.mubr.bf16.gmra.mrb[0].mxu0 %v3098
  %v3143 = vpop.f32.mrb[0].mxu0
  %v3144 = vadd.f32 0.0, %v3143
  %v3145 = vpop.f32.mrb[0].mxu0
  %v3146 = vpop.f32.mrb[0].mxu0
  %v3147 = vadd.f32 0.0, %v3146
  %v3148 = vpop.f32.mrb[0].mxu0
  %3149 = vmatprep.mubr.bf16.mxu0 0
  %3150 = vmatmul.mubr.bf16.gmra.mrb[0].mxu0 %v3101
  %v3151 = vpop.f32.mrb[0].mxu0
  %v3152 = vadd.f32 0.0, %v3151
  %v3153 = vpop.f32.mrb[0].mxu0
  %v3154 = vpop.f32.mrb[0].mxu0
  %v3155 = vadd.f32 0.0, %v3154
  %v3156 = vpop.f32.mrb[0].mxu0
  %3157 = vmatprep.mubr.bf16.mxu0 0
  %3158 = vmatmul.mubr.bf16.gmra.mrb[0].mxu0 %v3104
  %v3159 = vpop.f32.mrb[0].mxu0
  %v3160 = vadd.f32 0.0, %v3159
  %v3161 = vpop.f32.mrb[0].mxu0
  %v3162 = vpop.f32.mrb[0].mxu0
  %v3163 = vadd.f32 0.0, %v3162
  %v3164 = vpop.f32.mrb[0].mxu0
  %3165 = vmatprep.mubr.bf16.mxu0 0
  %3166 = vmatmul.mubr.bf16.gmra.mrb[0].mxu0 %v3107
  %v3167 = vpop.f32.mrb[0].mxu0
  %v3168 = vadd.f32 0.0, %v3167
  %v3169 = vpop.f32.mrb[0].mxu0
  %v3170 = vpop.f32.mrb[0].mxu0
  %v3171 = vpop.f32.mrb[0].mxu0
  %3172 = vdwg.mxu0
  %v3175 = vunpack.c.l.b16 %v3076
  %v3176 = vunpack.c.l.b16 %v3077
  %v3177 = vpack.c.b16 %v3176, %v3175
  %v3180 = vsel %vm199, %v3072, 0
  %v3183 = vsel %vm199, %v3073, 0
  %v3186 = vsel %vm199, %v3074, 0
  %v3189 = vsel %vm199, %v3075, 0
  %3191 = vmatprep.subr.bf16.mxu0 0
  %3192 = vmatpush1.bf16.msra.mxu0 %v3177
  %3193 = vmatprep.subr.bf16.mxu0 0
  %3194 = vmatpush1.bf16.msra.mxu0 0
  %3195 = vmatprep.subr.bf16.mxu0 0
  %3196 = vmatpush1.bf16.msra.mxu0 0
  %3197 = vmatprep.subr.bf16.mxu0 0
  %3198 = vmatpush1.bf16.msra.mxu0 0
  %3199 = vmatprep.subr.bf16.mxu0 0
  %3200 = vmatpush1.bf16.msra.mxu0 0
  %3201 = vmatprep.subr.bf16.mxu0 0
  %3202 = vmatpush1.bf16.msra.mxu0 0
  %3203 = vmatprep.subr.bf16.mxu0 0
  %3204 = vmatpush1.bf16.msra.mxu0 0
  %3205 = vmatprep.subr.bf16.mxu0 0
  %3206 = vmatpush1.bf16.msra.mxu0 0
  %3207 = vmatprep.subr.bf16.mxu0 0
  %3208 = vmatpush1.bf16.msra.mxu0 0
  %3209 = vmatprep.subr.bf16.mxu0 0
  %3210 = vmatpush1.bf16.msra.mxu0 0
  %3211 = vmatprep.subr.bf16.mxu0 0
  %3212 = vmatpush1.bf16.msra.mxu0 0
  %3213 = vmatprep.subr.bf16.mxu0 0
  %3214 = vmatpush1.bf16.msra.mxu0 0
  %3215 = vmatprep.subr.bf16.mxu0 0
  %3216 = vmatpush1.bf16.msra.mxu0 0
  %3217 = vmatprep.subr.bf16.mxu0 0
  %3218 = vmatpush1.bf16.msra.mxu0 0
  %3219 = vmatprep.subr.bf16.mxu0 0
  %3220 = vmatpush1.bf16.msra.mxu0 0
  %3221 = vmatprep.subr.bf16.mxu0 0
  %3222 = vmatpush1.bf16.msra.mxu0 0
  %3223 = vmatprep.mubr.bf16.mxu0 0
  %3224 = vmatmul.mubr.bf16.gmra.mrb[0].mxu0 %v3180
  %v3225 = vpop.f32.mrb[0].mxu0
  %v3226 = vadd.f32 %v3144, %v3225
  %v3227 = vpop.f32.mrb[0].mxu0
  %v3228 = vpop.f32.mrb[0].mxu0
  %v3229 = vadd.f32 %v3147, %v3228
  %v3230 = vpop.f32.mrb[0].mxu0
  %3231 = vmatprep.mubr.bf16.mxu0 0
  %3232 = vmatmul.mubr.bf16.gmra.mrb[0].mxu0 %v3183
  %v3233 = vpop.f32.mrb[0].mxu0
  %v3234 = vadd.f32 %v3152, %v3233
  %v3235 = vpop.f32.mrb[0].mxu0
  %v3236 = vpop.f32.mrb[0].mxu0
  %v3237 = vadd.f32 %v3155, %v3236
  %v3238 = vpop.f32.mrb[0].mxu0
  %3239 = vmatprep.mubr.bf16.mxu0 0
  %3240 = vmatmul.mubr.bf16.gmra.mrb[0].mxu0 %v3186
  %v3241 = vpop.f32.mrb[0].mxu0
  %v3242 = vadd.f32 %v3160, %v3241
  %v3243 = vpop.f32.mrb[0].mxu0
  %v3244 = vpop.f32.mrb[0].mxu0
  %v3245 = vadd.f32 %v3163, %v3244
  %v3246 = vpop.f32.mrb[0].mxu0
  %3247 = vmatprep.mubr.bf16.mxu0 0
  %3248 = vmatmul.mubr.bf16.gmra.mrb[0].mxu0 %v3189
  %v3249 = vpop.f32.mrb[0].mxu0
  %v3250 = vadd.f32 %v3168, %v3249
  %v3251 = vpop.f32.mrb[0].mxu0
  %v3252 = vpop.f32.mrb[0].mxu0
  %v3253 = vpop.f32.mrb[0].mxu0
  %3254 = vdwg.mxu0
  %v3255 = vld [vmem:[#allocation2 + $0x64] sm:$0xff]
  %v3256 = vld [vmem:[#allocation2 + $0x6c] sm:$0xff]
  %v3257 = vld [vmem:[#allocation2 + $0x74] sm:$0xff]
  %v3258 = vld [vmem:[#allocation2 + $0x7c] sm:$0xff]
  %v3259 = vld [vmem:[#allocation2 + $0x84] sm:$0xff]
  %v3260 = vld [vmem:[#allocation2 + $0x8c] sm:$0xff]
  %v3261 = vld [vmem:[#allocation2 + $0x94] sm:$0x3]
  %v3262 = vpack.c.bf16 %v3256, %v3255
  %v3263 = vpack.c.bf16 %v3258, %v3257
  %v3264 = vpack.c.bf16 %v3260, %v3259
  %v3265 = vpack.c.bf16 %v3261, %v3261
  %v3266 = vld [vmem:[%s4 + $0x10] sm:$0xf]
  %v3267 = vld [vmem:[%s4 + $0x14] sm:$0xf]
  %v3270 = vunpack.c.l.b16 %v3266
  %v3271 = vunpack.c.l.b16 %v3267
  %v3272 = vpack.c.b16 %v3271, %v3270
  %v3275 = vsel %vm199, %v3262, 0
  %v3278 = vsel %vm199, %v3263, 0
  %v3281 = vsel %vm199, %v3264, 0
  %v3284 = vsel %vm199, %v3265, 0
  %3286 = vmatprep.subr.bf16.mxu0 0
  %3287 = vmatpush1.bf16.msra.mxu0 %v3272
  %3288 = vmatprep.subr.bf16.mxu0 0
  %3289 = vmatpush1.bf16.msra.mxu0 0
  %3290 = vmatprep.subr.bf16.mxu0 0
  %3291 = vmatpush1.bf16.msra.mxu0 0
  %3292 = vmatprep.subr.bf16.mxu0 0
  %3293 = vmatpush1.bf16.msra.mxu0 0
  %3294 = vmatprep.subr.bf16.mxu0 0
  %3295 = vmatpush1.bf16.msra.mxu0 0
  %3296 = vmatprep.subr.bf16.mxu0 0
  %3297 = vmatpush1.bf16.msra.mxu0 0
  %3298 = vmatprep.subr.bf16.mxu0 0
  %3299 = vmatpush1.bf16.msra.mxu0 0
  %3300 = vmatprep.subr.bf16.mxu0 0
  %3301 = vmatpush1.bf16.msra.mxu0 0
  %3302 = vmatprep.subr.bf16.mxu0 0
  %3303 = vmatpush1.bf16.msra.mxu0 0
  %3304 = vmatprep.subr.bf16.mxu0 0
  %3305 = vmatpush1.bf16.msra.mxu0 0
  %3306 = vmatprep.subr.bf16.mxu0 0
  %3307 = vmatpush1.bf16.msra.mxu0 0
  %3308 = vmatprep.subr.bf16.mxu0 0
  %3309 = vmatpush1.bf16.msra.mxu0 0
  %3310 = vmatprep.subr.bf16.mxu0 0
  %3311 = vmatpush1.bf16.msra.mxu0 0
  %3312 = vmatprep.subr.bf16.mxu0 0
  %3313 = vmatpush1.bf16.msra.mxu0 0
  %3314 = vmatprep.subr.bf16.mxu0 0
  %3315 = vmatpush1.bf16.msra.mxu0 0
  %3316 = vmatprep.subr.bf16.mxu0 0
  %3317 = vmatpush1.bf16.msra.mxu0 0
  %3318 = vmatprep.mubr.bf16.mxu0 0
  %3319 = vmatmul.mubr.bf16.gmra.mrb[0].mxu0 %v3275
  %v3320 = vpop.f32.mrb[0].mxu0
  %v3321 = vadd.f32 0.0, %v3320
  %v3322 = vpop.f32.mrb[0].mxu0
  %v3323 = vpop.f32.mrb[0].mxu0
  %v3324 = vadd.f32 0.0, %v3323
  %v3325 = vpop.f32.mrb[0].mxu0
  %3326 = vmatprep.mubr.bf16.mxu0 0
  %3327 = vmatmul.mubr.bf16.gmra.mrb[0].mxu0 %v3278
  %v3328 = vpop.f32.mrb[0].mxu0
  %v3329 = vadd.f32 0.0, %v3328
  %v3330 = vpop.f32.mrb[0].mxu0
  %v3331 = vpop.f32.mrb[0].mxu0
  %v3332 = vadd.f32 0.0, %v3331
  %v3333 = vpop.f32.mrb[0].mxu0
  %3334 = vmatprep.mubr.bf16.mxu0 0
  %3335 = vmatmul.mubr.bf16.gmra.mrb[0].mxu0 %v3281
  %v3336 = vpop.f32.mrb[0].mxu0
  %v3337 = vadd.f32 0.0, %v3336
  %v3338 = vpop.f32.mrb[0].mxu0
  %v3339 = vpop.f32.mrb[0].mxu0
  %v3340 = vadd.f32 0.0, %v3339
  %v3341 = vpop.f32.mrb[0].mxu0
  %3342 = vmatprep.mubr.bf16.mxu0 0
  %3343 = vmatmul.mubr.bf16.gmra.mrb[0].mxu0 %v3284
  %v3344 = vpop.f32.mrb[0].mxu0
  %v3345 = vadd.f32 0.0, %v3344
  %v3346 = vpop.f32.mrb[0].mxu0
  %v3347 = vpop.f32.mrb[0].mxu0
  %v3348 = vpop.f32.mrb[0].mxu0
  %3349 = vdwg.mxu0
  %v3350 = vadd.f32 %v3226, %v3321
  %v3351 = vadd.f32 %v3229, %v3324
  %v3352 = vadd.f32 %v3234, %v3329
  %v3353 = vadd.f32 %v3237, %v3332
  %v3354 = vadd.f32 %v3242, %v3337
  %v3355 = vadd.f32 %v3245, %v3340
  %v3356 = vadd.f32 %v3250, %v3345
  %v3357 = vld [vmem:[#allocation2 + $0x96] sm:$0xff]
  %v3358 = vld [vmem:[#allocation2 + $0x9e] sm:$0xff]
  %v3359 = vld [vmem:[#allocation2 + $0xa6] sm:$0xff]
  %v3360 = vld [vmem:[#allocation2 + $0xae] sm:$0xff]
  %v3361 = vld [vmem:[#allocation2 + $0xb6] sm:$0xff]
  %v3362 = vld [vmem:[#allocation2 + $0xbe] sm:$0xff]
  %v3363 = vld [vmem:[#allocation2 + $0xc6] sm:$0x3]
  %v3364 = vpack.c.bf16 %v3358, %v3357
  %v3365 = vpack.c.bf16 %v3360, %v3359
  %v3366 = vpack.c.bf16 %v3362, %v3361
  %v3367 = vpack.c.bf16 %v3363, %v3363
  %v3368 = vld [vmem:[%s4 + $0x18] sm:$0xf]
  %v3369 = vld [vmem:[%s4 + $0x1c] sm:$0xf]
  %v3372 = vunpack.c.l.b16 %v3368
  %v3373 = vunpack.c.l.b16 %v3369
  %v3374 = vpack.c.b16 %v3373, %v3372
  %v3377 = vsel %vm199, %v3364, 0
  %v3380 = vsel %vm199, %v3365, 0
  %v3383 = vsel %vm199, %v3366, 0
  %v3386 = vsel %vm199, %v3367, 0
  %3388 = vmatprep.subr.bf16.mxu0 0
  %3389 = vmatpush1.bf16.msra.mxu0 %v3374
  %3390 = vmatprep.subr.bf16.mxu0 0
  %3391 = vmatpush1.bf16.msra.mxu0 0
  %3392 = vmatprep.subr.bf16.mxu0 0
  %3393 = vmatpush1.bf16.msra.mxu0 0
  %3394 = vmatprep.subr.bf16.mxu0 0
  %3395 = vmatpush1.bf16.msra.mxu0 0
  %3396 = vmatprep.subr.bf16.mxu0 0
  %3397 = vmatpush1.bf16.msra.mxu0 0
  %3398 = vmatprep.subr.bf16.mxu0 0
  %3399 = vmatpush1.bf16.msra.mxu0 0
  %3400 = vmatprep.subr.bf16.mxu0 0
  %3401 = vmatpush1.bf16.msra.mxu0 0
  %3402 = vmatprep.subr.bf16.mxu0 0
  %3403 = vmatpush1.bf16.msra.mxu0 0
  %3404 = vmatprep.subr.bf16.mxu0 0
  %3405 = vmatpush1.bf16.msra.mxu0 0
  %3406 = vmatprep.subr.bf16.mxu0 0
  %3407 = vmatpush1.bf16.msra.mxu0 0
  %3408 = vmatprep.subr.bf16.mxu0 0
  %3409 = vmatpush1.bf16.msra.mxu0 0
  %3410 = vmatprep.subr.bf16.mxu0 0
  %3411 = vmatpush1.bf16.msra.mxu0 0
  %3412 = vmatprep.subr.bf16.mxu0 0
  %3413 = vmatpush1.bf16.msra.mxu0 0
  %3414 = vmatprep.subr.bf16.mxu0 0
  %3415 = vmatpush1.bf16.msra.mxu0 0
  %3416 = vmatprep.subr.bf16.mxu0 0
  %3417 = vmatpush1.bf16.msra.mxu0 0
  %3418 = vmatprep.subr.bf16.mxu0 0
  %3419 = vmatpush1.bf16.msra.mxu0 0
  %3420 = vmatprep.mubr.bf16.mxu0 0
  %3421 = vmatmul.mubr.bf16.gmra.mrb[0].mxu0 %v3377
  %v3422 = vpop.f32.mrb[0].mxu0
  %v3423 = vadd.f32 0.0, %v3422
  %v3424 = vpop.f32.mrb[0].mxu0
  %v3425 = vpop.f32.mrb[0].mxu0
  %v3426 = vadd.f32 0.0, %v3425
  %v3427 = vpop.f32.mrb[0].mxu0
  %3428 = vmatprep.mubr.bf16.mxu0 0
  %3429 = vmatmul.mubr.bf16.gmra.mrb[0].mxu0 %v3380
  %v3430 = vpop.f32.mrb[0].mxu0
  %v3431 = vadd.f32 0.0, %v3430
  %v3432 = vpop.f32.mrb[0].mxu0
  %v3433 = vpop.f32.mrb[0].mxu0
  %v3434 = vadd.f32 0.0, %v3433
  %v3435 = vpop.f32.mrb[0].mxu0
  %3436 = vmatprep.mubr.bf16.mxu0 0
  %3437 = vmatmul.mubr.bf16.gmra.mrb[0].mxu0 %v3383
  %v3438 = vpop.f32.mrb[0].mxu0
  %v3439 = vadd.f32 0.0, %v3438
  %v3440 = vpop.f32.mrb[0].mxu0
  %v3441 = vpop.f32.mrb[0].mxu0
  %v3442 = vadd.f32 0.0, %v3441
  %v3443 = vpop.f32.mrb[0].mxu0
  %3444 = vmatprep.mubr.bf16.mxu0 0
  %3445 = vmatmul.mubr.bf16.gmra.mrb[0].mxu0 %v3386
  %v3446 = vpop.f32.mrb[0].mxu0
  %v3447 = vadd.f32 0.0, %v3446
  %v3448 = vpop.f32.mrb[0].mxu0
  %v3449 = vpop.f32.mrb[0].mxu0
  %v3450 = vpop.f32.mrb[0].mxu0
  %3451 = vdwg.mxu0
  %v3452 = vadd.f32 %v3350, %v3423
  %v3453 = vadd.f32 %v3351, %v3426
  %v3454 = vadd.f32 %v3352, %v3431
  %v3455 = vadd.f32 %v3353, %v3434
  %v3456 = vadd.f32 %v3354, %v3439
  %v3457 = vadd.f32 %v3355, %v3442
  %v3458 = vadd.f32 %v3356, %v3447
  %v3459 = vld [vmem:[#allocation2 + $0xc8] sm:$0xff]
  %v3460 = vld [vmem:[#allocation2 + $0xd0] sm:$0xff]
  %v3461 = vld [vmem:[#allocation2 + $0xd8] sm:$0xff]
  %v3462 = vld [vmem:[#allocation2 + $0xe0] sm:$0xff]
  %v3463 = vld [vmem:[#allocation2 + $0xe8] sm:$0xff]
  %v3464 = vld [vmem:[#allocation2 + $0xf0] sm:$0xff]
  %v3465 = vld [vmem:[#allocation2 + $0xf8] sm:$0x3]
  %v3466 = vpack.c.bf16 %v3460, %v3459
  %v3467 = vpack.c.bf16 %v3462, %v3461
  %v3468 = vpack.c.bf16 %v3464, %v3463
  %v3469 = vpack.c.bf16 %v3465, %v3465
  %v3470 = vld [vmem:[%s4 + $0x20] sm:$0xf]
  %v3471 = vld [vmem:[%s4 + $0x24] sm:$0xf]
  %v3474 = vunpack.c.l.b16 %v3470
  %v3475 = vunpack.c.l.b16 %v3471
  %v3476 = vpack.c.b16 %v3475, %v3474
  %v3479 = vsel %vm199, %v3466, 0
  %v3482 = vsel %vm199, %v3467, 0
  %v3485 = vsel %vm199, %v3468, 0
  %v3488 = vsel %vm199, %v3469, 0
  %3490 = vmatprep.subr.bf16.mxu0 0
  %3491 = vmatpush1.bf16.msra.mxu0 %v3476
  %3492 = vmatprep.subr.bf16.mxu0 0
  %3493 = vmatpush1.bf16.msra.mxu0 0
  %3494 = vmatprep.subr.bf16.mxu0 0
  %3495 = vmatpush1.bf16.msra.mxu0 0
  %3496 = vmatprep.subr.bf16.mxu0 0
  %3497 = vmatpush1.bf16.msra.mxu0 0
  %3498 = vmatprep.subr.bf16.mxu0 0
  %3499 = vmatpush1.bf16.msra.mxu0 0
  %3500 = vmatprep.subr.bf16.mxu0 0
  %3501 = vmatpush1.bf16.msra.mxu0 0
  %3502 = vmatprep.subr.bf16.mxu0 0
  %3503 = vmatpush1.bf16.msra.mxu0 0
  %3504 = vmatprep.subr.bf16.mxu0 0
  %3505 = vmatpush1.bf16.msra.mxu0 0
  %3506 = vmatprep.subr.bf16.mxu0 0
  %3507 = vmatpush1.bf16.msra.mxu0 0
  %3508 = vmatprep.subr.bf16.mxu0 0
  %3509 = vmatpush1.bf16.msra.mxu0 0
  %3510 = vmatprep.subr.bf16.mxu0 0
  %3511 = vmatpush1.bf16.msra.mxu0 0
  %3512 = vmatprep.subr.bf16.mxu0 0
  %3513 = vmatpush1.bf16.msra.mxu0 0
  %3514 = vmatprep.subr.bf16.mxu0 0
  %3515 = vmatpush1.bf16.msra.mxu0 0
  %3516 = vmatprep.subr.bf16.mxu0 0
  %3517 = vmatpush1.bf16.msra.mxu0 0
  %3518 = vmatprep.subr.bf16.mxu0 0
  %3519 = vmatpush1.bf16.msra.mxu0 0
  %3520 = vmatprep.subr.bf16.mxu0 0
  %3521 = vmatpush1.bf16.msra.mxu0 0
  %3522 = vmatprep.mubr.bf16.mxu0 0
  %3523 = vmatmul.mubr.bf16.gmra.mrb[0].mxu0 %v3479
  %v3524 = vpop.f32.mrb[0].mxu0
  %v3525 = vadd.f32 0.0, %v3524
  %v3526 = vpop.f32.mrb[0].mxu0
  %v3527 = vpop.f32.mrb[0].mxu0
  %v3528 = vadd.f32 0.0, %v3527
  %v3529 = vpop.f32.mrb[0].mxu0
  %3530 = vmatprep.mubr.bf16.mxu0 0
  %3531 = vmatmul.mubr.bf16.gmra.mrb[0].mxu0 %v3482
  %v3532 = vpop.f32.mrb[0].mxu0
  %v3533 = vadd.f32 0.0, %v3532
  %v3534 = vpop.f32.mrb[0].mxu0
  %v3535 = vpop.f32.mrb[0].mxu0
  %v3536 = vadd.f32 0.0, %v3535
  %v3537 = vpop.f32.mrb[0].mxu0
  %3538 = vmatprep.mubr.bf16.mxu0 0
  %3539 = vmatmul.mubr.bf16.gmra.mrb[0].mxu0 %v3485
  %v3540 = vpop.f32.mrb[0].mxu0
  %v3541 = vadd.f32 0.0, %v3540
  %v3542 = vpop.f32.mrb[0].mxu0
  %v3543 = vpop.f32.mrb[0].mxu0
  %v3544 = vadd.f32 0.0, %v3543
  %v3545 = vpop.f32.mrb[0].mxu0
  %3546 = vmatprep.mubr.bf16.mxu0 0
  %3547 = vmatmul.mubr.bf16.gmra.mrb[0].mxu0 %v3488
  %v3548 = vpop.f32.mrb[0].mxu0
  %v3549 = vadd.f32 0.0, %v3548
  %v3550 = vpop.f32.mrb[0].mxu0
  %v3551 = vpop.f32.mrb[0].mxu0
  %v3552 = vpop.f32.mrb[0].mxu0
  %3553 = vdwg.mxu0
  %v3554 = vadd.f32 %v3452, %v3525
  %v3555 = vadd.f32 %v3453, %v3528
  %v3556 = vadd.f32 %v3454, %v3533
  %v3557 = vadd.f32 %v3455, %v3536
  %v3558 = vadd.f32 %v3456, %v3541
  %v3559 = vadd.f32 %v3457, %v3544
  %v3560 = vadd.f32 %v3458, %v3549
  %v3561 = vld [vmem:[#allocation2 + $0xfa] sm:$0xff]
  %v3562 = vld [vmem:[#allocation2 + $0x102] sm:$0xff]
  %v3563 = vld [vmem:[#allocation2 + $0x10a] sm:$0xff]
  %v3564 = vld [vmem:[#allocation2 + $0x112] sm:$0xff]
  %v3565 = vld [vmem:[#allocation2 + $0x11a] sm:$0xff]
  %v3566 = vld [vmem:[#allocation2 + $0x122] sm:$0xff]
  %v3567 = vld [vmem:[#allocation2 + $0x12a] sm:$0x3]
  %v3568 = vpack.c.bf16 %v3562, %v3561
  %v3569 = vpack.c.bf16 %v3564, %v3563
  %v3570 = vpack.c.bf16 %v3566, %v3565
  %v3571 = vpack.c.bf16 %v3567, %v3567
  %v3572 = vld [vmem:[%s4 + $0x28] sm:$0xf]
  %v3573 = vld [vmem:[%s4 + $0x2c] sm:$0xf]
  %v3576 = vunpack.c.l.b16 %v3572
  %v3577 = vunpack.c.l.b16 %v3573
  %v3578 = vpack.c.b16 %v3577, %v3576
  %v3581 = vsel %vm199, %v3568, 0
  %v3584 = vsel %vm199, %v3569, 0
  %v3587 = vsel %vm199, %v3570, 0
  %v3590 = vsel %vm199, %v3571, 0
  %3592 = vmatprep.subr.bf16.mxu0 0
  %3593 = vmatpush1.bf16.msra.mxu0 %v3578
  %3594 = vmatprep.subr.bf16.mxu0 0
  %3595 = vmatpush1.bf16.msra.mxu0 0
  %3596 = vmatprep.subr.bf16.mxu0 0
  %3597 = vmatpush1.bf16.msra.mxu0 0
  %3598 = vmatprep.subr.bf16.mxu0 0
  %3599 = vmatpush1.bf16.msra.mxu0 0
  %3600 = vmatprep.subr.bf16.mxu0 0
  %3601 = vmatpush1.bf16.msra.mxu0 0
  %3602 = vmatprep.subr.bf16.mxu0 0
  %3603 = vmatpush1.bf16.msra.mxu0 0
  %3604 = vmatprep.subr.bf16.mxu0 0
  %3605 = vmatpush1.bf16.msra.mxu0 0
  %3606 = vmatprep.subr.bf16.mxu0 0
  %3607 = vmatpush1.bf16.msra.mxu0 0
  %3608 = vmatprep.subr.bf16.mxu0 0
  %3609 = vmatpush1.bf16.msra.mxu0 0
  %3610 = vmatprep.subr.bf16.mxu0 0
  %3611 = vmatpush1.bf16.msra.mxu0 0
  %3612 = vmatprep.subr.bf16.mxu0 0
  %3613 = vmatpush1.bf16.msra.mxu0 0
  %3614 = vmatprep.subr.bf16.mxu0 0
  %3615 = vmatpush1.bf16.msra.mxu0 0
  %3616 = vmatprep.subr.bf16.mxu0 0
  %3617 = vmatpush1.bf16.msra.mxu0 0
  %3618 = vmatprep.subr.bf16.mxu0 0
  %3619 = vmatpush1.bf16.msra.mxu0 0
  %3620 = vmatprep.subr.bf16.mxu0 0
  %3621 = vmatpush1.bf16.msra.mxu0 0
  %3622 = vmatprep.subr.bf16.mxu0 0
  %3623 = vmatpush1.bf16.msra.mxu0 0
  %3624 = vmatprep.mubr.bf16.mxu0 0
  %3625 = vmatmul.mubr.bf16.gmra.mrb[0].mxu0 %v3581
  %v3626 = vpop.f32.mrb[0].mxu0
  %v3627 = vadd.f32 0.0, %v3626
  %v3628 = vpop.f32.mrb[0].mxu0
  %v3629 = vpop.f32.mrb[0].mxu0
  %v3630 = vadd.f32 0.0, %v3629
  %v3631 = vpop.f32.mrb[0].mxu0
  %3632 = vmatprep.mubr.bf16.mxu0 0
  %3633 = vmatmul.mubr.bf16.gmra.mrb[0].mxu0 %v3584
  %v3634 = vpop.f32.mrb[0].mxu0
  %v3635 = vadd.f32 0.0, %v3634
  %v3636 = vpop.f32.mrb[0].mxu0
  %v3637 = vpop.f32.mrb[0].mxu0
  %v3638 = vadd.f32 0.0, %v3637
  %v3639 = vpop.f32.mrb[0].mxu0
  %3640 = vmatprep.mubr.bf16.mxu0 0
  %3641 = vmatmul.mubr.bf16.gmra.mrb[0].mxu0 %v3587
  %v3642 = vpop.f32.mrb[0].mxu0
  %v3643 = vadd.f32 0.0, %v3642
  %v3644 = vpop.f32.mrb[0].mxu0
  %v3645 = vpop.f32.mrb[0].mxu0
  %v3646 = vadd.f32 0.0, %v3645
  %v3647 = vpop.f32.mrb[0].mxu0
  %3648 = vmatprep.mubr.bf16.mxu0 0
  %3649 = vmatmul.mubr.bf16.gmra.mrb[0].mxu0 %v3590
  %v3650 = vpop.f32.mrb[0].mxu0
  %v3651 = vadd.f32 0.0, %v3650
  %v3652 = vpop.f32.mrb[0].mxu0
  %v3653 = vpop.f32.mrb[0].mxu0
  %v3654 = vpop.f32.mrb[0].mxu0
  %3655 = vdwg.mxu0
  %v3656 = vadd.f32 %v3554, %v3627
  %v3657 = vadd.f32 %v3555, %v3630
  %v3658 = vadd.f32 %v3556, %v3635
  %v3659 = vadd.f32 %v3557, %v3638
  %v3660 = vadd.f32 %v3558, %v3643
  %v3661 = vadd.f32 %v3559, %v3646
  %v3662 = vadd.f32 %v3560, %v3651
  %v3663 = vld [vmem:[#allocation2 + $0x12c] sm:$0xff]
  %v3664 = vld [vmem:[#allocation2 + $0x134] sm:$0xff]
  %v3665 = vld [vmem:[#allocation2 + $0x13c] sm:$0xff]
  %v3666 = vld [vmem:[#allocation2 + $0x144] sm:$0xff]
  %v3667 = vld [vmem:[#allocation2 + $0x14c] sm:$0xff]
  %v3668 = vld [vmem:[#allocation2 + $0x154] sm:$0xff]
  %v3669 = vld [vmem:[#allocation2 + $0x15c] sm:$0x3]
  %v3670 = vpack.c.bf16 %v3664, %v3663
  %v3671 = vpack.c.bf16 %v3666, %v3665
  %v3672 = vpack.c.bf16 %v3668, %v3667
  %v3673 = vpack.c.bf16 %v3669, %v3669
  %v3674 = vld [vmem:[%s4 + $0x30] sm:$0xf]
  %v3675 = vld [vmem:[%s4 + $0x34] sm:$0xf]
  %v3678 = vunpack.c.l.b16 %v3674
  %v3679 = vunpack.c.l.b16 %v3675
  %v3680 = vpack.c.b16 %v3679, %v3678
  %v3683 = vsel %vm199, %v3670, 0
  %v3686 = vsel %vm199, %v3671, 0
  %v3689 = vsel %vm199, %v3672, 0
  %v3692 = vsel %vm199, %v3673, 0
  %3694 = vmatprep.subr.bf16.mxu0 0
  %3695 = vmatpush1.bf16.msra.mxu0 %v3680
  %3696 = vmatprep.subr.bf16.mxu0 0
  %3697 = vmatpush1.bf16.msra.mxu0 0
  %3698 = vmatprep.subr.bf16.mxu0 0
  %3699 = vmatpush1.bf16.msra.mxu0 0
  %3700 = vmatprep.subr.bf16.mxu0 0
  %3701 = vmatpush1.bf16.msra.mxu0 0
  %3702 = vmatprep.subr.bf16.mxu0 0
  %3703 = vmatpush1.bf16.msra.mxu0 0
  %3704 = vmatprep.subr.bf16.mxu0 0
  %3705 = vmatpush1.bf16.msra.mxu0 0
  %3706 = vmatprep.subr.bf16.mxu0 0
  %3707 = vmatpush1.bf16.msra.mxu0 0
  %3708 = vmatprep.subr.bf16.mxu0 0
  %3709 = vmatpush1.bf16.msra.mxu0 0
  %3710 = vmatprep.subr.bf16.mxu0 0
  %3711 = vmatpush1.bf16.msra.mxu0 0
  %3712 = vmatprep.subr.bf16.mxu0 0
  %3713 = vmatpush1.bf16.msra.mxu0 0
  %3714 = vmatprep.subr.bf16.mxu0 0
  %3715 = vmatpush1.bf16.msra.mxu0 0
  %3716 = vmatprep.subr.bf16.mxu0 0
  %3717 = vmatpush1.bf16.msra.mxu0 0
  %3718 = vmatprep.subr.bf16.mxu0 0
  %3719 = vmatpush1.bf16.msra.mxu0 0
  %3720 = vmatprep.subr.bf16.mxu0 0
  %3721 = vmatpush1.bf16.msra.mxu0 0
  %3722 = vmatprep.subr.bf16.mxu0 0
  %3723 = vmatpush1.bf16.msra.mxu0 0
  %3724 = vmatprep.subr.bf16.mxu0 0
  %3725 = vmatpush1.bf16.msra.mxu0 0
  %3726 = vmatprep.mubr.bf16.mxu0 0
  %3727 = vmatmul.mubr.bf16.gmra.mrb[0].mxu0 %v3683
  %v3728 = vpop.f32.mrb[0].mxu0
  %v3729 = vadd.f32 0.0, %v3728
  %v3730 = vpop.f32.mrb[0].mxu0
  %v3731 = vpop.f32.mrb[0].mxu0
  %v3732 = vadd.f32 0.0, %v3731
  %v3733 = vpop.f32.mrb[0].mxu0
  %3734 = vmatprep.mubr.bf16.mxu0 0
  %3735 = vmatmul.mubr.bf16.gmra.mrb[0].mxu0 %v3686
  %v3736 = vpop.f32.mrb[0].mxu0
  %v3737 = vadd.f32 0.0, %v3736
  %v3738 = vpop.f32.mrb[0].mxu0
  %v3739 = vpop.f32.mrb[0].mxu0
  %v3740 = vadd.f32 0.0, %v3739
  %v3741 = vpop.f32.mrb[0].mxu0
  %3742 = vmatprep.mubr.bf16.mxu0 0
  %3743 = vmatmul.mubr.bf16.gmra.mrb[0].mxu0 %v3689
  %v3744 = vpop.f32.mrb[0].mxu0
  %v3745 = vadd.f32 0.0, %v3744
  %v3746 = vpop.f32.mrb[0].mxu0
  %v3747 = vpop.f32.mrb[0].mxu0
  %v3748 = vadd.f32 0.0, %v3747
  %v3749 = vpop.f32.mrb[0].mxu0
  %3750 = vmatprep.mubr.bf16.mxu0 0
  %3751 = vmatmul.mubr.bf16.gmra.mrb[0].mxu0 %v3692
  %v3752 = vpop.f32.mrb[0].mxu0
  %v3753 = vadd.f32 0.0, %v3752
  %v3754 = vpop.f32.mrb[0].mxu0
  %v3755 = vpop.f32.mrb[0].mxu0
  %v3756 = vpop.f32.mrb[0].mxu0
  %3757 = vdwg.mxu0
  %v3758 = vadd.f32 %v3656, %v3729
  %v3759 = vadd.f32 %v3657, %v3732
  %v3760 = vadd.f32 %v3658, %v3737
  %v3761 = vadd.f32 %v3659, %v3740
  %v3762 = vadd.f32 %v3660, %v3745
  %v3763 = vadd.f32 %v3661, %v3748
  %v3764 = vadd.f32 %v3662, %v3753
  %v3765 = vld [vmem:[#allocation2 + $0x15e] sm:$0xff]
  %v3766 = vld [vmem:[#allocation2 + $0x166] sm:$0xff]
  %v3767 = vld [vmem:[#allocation2 + $0x16e] sm:$0xff]
  %v3768 = vld [vmem:[#allocation2 + $0x176] sm:$0xff]
  %v3769 = vld [vmem:[#allocation2 + $0x17e] sm:$0xff]
  %v3770 = vld [vmem:[#allocation2 + $0x186] sm:$0xff]
  %v3771 = vld [vmem:[#allocation2 + $0x18e] sm:$0x3]
  %v3772 = vpack.c.bf16 %v3766, %v3765
  %v3773 = vpack.c.bf16 %v3768, %v3767
  %v3774 = vpack.c.bf16 %v3770, %v3769
  %v3775 = vpack.c.bf16 %v3771, %v3771
  %v3776 = vld [vmem:[%s4 + $0x38] sm:$0xf]
  %v3777 = vld [vmem:[%s4 + $0x3c] sm:$0xf]
  %v3780 = vunpack.c.l.b16 %v3776
  %v3781 = vunpack.c.l.b16 %v3777
  %v3782 = vpack.c.b16 %v3781, %v3780
  %v3785 = vsel %vm199, %v3772, 0
  %v3788 = vsel %vm199, %v3773, 0
  %v3791 = vsel %vm199, %v3774, 0
  %v3794 = vsel %vm199, %v3775, 0
  %3796 = vmatprep.subr.bf16.mxu0 0
  %3797 = vmatpush1.bf16.msra.mxu0 %v3782
  %3798 = vmatprep.subr.bf16.mxu0 0
  %3799 = vmatpush1.bf16.msra.mxu0 0
  %3800 = vmatprep.subr.bf16.mxu0 0
  %3801 = vmatpush1.bf16.msra.mxu0 0
  %3802 = vmatprep.subr.bf16.mxu0 0
  %3803 = vmatpush1.bf16.msra.mxu0 0
  %3804 = vmatprep.subr.bf16.mxu0 0
  %3805 = vmatpush1.bf16.msra.mxu0 0
  %3806 = vmatprep.subr.bf16.mxu0 0
  %3807 = vmatpush1.bf16.msra.mxu0 0
  %3808 = vmatprep.subr.bf16.mxu0 0
  %3809 = vmatpush1.bf16.msra.mxu0 0
  %3810 = vmatprep.subr.bf16.mxu0 0
  %3811 = vmatpush1.bf16.msra.mxu0 0
  %3812 = vmatprep.subr.bf16.mxu0 0
  %3813 = vmatpush1.bf16.msra.mxu0 0
  %3814 = vmatprep.subr.bf16.mxu0 0
  %3815 = vmatpush1.bf16.msra.mxu0 0
  %3816 = vmatprep.subr.bf16.mxu0 0
  %3817 = vmatpush1.bf16.msra.mxu0 0
  %3818 = vmatprep.subr.bf16.mxu0 0
  %3819 = vmatpush1.bf16.msra.mxu0 0
  %3820 = vmatprep.subr.bf16.mxu0 0
  %3821 = vmatpush1.bf16.msra.mxu0 0
  %3822 = vmatprep.subr.bf16.mxu0 0
  %3823 = vmatpush1.bf16.msra.mxu0 0
  %3824 = vmatprep.subr.bf16.mxu0 0
  %3825 = vmatpush1.bf16.msra.mxu0 0
  %3826 = vmatprep.subr.bf16.mxu0 0
  %3827 = vmatpush1.bf16.msra.mxu0 0
  %3828 = vmatprep.mubr.bf16.mxu0 0
  %3829 = vmatmul.mubr.bf16.gmra.mrb[0].mxu0 %v3785
  %v3830 = vpop.f32.mrb[0].mxu0
  %v3831 = vadd.f32 0.0, %v3830
  %v3832 = vpop.f32.mrb[0].mxu0
  %v3833 = vpop.f32.mrb[0].mxu0
  %v3834 = vadd.f32 0.0, %v3833
  %v3835 = vpop.f32.mrb[0].mxu0
  %3836 = vmatprep.mubr.bf16.mxu0 0
  %3837 = vmatmul.mubr.bf16.gmra.mrb[0].mxu0 %v3788
  %v3838 = vpop.f32.mrb[0].mxu0
  %v3839 = vadd.f32 0.0, %v3838
  %v3840 = vpop.f32.mrb[0].mxu0
  %v3841 = vpop.f32.mrb[0].mxu0
  %v3842 = vadd.f32 0.0, %v3841
  %v3843 = vpop.f32.mrb[0].mxu0
  %3844 = vmatprep.mubr.bf16.mxu0 0
  %3845 = vmatmul.mubr.bf16.gmra.mrb[0].mxu0 %v3791
  %v3846 = vpop.f32.mrb[0].mxu0
  %v3847 = vadd.f32 0.0, %v3846
  %v3848 = vpop.f32.mrb[0].mxu0
  %v3849 = vpop.f32.mrb[0].mxu0
  %v3850 = vadd.f32 0.0, %v3849
  %v3851 = vpop.f32.mrb[0].mxu0
  %3852 = vmatprep.mubr.bf16.mxu0 0
  %3853 = vmatmul.mubr.bf16.gmra.mrb[0].mxu0 %v3794
  %v3854 = vpop.f32.mrb[0].mxu0
  %v3855 = vadd.f32 0.0, %v3854
  %v3856 = vpop.f32.mrb[0].mxu0
  %v3857 = vpop.f32.mrb[0].mxu0
  %v3858 = vpop.f32.mrb[0].mxu0
  %3859 = vdwg.mxu0
  %v3860 = vadd.f32 %v3758, %v3831
  %v3861 = vadd.f32 %v3759, %v3834
  %v3862 = vadd.f32 %v3760, %v3839
  %v3863 = vadd.f32 %v3761, %v3842
  %v3864 = vadd.f32 %v3762, %v3847
  %v3865 = vadd.f32 %v3763, %v3850
  %v3866 = vadd.f32 %v3764, %v3855
  %v3867 = vld [vmem:[#allocation2 + $0x190] sm:$0xff]
  %v3868 = vld [vmem:[#allocation2 + $0x198] sm:$0xff]
  %v3869 = vld [vmem:[#allocation2 + $0x1a0] sm:$0xff]
  %v3870 = vld [vmem:[#allocation2 + $0x1a8] sm:$0xff]
  %v3871 = vld [vmem:[#allocation2 + $0x1b0] sm:$0xff]
  %v3872 = vld [vmem:[#allocation2 + $0x1b8] sm:$0xff]
  %v3873 = vld [vmem:[#allocation2 + $0x1c0] sm:$0x3]
  %v3874 = vpack.c.bf16 %v3868, %v3867
  %v3875 = vpack.c.bf16 %v3870, %v3869
  %v3876 = vpack.c.bf16 %v3872, %v3871
  %v3877 = vpack.c.bf16 %v3873, %v3873
  %v3878 = vld [vmem:[%s4 + $0x40] sm:$0xf]
  %v3879 = vld [vmem:[%s4 + $0x44] sm:$0xf]
  %v3882 = vunpack.c.l.b16 %v3878
  %v3883 = vunpack.c.l.b16 %v3879
  %v3884 = vpack.c.b16 %v3883, %v3882
  %v3887 = vsel %vm199, %v3874, 0
  %v3890 = vsel %vm199, %v3875, 0
  %v3893 = vsel %vm199, %v3876, 0
  %v3896 = vsel %vm199, %v3877, 0
  %3898 = vmatprep.subr.bf16.mxu0 0
  %3899 = vmatpush1.bf16.msra.mxu0 %v3884
  %3900 = vmatprep.subr.bf16.mxu0 0
  %3901 = vmatpush1.bf16.msra.mxu0 0
  %3902 = vmatprep.subr.bf16.mxu0 0
  %3903 = vmatpush1.bf16.msra.mxu0 0
  %3904 = vmatprep.subr.bf16.mxu0 0
  %3905 = vmatpush1.bf16.msra.mxu0 0
  %3906 = vmatprep.subr.bf16.mxu0 0
  %3907 = vmatpush1.bf16.msra.mxu0 0
  %3908 = vmatprep.subr.bf16.mxu0 0
  %3909 = vmatpush1.bf16.msra.mxu0 0
  %3910 = vmatprep.subr.bf16.mxu0 0
  %3911 = vmatpush1.bf16.msra.mxu0 0
  %3912 = vmatprep.subr.bf16.mxu0 0
  %3913 = vmatpush1.bf16.msra.mxu0 0
  %3914 = vmatprep.subr.bf16.mxu0 0
  %3915 = vmatpush1.bf16.msra.mxu0 0
  %3916 = vmatprep.subr.bf16.mxu0 0
  %3917 = vmatpush1.bf16.msra.mxu0 0
  %3918 = vmatprep.subr.bf16.mxu0 0
  %3919 = vmatpush1.bf16.msra.mxu0 0
  %3920 = vmatprep.subr.bf16.mxu0 0
  %3921 = vmatpush1.bf16.msra.mxu0 0
  %3922 = vmatprep.subr.bf16.mxu0 0
  %3923 = vmatpush1.bf16.msra.mxu0 0
  %3924 = vmatprep.subr.bf16.mxu0 0
  %3925 = vmatpush1.bf16.msra.mxu0 0
  %3926 = vmatprep.subr.bf16.mxu0 0
  %3927 = vmatpush1.bf16.msra.mxu0 0
  %3928 = vmatprep.subr.bf16.mxu0 0
  %3929 = vmatpush1.bf16.msra.mxu0 0
  %3930 = vmatprep.mubr.bf16.mxu0 0
  %3931 = vmatmul.mubr.bf16.gmra.mrb[0].mxu0 %v3887
  %v3932 = vpop.f32.mrb[0].mxu0
  %v3933 = vadd.f32 0.0, %v3932
  %v3934 = vpop.f32.mrb[0].mxu0
  %v3935 = vpop.f32.mrb[0].mxu0
  %v3936 = vadd.f32 0.0, %v3935
  %v3937 = vpop.f32.mrb[0].mxu0
  %3938 = vmatprep.mubr.bf16.mxu0 0
  %3939 = vmatmul.mubr.bf16.gmra.mrb[0].mxu0 %v3890
  %v3940 = vpop.f32.mrb[0].mxu0
  %v3941 = vadd.f32 0.0, %v3940
  %v3942 = vpop.f32.mrb[0].mxu0
  %v3943 = vpop.f32.mrb[0].mxu0
  %v3944 = vadd.f32 0.0, %v3943
  %v3945 = vpop.f32.mrb[0].mxu0
  %3946 = vmatprep.mubr.bf16.mxu0 0
  %3947 = vmatmul.mubr.bf16.gmra.mrb[0].mxu0 %v3893
  %v3948 = vpop.f32.mrb[0].mxu0
  %v3949 = vadd.f32 0.0, %v3948
  %v3950 = vpop.f32.mrb[0].mxu0
  %v3951 = vpop.f32.mrb[0].mxu0
  %v3952 = vadd.f32 0.0, %v3951
  %v3953 = vpop.f32.mrb[0].mxu0
  %3954 = vmatprep.mubr.bf16.mxu0 0
  %3955 = vmatmul.mubr.bf16.gmra.mrb[0].mxu0 %v3896
  %v3956 = vpop.f32.mrb[0].mxu0
  %v3957 = vadd.f32 0.0, %v3956
  %v3958 = vpop.f32.mrb[0].mxu0
  %v3959 = vpop.f32.mrb[0].mxu0
  %v3960 = vpop.f32.mrb[0].mxu0
  %3961 = vdwg.mxu0
  %v3962 = vadd.f32 %v3860, %v3933
  %v3963 = vadd.f32 %v3861, %v3936
  %v3964 = vadd.f32 %v3862, %v3941
  %v3965 = vadd.f32 %v3863, %v3944
  %v3966 = vadd.f32 %v3864, %v3949
  %v3967 = vadd.f32 %v3865, %v3952
  %v3968 = vadd.f32 %v3866, %v3957
  %v3969 = vld [vmem:[#allocation2 + $0x1c2] sm:$0xff]
  %v3970 = vld [vmem:[#allocation2 + $0x1ca] sm:$0xff]
  %v3971 = vld [vmem:[#allocation2 + $0x1d2] sm:$0xff]
  %v3972 = vld [vmem:[#allocation2 + $0x1da] sm:$0xff]
  %v3973 = vld [vmem:[#allocation2 + $0x1e2] sm:$0xff]
  %v3974 = vld [vmem:[#allocation2 + $0x1ea] sm:$0xff]
  %v3975 = vld [vmem:[#allocation2 + $0x1f2] sm:$0x3]
  %v3976 = vpack.c.bf16 %v3970, %v3969
  %v3977 = vpack.c.bf16 %v3972, %v3971
  %v3978 = vpack.c.bf16 %v3974, %v3973
  %v3979 = vpack.c.bf16 %v3975, %v3975
  %v3980 = vld [vmem:[%s4 + $0x48] sm:$0xf]
  %v3981 = vld [vmem:[%s4 + $0x4c] sm:$0xf]
  %v3984 = vunpack.c.l.b16 %v3980
  %v3985 = vunpack.c.l.b16 %v3981
  %v3986 = vpack.c.b16 %v3985, %v3984
  %v3989 = vsel %vm199, %v3976, 0
  %v3992 = vsel %vm199, %v3977, 0
  %v3995 = vsel %vm199, %v3978, 0
  %v3998 = vsel %vm199, %v3979, 0
  %4000 = vmatprep.subr.bf16.mxu0 0
  %4001 = vmatpush1.bf16.msra.mxu0 %v3986
  %4002 = vmatprep.subr.bf16.mxu0 0
  %4003 = vmatpush1.bf16.msra.mxu0 0
  %4004 = vmatprep.subr.bf16.mxu0 0
  %4005 = vmatpush1.bf16.msra.mxu0 0
  %4006 = vmatprep.subr.bf16.mxu0 0
  %4007 = vmatpush1.bf16.msra.mxu0 0
  %4008 = vmatprep.subr.bf16.mxu0 0
  %4009 = vmatpush1.bf16.msra.mxu0 0
  %4010 = vmatprep.subr.bf16.mxu0 0
  %4011 = vmatpush1.bf16.msra.mxu0 0
  %4012 = vmatprep.subr.bf16.mxu0 0
  %4013 = vmatpush1.bf16.msra.mxu0 0
  %4014 = vmatprep.subr.bf16.mxu0 0
  %4015 = vmatpush1.bf16.msra.mxu0 0
  %4016 = vmatprep.subr.bf16.mxu0 0
  %4017 = vmatpush1.bf16.msra.mxu0 0
  %4018 = vmatprep.subr.bf16.mxu0 0
  %4019 = vmatpush1.bf16.msra.mxu0 0
  %4020 = vmatprep.subr.bf16.mxu0 0
  %4021 = vmatpush1.bf16.msra.mxu0 0
  %4022 = vmatprep.subr.bf16.mxu0 0
  %4023 = vmatpush1.bf16.msra.mxu0 0
  %4024 = vmatprep.subr.bf16.mxu0 0
  %4025 = vmatpush1.bf16.msra.mxu0 0
  %4026 = vmatprep.subr.bf16.mxu0 0
  %4027 = vmatpush1.bf16.msra.mxu0 0
  %4028 = vmatprep.subr.bf16.mxu0 0
  %4029 = vmatpush1.bf16.msra.mxu0 0
  %4030 = vmatprep.subr.bf16.mxu0 0
  %4031 = vmatpush1.bf16.msra.mxu0 0
  %4032 = vmatprep.mubr.bf16.mxu0 0
  %4033 = vmatmul.mubr.bf16.gmra.mrb[0].mxu0 %v3989
  %v4034 = vpop.f32.mrb[0].mxu0
  %v4035 = vadd.f32 0.0, %v4034
  %v4036 = vpop.f32.mrb[0].mxu0
  %v4037 = vpop.f32.mrb[0].mxu0
  %v4038 = vadd.f32 0.0, %v4037
  %v4039 = vpop.f32.mrb[0].mxu0
  %4040 = vmatprep.mubr.bf16.mxu0 0
  %4041 = vmatmul.mubr.bf16.gmra.mrb[0].mxu0 %v3992
  %v4042 = vpop.f32.mrb[0].mxu0
  %v4043 = vadd.f32 0.0, %v4042
  %v4044 = vpop.f32.mrb[0].mxu0
  %v4045 = vpop.f32.mrb[0].mxu0
  %v4046 = vadd.f32 0.0, %v4045
  %v4047 = vpop.f32.mrb[0].mxu0
  %4048 = vmatprep.mubr.bf16.mxu0 0
  %4049 = vmatmul.mubr.bf16.gmra.mrb[0].mxu0 %v3995
  %v4050 = vpop.f32.mrb[0].mxu0
  %v4051 = vadd.f32 0.0, %v4050
  %v4052 = vpop.f32.mrb[0].mxu0
  %v4053 = vpop.f32.mrb[0].mxu0
  %v4054 = vadd.f32 0.0, %v4053
  %v4055 = vpop.f32.mrb[0].mxu0
  %4056 = vmatprep.mubr.bf16.mxu0 0
  %4057 = vmatmul.mubr.bf16.gmra.mrb[0].mxu0 %v3998
  %v4058 = vpop.f32.mrb[0].mxu0
  %v4059 = vadd.f32 0.0, %v4058
  %v4060 = vpop.f32.mrb[0].mxu0
  %v4061 = vpop.f32.mrb[0].mxu0
  %v4062 = vpop.f32.mrb[0].mxu0
  %4063 = vdwg.mxu0
  %v4064 = vadd.f32 %v3962, %v4035
  %v4065 = vadd.f32 %v3963, %v4038
  %v4066 = vadd.f32 %v3964, %v4043
  %v4067 = vadd.f32 %v3965, %v4046
  %v4068 = vadd.f32 %v3966, %v4051
  %v4069 = vadd.f32 %v3967, %v4054
  %v4070 = vadd.f32 %v3968, %v4059
  %v4071 = vld [vmem:[#allocation2 + $0x1f4] sm:$0xff]
  %v4072 = vld [vmem:[#allocation2 + $0x1fc] sm:$0xff]
  %v4073 = vld [vmem:[#allocation2 + $0x204] sm:$0xff]
  %v4074 = vld [vmem:[#allocation2 + $0x20c] sm:$0xff]
  %v4075 = vld [vmem:[#allocation2 + $0x214] sm:$0xff]
  %v4076 = vld [vmem:[#allocation2 + $0x21c] sm:$0xff]
  %v4077 = vld [vmem:[#allocation2 + $0x224] sm:$0x3]
  %v4078 = vpack.c.bf16 %v4072, %v4071
  %v4079 = vpack.c.bf16 %v4074, %v4073
  %v4080 = vpack.c.bf16 %v4076, %v4075
  %v4081 = vpack.c.bf16 %v4077, %v4077
  %v4082 = vld [vmem:[%s4 + $0x50] sm:$0xf]
  %v4083 = vld [vmem:[%s4 + $0x54] sm:$0xf]
  %v4086 = vunpack.c.l.b16 %v4082
  %v4087 = vunpack.c.l.b16 %v4083
  %v4088 = vpack.c.b16 %v4087, %v4086
  %v4091 = vsel %vm199, %v4078, 0
  %v4094 = vsel %vm199, %v4079, 0
  %v4097 = vsel %vm199, %v4080, 0
  %v4100 = vsel %vm199, %v4081, 0
  %4102 = vmatprep.subr.bf16.mxu0 0
  %4103 = vmatpush1.bf16.msra.mxu0 %v4088
  %4104 = vmatprep.subr.bf16.mxu0 0
  %4105 = vmatpush1.bf16.msra.mxu0 0
  %4106 = vmatprep.subr.bf16.mxu0 0
  %4107 = vmatpush1.bf16.msra.mxu0 0
  %4108 = vmatprep.subr.bf16.mxu0 0
  %4109 = vmatpush1.bf16.msra.mxu0 0
  %4110 = vmatprep.subr.bf16.mxu0 0
  %4111 = vmatpush1.bf16.msra.mxu0 0
  %4112 = vmatprep.subr.bf16.mxu0 0
  %4113 = vmatpush1.bf16.msra.mxu0 0
  %4114 = vmatprep.subr.bf16.mxu0 0
  %4115 = vmatpush1.bf16.msra.mxu0 0
  %4116 = vmatprep.subr.bf16.mxu0 0
  %4117 = vmatpush1.bf16.msra.mxu0 0
  %4118 = vmatprep.subr.bf16.mxu0 0
  %4119 = vmatpush1.bf16.msra.mxu0 0
  %4120 = vmatprep.subr.bf16.mxu0 0
  %4121 = vmatpush1.bf16.msra.mxu0 0
  %4122 = vmatprep.subr.bf16.mxu0 0
  %4123 = vmatpush1.bf16.msra.mxu0 0
  %4124 = vmatprep.subr.bf16.mxu0 0
  %4125 = vmatpush1.bf16.msra.mxu0 0
  %4126 = vmatprep.subr.bf16.mxu0 0
  %4127 = vmatpush1.bf16.msra.mxu0 0
  %4128 = vmatprep.subr.bf16.mxu0 0
  %4129 = vmatpush1.bf16.msra.mxu0 0
  %4130 = vmatprep.subr.bf16.mxu0 0
  %4131 = vmatpush1.bf16.msra.mxu0 0
  %4132 = vmatprep.subr.bf16.mxu0 0
  %4133 = vmatpush1.bf16.msra.mxu0 0
  %4134 = vmatprep.mubr.bf16.mxu0 0
  %4135 = vmatmul.mubr.bf16.gmra.mrb[0].mxu0 %v4091
  %v4136 = vpop.f32.mrb[0].mxu0
  %v4137 = vadd.f32 0.0, %v4136
  %v4138 = vpop.f32.mrb[0].mxu0
  %v4139 = vpop.f32.mrb[0].mxu0
  %v4140 = vadd.f32 0.0, %v4139
  %v4141 = vpop.f32.mrb[0].mxu0
  %4142 = vmatprep.mubr.bf16.mxu0 0
  %4143 = vmatmul.mubr.bf16.gmra.mrb[0].mxu0 %v4094
  %v4144 = vpop.f32.mrb[0].mxu0
  %v4145 = vadd.f32 0.0, %v4144
  %v4146 = vpop.f32.mrb[0].mxu0
  %v4147 = vpop.f32.mrb[0].mxu0
  %v4148 = vadd.f32 0.0, %v4147
  %v4149 = vpop.f32.mrb[0].mxu0
  %4150 = vmatprep.mubr.bf16.mxu0 0
  %4151 = vmatmul.mubr.bf16.gmra.mrb[0].mxu0 %v4097
  %v4152 = vpop.f32.mrb[0].mxu0
  %v4153 = vadd.f32 0.0, %v4152
  %v4154 = vpop.f32.mrb[0].mxu0
  %v4155 = vpop.f32.mrb[0].mxu0
  %v4156 = vadd.f32 0.0, %v4155
  %v4157 = vpop.f32.mrb[0].mxu0
  %4158 = vmatprep.mubr.bf16.mxu0 0
  %4159 = vmatmul.mubr.bf16.gmra.mrb[0].mxu0 %v4100
  %v4160 = vpop.f32.mrb[0].mxu0
  %v4161 = vadd.f32 0.0, %v4160
  %v4162 = vpop.f32.mrb[0].mxu0
  %v4163 = vpop.f32.mrb[0].mxu0
  %v4164 = vpop.f32.mrb[0].mxu0
  %4165 = vdwg.mxu0
  %v4166 = vadd.f32 %v4064, %v4137
  %v4167 = vadd.f32 %v4065, %v4140
  %v4168 = vadd.f32 %v4066, %v4145
  %v4169 = vadd.f32 %v4067, %v4148
  %v4170 = vadd.f32 %v4068, %v4153
  %v4171 = vadd.f32 %v4069, %v4156
  %v4172 = vadd.f32 %v4070, %v4161
  %v4173 = vld [vmem:[#allocation2 + $0x226] sm:$0xff]
  %v4174 = vld [vmem:[#allocation2 + $0x22e] sm:$0xff]
  %v4175 = vld [vmem:[#allocation2 + $0x236] sm:$0xff]
  %v4176 = vld [vmem:[#allocation2 + $0x23e] sm:$0xff]
  %v4177 = vld [vmem:[#allocation2 + $0x246] sm:$0xff]
  %v4178 = vld [vmem:[#allocation2 + $0x24e] sm:$0xff]
  %v4179 = vld [vmem:[#allocation2 + $0x256] sm:$0x3]
  %v4180 = vpack.c.bf16 %v4174, %v4173
  %v4181 = vpack.c.bf16 %v4176, %v4175
  %v4182 = vpack.c.bf16 %v4178, %v4177
  %v4183 = vpack.c.bf16 %v4179, %v4179
  %v4184 = vld [vmem:[%s4 + $0x58] sm:$0xf]
  %v4185 = vld [vmem:[%s4 + $0x5c] sm:$0xf]
  %v4188 = vunpack.c.l.b16 %v4184
  %v4189 = vunpack.c.l.b16 %v4185
  %v4190 = vpack.c.b16 %v4189, %v4188
  %v4193 = vsel %vm199, %v4180, 0
  %v4196 = vsel %vm199, %v4181, 0
  %v4199 = vsel %vm199, %v4182, 0
  %v4202 = vsel %vm199, %v4183, 0
  %4204 = vmatprep.subr.bf16.mxu0 0
  %4205 = vmatpush1.bf16.msra.mxu0 %v4190
  %4206 = vmatprep.subr.bf16.mxu0 0
  %4207 = vmatpush1.bf16.msra.mxu0 0
  %4208 = vmatprep.subr.bf16.mxu0 0
  %4209 = vmatpush1.bf16.msra.mxu0 0
  %4210 = vmatprep.subr.bf16.mxu0 0
  %4211 = vmatpush1.bf16.msra.mxu0 0
  %4212 = vmatprep.subr.bf16.mxu0 0
  %4213 = vmatpush1.bf16.msra.mxu0 0
  %4214 = vmatprep.subr.bf16.mxu0 0
  %4215 = vmatpush1.bf16.msra.mxu0 0
  %4216 = vmatprep.subr.bf16.mxu0 0
  %4217 = vmatpush1.bf16.msra.mxu0 0
  %4218 = vmatprep.subr.bf16.mxu0 0
  %4219 = vmatpush1.bf16.msra.mxu0 0
  %4220 = vmatprep.subr.bf16.mxu0 0
  %4221 = vmatpush1.bf16.msra.mxu0 0
  %4222 = vmatprep.subr.bf16.mxu0 0
  %4223 = vmatpush1.bf16.msra.mxu0 0
  %4224 = vmatprep.subr.bf16.mxu0 0
  %4225 = vmatpush1.bf16.msra.mxu0 0
  %4226 = vmatprep.subr.bf16.mxu0 0
  %4227 = vmatpush1.bf16.msra.mxu0 0
  %4228 = vmatprep.subr.bf16.mxu0 0
  %4229 = vmatpush1.bf16.msra.mxu0 0
  %4230 = vmatprep.subr.bf16.mxu0 0
  %4231 = vmatpush1.bf16.msra.mxu0 0
  %4232 = vmatprep.subr.bf16.mxu0 0
  %4233 = vmatpush1.bf16.msra.mxu0 0
  %4234 = vmatprep.subr.bf16.mxu0 0
  %4235 = vmatpush1.bf16.msra.mxu0 0
  %4236 = vmatprep.mubr.bf16.mxu0 0
  %4237 = vmatmul.mubr.bf16.gmra.mrb[0].mxu0 %v4193
  %v4238 = vpop.f32.mrb[0].mxu0
  %v4239 = vadd.f32 0.0, %v4238
  %v4240 = vpop.f32.mrb[0].mxu0
  %v4241 = vpop.f32.mrb[0].mxu0
  %v4242 = vadd.f32 0.0, %v4241
  %v4243 = vpop.f32.mrb[0].mxu0
  %4244 = vmatprep.mubr.bf16.mxu0 0
  %4245 = vmatmul.mubr.bf16.gmra.mrb[0].mxu0 %v4196
  %v4246 = vpop.f32.mrb[0].mxu0
  %v4247 = vadd.f32 0.0, %v4246
  %v4248 = vpop.f32.mrb[0].mxu0
  %v4249 = vpop.f32.mrb[0].mxu0
  %v4250 = vadd.f32 0.0, %v4249
  %v4251 = vpop.f32.mrb[0].mxu0
  %4252 = vmatprep.mubr.bf16.mxu0 0
  %4253 = vmatmul.mubr.bf16.gmra.mrb[0].mxu0 %v4199
  %v4254 = vpop.f32.mrb[0].mxu0
  %v4255 = vadd.f32 0.0, %v4254
  %v4256 = vpop.f32.mrb[0].mxu0
  %v4257 = vpop.f32.mrb[0].mxu0
  %v4258 = vadd.f32 0.0, %v4257
  %v4259 = vpop.f32.mrb[0].mxu0
  %4260 = vmatprep.mubr.bf16.mxu0 0
  %4261 = vmatmul.mubr.bf16.gmra.mrb[0].mxu0 %v4202
  %v4262 = vpop.f32.mrb[0].mxu0
  %v4263 = vadd.f32 0.0, %v4262
  %v4264 = vpop.f32.mrb[0].mxu0
  %v4265 = vpop.f32.mrb[0].mxu0
  %v4266 = vpop.f32.mrb[0].mxu0
  %4267 = vdwg.mxu0
  %v4268 = vadd.f32 %v4166, %v4239
  %v4269 = vadd.f32 %v4167, %v4242
  %v4270 = vadd.f32 %v4168, %v4247
  %v4271 = vadd.f32 %v4169, %v4250
  %v4272 = vadd.f32 %v4170, %v4255
  %v4273 = vadd.f32 %v4171, %v4258
  %v4274 = vadd.f32 %v4172, %v4263
  %v4275 = vld [vmem:[#allocation2 + $0x258] sm:$0xff]
  %v4276 = vld [vmem:[#allocation2 + $0x260] sm:$0xff]
  %v4277 = vld [vmem:[#allocation2 + $0x268] sm:$0xff]
  %v4278 = vld [vmem:[#allocation2 + $0x270] sm:$0xff]
  %v4279 = vld [vmem:[#allocation2 + $0x278] sm:$0xff]
  %v4280 = vld [vmem:[#allocation2 + $0x280] sm:$0xff]
  %v4281 = vld [vmem:[#allocation2 + $0x288] sm:$0x3]
  %v4282 = vpack.c.bf16 %v4276, %v4275
  %v4283 = vpack.c.bf16 %v4278, %v4277
  %v4284 = vpack.c.bf16 %v4280, %v4279
  %v4285 = vpack.c.bf16 %v4281, %v4281
  %v4286 = vld [vmem:[%s4 + $0x60] sm:$0xf]
  %v4287 = vld [vmem:[%s4 + $0x64] sm:$0xf]
  %v4290 = vunpack.c.l.b16 %v4286
  %v4291 = vunpack.c.l.b16 %v4287
  %v4292 = vpack.c.b16 %v4291, %v4290
  %v4295 = vsel %vm199, %v4282, 0
  %v4298 = vsel %vm199, %v4283, 0
  %v4301 = vsel %vm199, %v4284, 0
  %v4304 = vsel %vm199, %v4285, 0
  %4306 = vmatprep.subr.bf16.mxu0 0
  %4307 = vmatpush1.bf16.msra.mxu0 %v4292
  %4308 = vmatprep.subr.bf16.mxu0 0
  %4309 = vmatpush1.bf16.msra.mxu0 0
  %4310 = vmatprep.subr.bf16.mxu0 0
  %4311 = vmatpush1.bf16.msra.mxu0 0
  %4312 = vmatprep.subr.bf16.mxu0 0
  %4313 = vmatpush1.bf16.msra.mxu0 0
  %4314 = vmatprep.subr.bf16.mxu0 0
  %4315 = vmatpush1.bf16.msra.mxu0 0
  %4316 = vmatprep.subr.bf16.mxu0 0
  %4317 = vmatpush1.bf16.msra.mxu0 0
  %4318 = vmatprep.subr.bf16.mxu0 0
  %4319 = vmatpush1.bf16.msra.mxu0 0
  %4320 = vmatprep.subr.bf16.mxu0 0
  %4321 = vmatpush1.bf16.msra.mxu0 0
  %4322 = vmatprep.subr.bf16.mxu0 0
  %4323 = vmatpush1.bf16.msra.mxu0 0
  %4324 = vmatprep.subr.bf16.mxu0 0
  %4325 = vmatpush1.bf16.msra.mxu0 0
  %4326 = vmatprep.subr.bf16.mxu0 0
  %4327 = vmatpush1.bf16.msra.mxu0 0
  %4328 = vmatprep.subr.bf16.mxu0 0
  %4329 = vmatpush1.bf16.msra.mxu0 0
  %4330 = vmatprep.subr.bf16.mxu0 0
  %4331 = vmatpush1.bf16.msra.mxu0 0
  %4332 = vmatprep.subr.bf16.mxu0 0
  %4333 = vmatpush1.bf16.msra.mxu0 0
  %4334 = vmatprep.subr.bf16.mxu0 0
  %4335 = vmatpush1.bf16.msra.mxu0 0
  %4336 = vmatprep.subr.bf16.mxu0 0
  %4337 = vmatpush1.bf16.msra.mxu0 0
  %4338 = vmatprep.mubr.bf16.mxu0 0
  %4339 = vmatmul.mubr.bf16.gmra.mrb[0].mxu0 %v4295
  %v4340 = vpop.f32.mrb[0].mxu0
  %v4341 = vadd.f32 0.0, %v4340
  %v4342 = vpop.f32.mrb[0].mxu0
  %v4343 = vpop.f32.mrb[0].mxu0
  %v4344 = vadd.f32 0.0, %v4343
  %v4345 = vpop.f32.mrb[0].mxu0
  %4346 = vmatprep.mubr.bf16.mxu0 0
  %4347 = vmatmul.mubr.bf16.gmra.mrb[0].mxu0 %v4298
  %v4348 = vpop.f32.mrb[0].mxu0
  %v4349 = vadd.f32 0.0, %v4348
  %v4350 = vpop.f32.mrb[0].mxu0
  %v4351 = vpop.f32.mrb[0].mxu0
  %v4352 = vadd.f32 0.0, %v4351
  %v4353 = vpop.f32.mrb[0].mxu0
  %4354 = vmatprep.mubr.bf16.mxu0 0
  %4355 = vmatmul.mubr.bf16.gmra.mrb[0].mxu0 %v4301
  %v4356 = vpop.f32.mrb[0].mxu0
  %v4357 = vadd.f32 0.0, %v4356
  %v4358 = vpop.f32.mrb[0].mxu0
  %v4359 = vpop.f32.mrb[0].mxu0
  %v4360 = vadd.f32 0.0, %v4359
  %v4361 = vpop.f32.mrb[0].mxu0
  %4362 = vmatprep.mubr.bf16.mxu0 0
  %4363 = vmatmul.mubr.bf16.gmra.mrb[0].mxu0 %v4304
  %v4364 = vpop.f32.mrb[0].mxu0
  %v4365 = vadd.f32 0.0, %v4364
  %v4366 = vpop.f32.mrb[0].mxu0
  %v4367 = vpop.f32.mrb[0].mxu0
  %v4368 = vpop.f32.mrb[0].mxu0
  %4369 = vdwg.mxu0
  %v4370 = vadd.f32 %v4268, %v4341
  %v4371 = vadd.f32 %v4269, %v4344
  %v4372 = vadd.f32 %v4270, %v4349
  %v4373 = vadd.f32 %v4271, %v4352
  %v4374 = vadd.f32 %v4272, %v4357
  %v4375 = vadd.f32 %v4273, %v4360
  %v4376 = vadd.f32 %v4274, %v4365
  %v4377 = vld [vmem:[#allocation2 + $0x28a] sm:$0xff]
  %v4378 = vld [vmem:[#allocation2 + $0x292] sm:$0xff]
  %v4379 = vld [vmem:[#allocation2 + $0x29a] sm:$0xff]
  %v4380 = vld [vmem:[#allocation2 + $0x2a2] sm:$0xff]
  %v4381 = vld [vmem:[#allocation2 + $0x2aa] sm:$0xff]
  %v4382 = vld [vmem:[#allocation2 + $0x2b2] sm:$0xff]
  %v4383 = vld [vmem:[#allocation2 + $0x2ba] sm:$0x3]
  %v4384 = vpack.c.bf16 %v4378, %v4377
  %v4385 = vpack.c.bf16 %v4380, %v4379
  %v4386 = vpack.c.bf16 %v4382, %v4381
  %v4387 = vpack.c.bf16 %v4383, %v4383
  %v4388 = vld [vmem:[%s4 + $0x68] sm:$0xf]
  %v4389 = vld [vmem:[%s4 + $0x6c] sm:$0xf]
  %v4392 = vunpack.c.l.b16 %v4388
  %v4393 = vunpack.c.l.b16 %v4389
  %v4394 = vpack.c.b16 %v4393, %v4392
  %v4397 = vsel %vm199, %v4384, 0
  %v4400 = vsel %vm199, %v4385, 0
  %v4403 = vsel %vm199, %v4386, 0
  %v4406 = vsel %vm199, %v4387, 0
  %4408 = vmatprep.subr.bf16.mxu0 0
  %4409 = vmatpush1.bf16.msra.mxu0 %v4394
  %4410 = vmatprep.subr.bf16.mxu0 0
  %4411 = vmatpush1.bf16.msra.mxu0 0
  %4412 = vmatprep.subr.bf16.mxu0 0
  %4413 = vmatpush1.bf16.msra.mxu0 0
  %4414 = vmatprep.subr.bf16.mxu0 0
  %4415 = vmatpush1.bf16.msra.mxu0 0
  %4416 = vmatprep.subr.bf16.mxu0 0
  %4417 = vmatpush1.bf16.msra.mxu0 0
  %4418 = vmatprep.subr.bf16.mxu0 0
  %4419 = vmatpush1.bf16.msra.mxu0 0
  %4420 = vmatprep.subr.bf16.mxu0 0
  %4421 = vmatpush1.bf16.msra.mxu0 0
  %4422 = vmatprep.subr.bf16.mxu0 0
  %4423 = vmatpush1.bf16.msra.mxu0 0
  %4424 = vmatprep.subr.bf16.mxu0 0
  %4425 = vmatpush1.bf16.msra.mxu0 0
  %4426 = vmatprep.subr.bf16.mxu0 0
  %4427 = vmatpush1.bf16.msra.mxu0 0
  %4428 = vmatprep.subr.bf16.mxu0 0
  %4429 = vmatpush1.bf16.msra.mxu0 0
  %4430 = vmatprep.subr.bf16.mxu0 0
  %4431 = vmatpush1.bf16.msra.mxu0 0
  %4432 = vmatprep.subr.bf16.mxu0 0
  %4433 = vmatpush1.bf16.msra.mxu0 0
  %4434 = vmatprep.subr.bf16.mxu0 0
  %4435 = vmatpush1.bf16.msra.mxu0 0
  %4436 = vmatprep.subr.bf16.mxu0 0
  %4437 = vmatpush1.bf16.msra.mxu0 0
  %4438 = vmatprep.subr.bf16.mxu0 0
  %4439 = vmatpush1.bf16.msra.mxu0 0
  %4440 = vmatprep.mubr.bf16.mxu0 0
  %4441 = vmatmul.mubr.bf16.gmra.mrb[0].mxu0 %v4397
  %v4442 = vpop.f32.mrb[0].mxu0
  %v4443 = vadd.f32 0.0, %v4442
  %v4444 = vpop.f32.mrb[0].mxu0
  %v4445 = vpop.f32.mrb[0].mxu0
  %v4446 = vadd.f32 0.0, %v4445
  %v4447 = vpop.f32.mrb[0].mxu0
  %4448 = vmatprep.mubr.bf16.mxu0 0
  %4449 = vmatmul.mubr.bf16.gmra.mrb[0].mxu0 %v4400
  %v4450 = vpop.f32.mrb[0].mxu0
  %v4451 = vadd.f32 0.0, %v4450
  %v4452 = vpop.f32.mrb[0].mxu0
  %v4453 = vpop.f32.mrb[0].mxu0
  %v4454 = vadd.f32 0.0, %v4453
  %v4455 = vpop.f32.mrb[0].mxu0
  %4456 = vmatprep.mubr.bf16.mxu0 0
  %4457 = vmatmul.mubr.bf16.gmra.mrb[0].mxu0 %v4403
  %v4458 = vpop.f32.mrb[0].mxu0
  %v4459 = vadd.f32 0.0, %v4458
  %v4460 = vpop.f32.mrb[0].mxu0
  %v4461 = vpop.f32.mrb[0].mxu0
  %v4462 = vadd.f32 0.0, %v4461
  %v4463 = vpop.f32.mrb[0].mxu0
  %4464 = vmatprep.mubr.bf16.mxu0 0
  %4465 = vmatmul.mubr.bf16.gmra.mrb[0].mxu0 %v4406
  %v4466 = vpop.f32.mrb[0].mxu0
  %v4467 = vadd.f32 0.0, %v4466
  %v4468 = vpop.f32.mrb[0].mxu0
  %v4469 = vpop.f32.mrb[0].mxu0
  %v4470 = vpop.f32.mrb[0].mxu0
  %4471 = vdwg.mxu0
  %v4472 = vadd.f32 %v4370, %v4443
  %v4473 = vadd.f32 %v4371, %v4446
  %v4474 = vadd.f32 %v4372, %v4451
  %v4475 = vadd.f32 %v4373, %v4454
  %v4476 = vadd.f32 %v4374, %v4459
  %v4477 = vadd.f32 %v4375, %v4462
  %v4478 = vadd.f32 %v4376, %v4467
  %v4479 = vld [vmem:[#allocation2 + $0x2bc] sm:$0xff]
  %v4480 = vld [vmem:[#allocation2 + $0x2c4] sm:$0xff]
  %v4481 = vld [vmem:[#allocation2 + $0x2cc] sm:$0xff]
  %v4482 = vld [vmem:[#allocation2 + $0x2d4] sm:$0xff]
  %v4483 = vld [vmem:[#allocation2 + $0x2dc] sm:$0xff]
  %v4484 = vld [vmem:[#allocation2 + $0x2e4] sm:$0xff]
  %v4485 = vld [vmem:[#allocation2 + $0x2ec] sm:$0x3]
  %v4486 = vpack.c.bf16 %v4480, %v4479
  %v4487 = vpack.c.bf16 %v4482, %v4481
  %v4488 = vpack.c.bf16 %v4484, %v4483
  %v4489 = vpack.c.bf16 %v4485, %v4485
  %v4490 = vld [vmem:[%s4 + $0x70] sm:$0xf]
  %v4491 = vld [vmem:[%s4 + $0x74] sm:$0xf]
  %v4494 = vunpack.c.l.b16 %v4490
  %v4495 = vunpack.c.l.b16 %v4491
  %v4496 = vpack.c.b16 %v4495, %v4494
  %v4499 = vsel %vm199, %v4486, 0
  %v4502 = vsel %vm199, %v4487, 0
  %v4505 = vsel %vm199, %v4488, 0
  %v4508 = vsel %vm199, %v4489, 0
  %4510 = vmatprep.subr.bf16.mxu0 0
  %4511 = vmatpush1.bf16.msra.mxu0 %v4496
  %4512 = vmatprep.subr.bf16.mxu0 0
  %4513 = vmatpush1.bf16.msra.mxu0 0
  %4514 = vmatprep.subr.bf16.mxu0 0
  %4515 = vmatpush1.bf16.msra.mxu0 0
  %4516 = vmatprep.subr.bf16.mxu0 0
  %4517 = vmatpush1.bf16.msra.mxu0 0
  %4518 = vmatprep.subr.bf16.mxu0 0
  %4519 = vmatpush1.bf16.msra.mxu0 0
  %4520 = vmatprep.subr.bf16.mxu0 0
  %4521 = vmatpush1.bf16.msra.mxu0 0
  %4522 = vmatprep.subr.bf16.mxu0 0
  %4523 = vmatpush1.bf16.msra.mxu0 0
  %4524 = vmatprep.subr.bf16.mxu0 0
  %4525 = vmatpush1.bf16.msra.mxu0 0
  %4526 = vmatprep.subr.bf16.mxu0 0
  %4527 = vmatpush1.bf16.msra.mxu0 0
  %4528 = vmatprep.subr.bf16.mxu0 0
  %4529 = vmatpush1.bf16.msra.mxu0 0
  %4530 = vmatprep.subr.bf16.mxu0 0
  %4531 = vmatpush1.bf16.msra.mxu0 0
  %4532 = vmatprep.subr.bf16.mxu0 0
  %4533 = vmatpush1.bf16.msra.mxu0 0
  %4534 = vmatprep.subr.bf16.mxu0 0
  %4535 = vmatpush1.bf16.msra.mxu0 0
  %4536 = vmatprep.subr.bf16.mxu0 0
  %4537 = vmatpush1.bf16.msra.mxu0 0
  %4538 = vmatprep.subr.bf16.mxu0 0
  %4539 = vmatpush1.bf16.msra.mxu0 0
  %4540 = vmatprep.subr.bf16.mxu0 0
  %4541 = vmatpush1.bf16.msra.mxu0 0
  %4542 = vmatprep.mubr.bf16.mxu0 0
  %4543 = vmatmul.mubr.bf16.gmra.mrb[0].mxu0 %v4499
  %v4544 = vpop.f32.mrb[0].mxu0
  %v4545 = vadd.f32 0.0, %v4544
  %v4546 = vpop.f32.mrb[0].mxu0
  %v4547 = vpop.f32.mrb[0].mxu0
  %v4548 = vadd.f32 0.0, %v4547
  %v4549 = vpop.f32.mrb[0].mxu0
  %4550 = vmatprep.mubr.bf16.mxu0 0
  %4551 = vmatmul.mubr.bf16.gmra.mrb[0].mxu0 %v4502
  %v4552 = vpop.f32.mrb[0].mxu0
  %v4553 = vadd.f32 0.0, %v4552
  %v4554 = vpop.f32.mrb[0].mxu0
  %v4555 = vpop.f32.mrb[0].mxu0
  %v4556 = vadd.f32 0.0, %v4555
  %v4557 = vpop.f32.mrb[0].mxu0
  %4558 = vmatprep.mubr.bf16.mxu0 0
  %4559 = vmatmul.mubr.bf16.gmra.mrb[0].mxu0 %v4505
  %v4560 = vpop.f32.mrb[0].mxu0
  %v4561 = vadd.f32 0.0, %v4560
  %v4562 = vpop.f32.mrb[0].mxu0
  %v4563 = vpop.f32.mrb[0].mxu0
  %v4564 = vadd.f32 0.0, %v4563
  %v4565 = vpop.f32.mrb[0].mxu0
  %4566 = vmatprep.mubr.bf16.mxu0 0
  %4567 = vmatmul.mubr.bf16.gmra.mrb[0].mxu0 %v4508
  %v4568 = vpop.f32.mrb[0].mxu0
  %v4569 = vadd.f32 0.0, %v4568
  %v4570 = vpop.f32.mrb[0].mxu0
  %v4571 = vpop.f32.mrb[0].mxu0
  %v4572 = vpop.f32.mrb[0].mxu0
  %4573 = vdwg.mxu0
  %v4574 = vadd.f32 %v4472, %v4545
  %v4575 = vadd.f32 %v4473, %v4548
  %v4576 = vadd.f32 %v4474, %v4553
  %v4577 = vadd.f32 %v4475, %v4556
  %v4578 = vadd.f32 %v4476, %v4561
  %v4579 = vadd.f32 %v4477, %v4564
  %v4580 = vadd.f32 %v4478, %v4569
  %v4581 = vld [vmem:[#allocation2 + $0x2ee] sm:$0xff]
  %v4582 = vld [vmem:[#allocation2 + $0x2f6] sm:$0xff]
  %v4583 = vld [vmem:[#allocation2 + $0x2fe] sm:$0xff]
  %v4584 = vld [vmem:[#allocation2 + $0x306] sm:$0xff]
  %v4585 = vld [vmem:[#allocation2 + $0x30e] sm:$0xff]
  %v4586 = vld [vmem:[#allocation2 + $0x316] sm:$0xff]
  %v4587 = vld [vmem:[#allocation2 + $0x31e] sm:$0x3]
  %v4588 = vpack.c.bf16 %v4582, %v4581
  %v4589 = vpack.c.bf16 %v4584, %v4583
  %v4590 = vpack.c.bf16 %v4586, %v4585
  %v4591 = vpack.c.bf16 %v4587, %v4587
  %v4592 = vld [vmem:[%s4 + $0x78] sm:$0xf]
  %v4593 = vld [vmem:[%s4 + $0x7c] sm:$0xf]
  %v4596 = vunpack.c.l.b16 %v4592
  %v4597 = vunpack.c.l.b16 %v4593
  %v4598 = vpack.c.b16 %v4597, %v4596
  %v4601 = vsel %vm199, %v4588, 0
  %v4604 = vsel %vm199, %v4589, 0
  %v4607 = vsel %vm199, %v4590, 0
  %v4610 = vsel %vm199, %v4591, 0
  %4612 = vmatprep.subr.bf16.mxu0 0
  %4613 = vmatpush1.bf16.msra.mxu0 %v4598
  %4614 = vmatprep.subr.bf16.mxu0 0
  %4615 = vmatpush1.bf16.msra.mxu0 0
  %4616 = vmatprep.subr.bf16.mxu0 0
  %4617 = vmatpush1.bf16.msra.mxu0 0
  %4618 = vmatprep.subr.bf16.mxu0 0
  %4619 = vmatpush1.bf16.msra.mxu0 0
  %4620 = vmatprep.subr.bf16.mxu0 0
  %4621 = vmatpush1.bf16.msra.mxu0 0
  %4622 = vmatprep.subr.bf16.mxu0 0
  %4623 = vmatpush1.bf16.msra.mxu0 0
  %4624 = vmatprep.subr.bf16.mxu0 0
  %4625 = vmatpush1.bf16.msra.mxu0 0
  %4626 = vmatprep.subr.bf16.mxu0 0
  %4627 = vmatpush1.bf16.msra.mxu0 0
  %4628 = vmatprep.subr.bf16.mxu0 0
  %4629 = vmatpush1.bf16.msra.mxu0 0
  %4630 = vmatprep.subr.bf16.mxu0 0
  %4631 = vmatpush1.bf16.msra.mxu0 0
  %4632 = vmatprep.subr.bf16.mxu0 0
  %4633 = vmatpush1.bf16.msra.mxu0 0
  %4634 = vmatprep.subr.bf16.mxu0 0
  %4635 = vmatpush1.bf16.msra.mxu0 0
  %4636 = vmatprep.subr.bf16.mxu0 0
  %4637 = vmatpush1.bf16.msra.mxu0 0
  %4638 = vmatprep.subr.bf16.mxu0 0
  %4639 = vmatpush1.bf16.msra.mxu0 0
  %4640 = vmatprep.subr.bf16.mxu0 0
  %4641 = vmatpush1.bf16.msra.mxu0 0
  %4642 = vmatprep.subr.bf16.mxu0 0
  %4643 = vmatpush1.bf16.msra.mxu0 0
  %4644 = vmatprep.mubr.bf16.mxu0 0
  %4645 = vmatmul.mubr.bf16.gmra.mrb[0].mxu0 %v4601
  %v4646 = vpop.f32.mrb[0].mxu0
  %v4647 = vadd.f32 0.0, %v4646
  %v4648 = vpop.f32.mrb[0].mxu0
  %v4649 = vpop.f32.mrb[0].mxu0
  %v4650 = vadd.f32 0.0, %v4649
  %v4651 = vpop.f32.mrb[0].mxu0
  %4652 = vmatprep.mubr.bf16.mxu0 0
  %4653 = vmatmul.mubr.bf16.gmra.mrb[0].mxu0 %v4604
  %v4654 = vpop.f32.mrb[0].mxu0
  %v4655 = vadd.f32 0.0, %v4654
  %v4656 = vpop.f32.mrb[0].mxu0
  %v4657 = vpop.f32.mrb[0].mxu0
  %v4658 = vadd.f32 0.0, %v4657
  %v4659 = vpop.f32.mrb[0].mxu0
  %4660 = vmatprep.mubr.bf16.mxu0 0
  %4661 = vmatmul.mubr.bf16.gmra.mrb[0].mxu0 %v4607
  %v4662 = vpop.f32.mrb[0].mxu0
  %v4663 = vadd.f32 0.0, %v4662
  %v4664 = vpop.f32.mrb[0].mxu0
  %v4665 = vpop.f32.mrb[0].mxu0
  %v4666 = vadd.f32 0.0, %v4665
  %v4667 = vpop.f32.mrb[0].mxu0
  %4668 = vmatprep.mubr.bf16.mxu0 0
  %4669 = vmatmul.mubr.bf16.gmra.mrb[0].mxu0 %v4610
  %v4670 = vpop.f32.mrb[0].mxu0
  %v4671 = vadd.f32 0.0, %v4670
  %v4672 = vpop.f32.mrb[0].mxu0
  %v4673 = vpop.f32.mrb[0].mxu0
  %v4674 = vpop.f32.mrb[0].mxu0
  %4675 = vdwg.mxu0
  %v4676 = vadd.f32 %v4574, %v4647
  %v4677 = vadd.f32 %v4575, %v4650
  %v4678 = vadd.f32 %v4576, %v4655
  %v4679 = vadd.f32 %v4577, %v4658
  %v4680 = vadd.f32 %v4578, %v4663
  %v4681 = vadd.f32 %v4579, %v4666
  %v4682 = vadd.f32 %v4580, %v4671
  %v4683 = vld [vmem:[%s5] sm:$0x1]
  %v4684 = vlaneseq
  %v4685 = vshrl.u32 %v4684, 7
  %v4686 = vsub.s32 0, %v4685
  %v4687 = vrot.slane %v4683, %v4686
  %v4688 = vadd.f32 %v4676, %v4687
  %v4689 = vadd.f32 %v4677, %v4687
  %v4690 = vadd.f32 %v4678, %v4687
  %v4691 = vadd.f32 %v4679, %v4687
  %v4692 = vadd.f32 %v4680, %v4687
  %v4693 = vadd.f32 %v4681, %v4687
  %v4694 = vadd.f32 %v4682, %v4687
  %vm4695 = vcmask 261120
  %v4696 = vsel %vm4695, %v4688, 0.0
  %v4697 = vsel %vm4695, %v4689, 0.0
  %v4698 = vadd.f32 %v4696, %v4697
  %v4699 = vsel %vm4695, %v4690, 0.0
  %v4700 = vadd.f32 %v4698, %v4699
  %v4701 = vsel %vm4695, %v4691, 0.0
  %v4702 = vadd.f32 %v4700, %v4701
  %v4703 = vsel %vm4695, %v4692, 0.0
  %v4704 = vadd.f32 %v4702, %v4703
  %v4705 = vsel %vm4695, %v4693, 0.0
  %v4706 = vadd.f32 %v4704, %v4705
  %vm4707 = vcmask 254976
  %v4708 = vsel %vm4707, %v4694, 0.0
  %v4709 = vadd.f32 %v4706, %v4708
  %v4710 = vrot.slane %v4709, 4
  %v4711 = vadd.f32 %v4709, %v4710
  %v4712 = vrot.slane %v4711, 2
  %v4713 = vadd.f32 %v4711, %v4712
  %v4714 = vrot.slane %v4713, 1
  %v4715 = vadd.f32 %v4713, %v4714
  %v4716 = vmul.f32 %v4715, 0.02
  %v4717 = vsub.f32 %v4688, %v4716
  %v4718 = vsub.f32 %v4689, %v4716
  %v4719 = vsub.f32 %v4690, %v4716
  %v4720 = vsub.f32 %v4691, %v4716
  %v4721 = vsub.f32 %v4692, %v4716
  %v4722 = vsub.f32 %v4693, %v4716
  %v4723 = vsub.f32 %v4694, %v4716
  %v4724 = vmul.f32 %v4717, %v4717
  %v4725 = vmul.f32 %v4718, %v4718
  %v4726 = vmul.f32 %v4719, %v4719
  %v4727 = vmul.f32 %v4720, %v4720
  %v4728 = vmul.f32 %v4721, %v4721
  %v4729 = vmul.f32 %v4722, %v4722
  %v4730 = vmul.f32 %v4723, %v4723
  %v4731 = vsel %vm4695, %v4724, 0.0
  %v4732 = vsel %vm4695, %v4725, 0.0
  %v4733 = vadd.f32 %v4731, %v4732
  %v4734 = vsel %vm4695, %v4726, 0.0
  %v4735 = vadd.f32 %v4733, %v4734
  %v4736 = vsel %vm4695, %v4727, 0.0
  %v4737 = vadd.f32 %v4735, %v4736
  %v4738 = vsel %vm4695, %v4728, 0.0
  %v4739 = vadd.f32 %v4737, %v4738
  %v4740 = vsel %vm4695, %v4729, 0.0
  %v4741 = vadd.f32 %v4739, %v4740
  %v4742 = vsel %vm4707, %v4730, 0.0
  %v4743 = vadd.f32 %v4741, %v4742
  %v4744 = vrot.slane %v4743, 4
  %v4745 = vadd.f32 %v4743, %v4744
  %v4746 = vrot.slane %v4745, 2
  %v4747 = vadd.f32 %v4745, %v4746
  %v4748 = vrot.slane %v4747, 1
  %v4749 = vadd.f32 %v4747, %v4748
  %v4750 = vmul.f32 %v4749, 0.02
  %v4751 = vadd.f32 %v4750, 1e-05
  %v4752 = vrsqrt.pop %v4751
  %v4753 = vmul.f32 %v4717, %v4752
  %v4754 = vmul.f32 %v4718, %v4752
  %v4755 = vmul.f32 %v4719, %v4752
  %v4756 = vmul.f32 %v4720, %v4752
  %v4757 = vmul.f32 %v4721, %v4752
  %v4758 = vmul.f32 %v4722, %v4752
  %v4759 = vmul.f32 %v4723, %v4752
  %v4760 = vld [vmem:[%s5 + $0x1] sm:$0x1]
  %v4761 = vlaneseq
  %v4762 = vshrl.u32 %v4761, 7
  %v4763 = vsub.s32 0, %v4762
  %v4764 = vrot.slane %v4760, %v4763
  %v4765 = vmul.f32 %v4753, %v4764
  %v4766 = vmul.f32 %v4754, %v4764
  %v4767 = vmul.f32 %v4755, %v4764
  %v4768 = vmul.f32 %v4756, %v4764
  %v4769 = vmul.f32 %v4757, %v4764
  %v4770 = vmul.f32 %v4758, %v4764
  %v4771 = vmul.f32 %v4759, %v4764
  %v4772 = vld [vmem:[%s5 + $0x2] sm:$0x1]
  %v4773 = vlaneseq
  %v4774 = vshrl.u32 %v4773, 7
  %v4775 = vsub.s32 0, %v4774
  %v4776 = vrot.slane %v4772, %v4775
  %v4777 = vadd.f32 %v4765, %v4776
  %v4778 = vadd.f32 %v4766, %v4776
  %v4779 = vadd.f32 %v4767, %v4776
  %v4780 = vadd.f32 %v4768, %v4776
  %v4781 = vadd.f32 %v4769, %v4776
  %v4782 = vadd.f32 %v4770, %v4776
  %v4783 = vadd.f32 %v4771, %v4776
  %v4784 = vmul.f32 %v4777, 0.2
  %v4785 = vmul.f32 %v4778, 0.2
  %v4786 = vmul.f32 %v4779, 0.2
  %v4787 = vmul.f32 %v4780, 0.2
  %v4788 = vmul.f32 %v4781, 0.2
  %v4789 = vmul.f32 %v4782, 0.2
  %v4790 = vmul.f32 %v4783, 0.2
  %v4791 = vmax.f32 %v4777, %v4784
  %v4792 = vmax.f32 %v4778, %v4785
  %v4793 = vmax.f32 %v4779, %v4786
  %v4794 = vmax.f32 %v4780, %v4787
  %v4795 = vmax.f32 %v4781, %v4788
  %v4796 = vmax.f32 %v4782, %v4789
  %v4797 = vmax.f32 %v4783, %v4790
  %v4798 = vpack.c.bf16 %v4792, %v4791
  %v4799 = vpack.c.bf16 %v4794, %v4793
  %v4800 = vpack.c.bf16 %v4796, %v4795
  %v4801 = vpack.c.bf16 %v4797, %v4797
  %v4802 = vld [vmem:[%s6] sm:$0xf]
  %v4803 = vld [vmem:[%s6 + $0x4] sm:$0xf]
  %v4804 = vld [vmem:[%s6 + $0x8] sm:$0xf]
  %v4805 = vld [vmem:[%s6 + $0xc] sm:$0xf]
  %v4810 = vunpack.c.l.b16 %v4802
  %v4811 = vunpack.c.l.b16 %v4803
  %v4812 = vunpack.c.l.b16 %v4804
  %v4813 = vunpack.c.l.b16 %v4805
  %v4814 = vpack.c.b16 %v4811, %v4810
  %v4815 = vpack.c.b16 %v4813, %v4812
  %vm4816 = vcmask 408576
  %v4818 = vsel %vm4816, %v4814, 0
  %v4821 = vsel %vm4816, %v4815, 0
  %v4824 = vsel %vm2095, %v4801, 0
  %4826 = vmatprep.subr.bf16.mxu0 0
  %4827 = vmatpush1.bf16.msra.mxu0 %v4798
  %4828 = vmatprep.subr.bf16.mxu0 0
  %4829 = vmatpush1.bf16.msra.mxu0 %v4799
  %4830 = vmatprep.subr.bf16.mxu0 0
  %4831 = vmatpush1.bf16.msra.mxu0 %v4800
  %4832 = vmatprep.subr.bf16.mxu0 0
  %4833 = vmatpush1.bf16.msra.mxu0 %v4824
  %4834 = vmatprep.subr.bf16.mxu0 0
  %4835 = vmatpush1.bf16.msra.mxu0 0
  %4836 = vmatprep.subr.bf16.mxu0 0
  %4837 = vmatpush1.bf16.msra.mxu0 0
  %4838 = vmatprep.subr.bf16.mxu0 0
  %4839 = vmatpush1.bf16.msra.mxu0 0
  %4840 = vmatprep.subr.bf16.mxu0 0
  %4841 = vmatpush1.bf16.msra.mxu0 0
  %4842 = vmatprep.subr.bf16.mxu0 0
  %4843 = vmatpush1.bf16.msra.mxu0 0
  %4844 = vmatprep.subr.bf16.mxu0 0
  %4845 = vmatpush1.bf16.msra.mxu0 0
  %4846 = vmatprep.subr.bf16.mxu0 0
  %4847 = vmatpush1.bf16.msra.mxu0 0
  %4848 = vmatprep.subr.bf16.mxu0 0
  %4849 = vmatpush1.bf16.msra.mxu0 0
  %4850 = vmatprep.subr.bf16.mxu0 0
  %4851 = vmatpush1.bf16.msra.mxu0 0
  %4852 = vmatprep.subr.bf16.mxu0 0
  %4853 = vmatpush1.bf16.msra.mxu0 0
  %4854 = vmatprep.subr.bf16.mxu0 0
  %4855 = vmatpush1.bf16.msra.mxu0 0
  %4856 = vmatprep.subr.bf16.mxu0 0
  %4857 = vmatpush1.bf16.msra.mxu0 0
  %4858 = vmatprep.mubr.bf16.mxu0 0
  %4859 = vmatmul.mubr.bf16.gmra.mrb[0].mxu0 %v4818
  %v4860 = vpop.f32.mrb[0].mxu0
  %v4861 = vadd.f32 0.0, %v4860
  %v4862 = vpop.f32.mrb[0].mxu0
  %v4863 = vpop.f32.mrb[0].mxu0
  %v4864 = vadd.f32 0.0, %v4863
  %v4865 = vpop.f32.mrb[0].mxu0
  %4866 = vmatprep.mubr.bf16.mxu0 0
  %4867 = vmatmul.mubr.bf16.gmra.mrb[0].mxu0 %v4821
  %v4868 = vpop.f32.mrb[0].mxu0
  %v4869 = vadd.f32 0.0, %v4868
  %v4870 = vpop.f32.mrb[0].mxu0
  %v4871 = vpop.f32.mrb[0].mxu0
  %v4872 = vadd.f32 0.0, %v4871
  %v4873 = vpop.f32.mrb[0].mxu0
  %4874 = vdwg.mxu0
  %4875 = vst.msk [vmem:[#allocation3] sm:$0xff] %vm4695, %v4861
  %4876 = vst.msk [vmem:[#allocation3 + $0x8] sm:$0xff] %vm4695, %v4864
  %4877 = vst.msk [vmem:[#allocation3 + $0x10] sm:$0xff] %vm4695, %v4869
  %4878 = vst.msk [vmem:[#allocation3 + $0x18] sm:$0xff] %vm4695, %v4872
  %v4879 = vld [vmem:[#allocation3] sm:$0x3]
  %v4880 = vpack.c.bf16 %v4879, %v4879
  %v4881 = vld [vmem:[%s7] sm:$0xf]
  %v4882 = vld [vmem:[%s7 + $0x4] sm:$0xf]
  %v4883 = vld [vmem:[%s7 + $0x8] sm:$0xf]
  %v4884 = vld [vmem:[%s7 + $0xc] sm:$0xf]
  %v4885 = vld [vmem:[#allocation3 + $0x2] sm:$0x3]
  %v4886 = vpack.c.bf16 %v4885, %v4885
  %v4887 = vld [vmem:[%s7 + $0x10] sm:$0xf]
  %v4888 = vld [vmem:[%s7 + $0x14] sm:$0xf]
  %v4889 = vld [vmem:[%s7 + $0x18] sm:$0xf]
  %v4890 = vld [vmem:[%s7 + $0x1c] sm:$0xf]
  %v4895 = vunpack.c.l.b16 %v4887
  %v4896 = vunpack.c.l.b16 %v4888
  %v4897 = vunpack.c.l.b16 %v4889
  %v4898 = vunpack.c.l.b16 %v4890
  %v4899 = vpack.c.b16 %v4896, %v4895
  %v4900 = vpack.c.b16 %v4898, %v4897
  %v4904 = vsel %vm4695, %v4886, 0
  %4906 = vmatprep.subr.bf16.mxu0 0
  %4907 = vmatpush1.bf16.msra.mxu0 %v4899
  %4908 = vmatprep.subr.bf16.mxu0 0
  %4909 = vmatpush1.bf16.msra.mxu0 %v4900
  %4910 = vmatprep.subr.bf16.mxu0 0
  %4911 = vmatpush1.bf16.msra.mxu0 0
  %4912 = vmatprep.subr.bf16.mxu0 0
  %4913 = vmatpush1.bf16.msra.mxu0 0
  %4914 = vmatprep.subr.bf16.mxu0 0
  %4915 = vmatpush1.bf16.msra.mxu0 0
  %4916 = vmatprep.subr.bf16.mxu0 0
  %4917 = vmatpush1.bf16.msra.mxu0 0
  %4918 = vmatprep.subr.bf16.mxu0 0
  %4919 = vmatpush1.bf16.msra.mxu0 0
  %4920 = vmatprep.subr.bf16.mxu0 0
  %4921 = vmatpush1.bf16.msra.mxu0 0
  %4922 = vmatprep.subr.bf16.mxu0 0
  %4923 = vmatpush1.bf16.msra.mxu0 0
  %4924 = vmatprep.subr.bf16.mxu0 0
  %4925 = vmatpush1.bf16.msra.mxu0 0
  %4926 = vmatprep.subr.bf16.mxu0 0
  %4927 = vmatpush1.bf16.msra.mxu0 0
  %4928 = vmatprep.subr.bf16.mxu0 0
  %4929 = vmatpush1.bf16.msra.mxu0 0
  %4930 = vmatprep.subr.bf16.mxu0 0
  %4931 = vmatpush1.bf16.msra.mxu0 0
  %4932 = vmatprep.subr.bf16.mxu0 0
  %4933 = vmatpush1.bf16.msra.mxu0 0
  %4934 = vmatprep.subr.bf16.mxu0 0
  %4935 = vmatpush1.bf16.msra.mxu0 0
  %4936 = vmatprep.subr.bf16.mxu0 0
  %4937 = vmatpush1.bf16.msra.mxu0 0
  %4938 = vmatprep.mubr.bf16.mxu0 0
  %4939 = vmatmul.mubr.bf16.gmra.mrb[0].mxu0 %v4904
  %v4940 = vpop.f32.mrb[0].mxu0
  %v4941 = vadd.f32 0.0, %v4940
  %v4942 = vpop.f32.mrb[0].mxu0
  %v4943 = vpop.f32.mrb[0].mxu0
  %v4944 = vpop.f32.mrb[0].mxu0
  %4945 = vdwg.mxu0
  %v4950 = vunpack.c.l.b16 %v4881
  %v4951 = vunpack.c.l.b16 %v4882
  %v4952 = vunpack.c.l.b16 %v4883
  %v4953 = vunpack.c.l.b16 %v4884
  %v4954 = vpack.c.b16 %v4951, %v4950
  %v4955 = vpack.c.b16 %v4953, %v4952
  %v4959 = vsel %vm4695, %v4880, 0
  %4961 = vmatprep.subr.bf16.mxu0 0
  %4962 = vmatpush1.bf16.msra.mxu0 %v4954
  %4963 = vmatprep.subr.bf16.mxu0 0
  %4964 = vmatpush1.bf16.msra.mxu0 %v4955
  %4965 = vmatprep.subr.bf16.mxu0 0
  %4966 = vmatpush1.bf16.msra.mxu0 0
  %4967 = vmatprep.subr.bf16.mxu0 0
  %4968 = vmatpush1.bf16.msra.mxu0 0
  %4969 = vmatprep.subr.bf16.mxu0 0
  %4970 = vmatpush1.bf16.msra.mxu0 0
  %4971 = vmatprep.subr.bf16.mxu0 0
  %4972 = vmatpush1.bf16.msra.mxu0 0
  %4973 = vmatprep.subr.bf16.mxu0 0
  %4974 = vmatpush1.bf16.msra.mxu0 0
  %4975 = vmatprep.subr.bf16.mxu0 0
  %4976 = vmatpush1.bf16.msra.mxu0 0
  %4977 = vmatprep.subr.bf16.mxu0 0
  %4978 = vmatpush1.bf16.msra.mxu0 0
  %4979 = vmatprep.subr.bf16.mxu0 0
  %4980 = vmatpush1.bf16.msra.mxu0 0
  %4981 = vmatprep.subr.bf16.mxu0 0
  %4982 = vmatpush1.bf16.msra.mxu0 0
  %4983 = vmatprep.subr.bf16.mxu0 0
  %4984 = vmatpush1.bf16.msra.mxu0 0
  %4985 = vmatprep.subr.bf16.mxu0 0
  %4986 = vmatpush1.bf16.msra.mxu0 0
  %4987 = vmatprep.subr.bf16.mxu0 0
  %4988 = vmatpush1.bf16.msra.mxu0 0
  %4989 = vmatprep.subr.bf16.mxu0 0
  %4990 = vmatpush1.bf16.msra.mxu0 0
  %4991 = vmatprep.subr.bf16.mxu0 0
  %4992 = vmatpush1.bf16.msra.mxu0 0
  %4993 = vmatprep.mubr.bf16.mxu0 0
  %4994 = vmatmul.mubr.bf16.gmra.mrb[0].mxu0 %v4959
  %v4995 = vpop.f32.mrb[0].mxu0
  %v4996 = vadd.f32 %v4941, %v4995
  %v4997 = vpop.f32.mrb[0].mxu0
  %v4998 = vpop.f32.mrb[0].mxu0
  %v4999 = vpop.f32.mrb[0].mxu0
  %5000 = vdwg.mxu0
  %v5001 = vld [vmem:[#allocation3 + $0x4] sm:$0x3]
  %v5002 = vpack.c.bf16 %v5001, %v5001
  %v5003 = vld [vmem:[%s7 + $0x20] sm:$0xf]
  %v5004 = vld [vmem:[%s7 + $0x24] sm:$0xf]
  %v5005 = vld [vmem:[%s7 + $0x28] sm:$0xf]
  %v5006 = vld [vmem:[%s7 + $0x2c] sm:$0xf]
  %v5011 = vunpack.c.l.b16 %v5003
  %v5012 = vunpack.c.l.b16 %v5004
  %v5013 = vunpack.c.l.b16 %v5005
  %v5014 = vunpack.c.l.b16 %v5006
  %v5015 = vpack.c.b16 %v5012, %v5011
  %v5016 = vpack.c.b16 %v5014, %v5013
  %v5020 = vsel %vm4695, %v5002, 0
  %5022 = vmatprep.subr.bf16.mxu0 0
  %5023 = vmatpush1.bf16.msra.mxu0 %v5015
  %5024 = vmatprep.subr.bf16.mxu0 0
  %5025 = vmatpush1.bf16.msra.mxu0 %v5016
  %5026 = vmatprep.subr.bf16.mxu0 0
  %5027 = vmatpush1.bf16.msra.mxu0 0
  %5028 = vmatprep.subr.bf16.mxu0 0
  %5029 = vmatpush1.bf16.msra.mxu0 0
  %5030 = vmatprep.subr.bf16.mxu0 0
  %5031 = vmatpush1.bf16.msra.mxu0 0
  %5032 = vmatprep.subr.bf16.mxu0 0
  %5033 = vmatpush1.bf16.msra.mxu0 0
  %5034 = vmatprep.subr.bf16.mxu0 0
  %5035 = vmatpush1.bf16.msra.mxu0 0
  %5036 = vmatprep.subr.bf16.mxu0 0
  %5037 = vmatpush1.bf16.msra.mxu0 0
  %5038 = vmatprep.subr.bf16.mxu0 0
  %5039 = vmatpush1.bf16.msra.mxu0 0
  %5040 = vmatprep.subr.bf16.mxu0 0
  %5041 = vmatpush1.bf16.msra.mxu0 0
  %5042 = vmatprep.subr.bf16.mxu0 0
  %5043 = vmatpush1.bf16.msra.mxu0 0
  %5044 = vmatprep.subr.bf16.mxu0 0
  %5045 = vmatpush1.bf16.msra.mxu0 0
  %5046 = vmatprep.subr.bf16.mxu0 0
  %5047 = vmatpush1.bf16.msra.mxu0 0
  %5048 = vmatprep.subr.bf16.mxu0 0
  %5049 = vmatpush1.bf16.msra.mxu0 0
  %5050 = vmatprep.subr.bf16.mxu0 0
  %5051 = vmatpush1.bf16.msra.mxu0 0
  %5052 = vmatprep.subr.bf16.mxu0 0
  %5053 = vmatpush1.bf16.msra.mxu0 0
  %5054 = vmatprep.mubr.bf16.mxu0 0
  %5055 = vmatmul.mubr.bf16.gmra.mrb[0].mxu0 %v5020
  %v5056 = vpop.f32.mrb[0].mxu0
  %v5057 = vadd.f32 0.0, %v5056
  %v5058 = vpop.f32.mrb[0].mxu0
  %v5059 = vpop.f32.mrb[0].mxu0
  %v5060 = vpop.f32.mrb[0].mxu0
  %5061 = vdwg.mxu0
  %v5062 = vadd.f32 %v4996, %v5057
  %v5063 = vld [vmem:[#allocation3 + $0x6] sm:$0x3]
  %v5064 = vpack.c.bf16 %v5063, %v5063
  %v5065 = vld [vmem:[%s7 + $0x30] sm:$0xf]
  %v5066 = vld [vmem:[%s7 + $0x34] sm:$0xf]
  %v5067 = vld [vmem:[%s7 + $0x38] sm:$0xf]
  %v5068 = vld [vmem:[%s7 + $0x3c] sm:$0xf]
  %v5073 = vunpack.c.l.b16 %v5065
  %v5074 = vunpack.c.l.b16 %v5066
  %v5075 = vunpack.c.l.b16 %v5067
  %v5076 = vunpack.c.l.b16 %v5068
  %v5077 = vpack.c.b16 %v5074, %v5073
  %v5078 = vpack.c.b16 %v5076, %v5075
  %v5082 = vsel %vm4695, %v5064, 0
  %5084 = vmatprep.subr.bf16.mxu0 0
  %5085 = vmatpush1.bf16.msra.mxu0 %v5077
  %5086 = vmatprep.subr.bf16.mxu0 0
  %5087 = vmatpush1.bf16.msra.mxu0 %v5078
  %5088 = vmatprep.subr.bf16.mxu0 0
  %5089 = vmatpush1.bf16.msra.mxu0 0
  %5090 = vmatprep.subr.bf16.mxu0 0
  %5091 = vmatpush1.bf16.msra.mxu0 0
  %5092 = vmatprep.subr.bf16.mxu0 0
  %5093 = vmatpush1.bf16.msra.mxu0 0
  %5094 = vmatprep.subr.bf16.mxu0 0
  %5095 = vmatpush1.bf16.msra.mxu0 0
  %5096 = vmatprep.subr.bf16.mxu0 0
  %5097 = vmatpush1.bf16.msra.mxu0 0
  %5098 = vmatprep.subr.bf16.mxu0 0
  %5099 = vmatpush1.bf16.msra.mxu0 0
  %5100 = vmatprep.subr.bf16.mxu0 0
  %5101 = vmatpush1.bf16.msra.mxu0 0
  %5102 = vmatprep.subr.bf16.mxu0 0
  %5103 = vmatpush1.bf16.msra.mxu0 0
  %5104 = vmatprep.subr.bf16.mxu0 0
  %5105 = vmatpush1.bf16.msra.mxu0 0
  %5106 = vmatprep.subr.bf16.mxu0 0
  %5107 = vmatpush1.bf16.msra.mxu0 0
  %5108 = vmatprep.subr.bf16.mxu0 0
  %5109 = vmatpush1.bf16.msra.mxu0 0
  %5110 = vmatprep.subr.bf16.mxu0 0
  %5111 = vmatpush1.bf16.msra.mxu0 0
  %5112 = vmatprep.subr.bf16.mxu0 0
  %5113 = vmatpush1.bf16.msra.mxu0 0
  %5114 = vmatprep.subr.bf16.mxu0 0
  %5115 = vmatpush1.bf16.msra.mxu0 0
  %5116 = vmatprep.mubr.bf16.mxu0 0
  %5117 = vmatmul.mubr.bf16.gmra.mrb[0].mxu0 %v5082
  %v5118 = vpop.f32.mrb[0].mxu0
  %v5119 = vadd.f32 0.0, %v5118
  %v5120 = vpop.f32.mrb[0].mxu0
  %v5121 = vpop.f32.mrb[0].mxu0
  %v5122 = vpop.f32.mrb[0].mxu0
  %5123 = vdwg.mxu0
  %v5124 = vadd.f32 %v5062, %v5119
  %v5125 = vld [vmem:[#allocation3 + $0x8] sm:$0x3]
  %v5126 = vpack.c.bf16 %v5125, %v5125
  %v5127 = vld [vmem:[%s7 + $0x40] sm:$0xf]
  %v5128 = vld [vmem:[%s7 + $0x44] sm:$0xf]
  %v5129 = vld [vmem:[%s7 + $0x48] sm:$0xf]
  %v5130 = vld [vmem:[%s7 + $0x4c] sm:$0xf]
  %v5135 = vunpack.c.l.b16 %v5127
  %v5136 = vunpack.c.l.b16 %v5128
  %v5137 = vunpack.c.l.b16 %v5129
  %v5138 = vunpack.c.l.b16 %v5130
  %v5139 = vpack.c.b16 %v5136, %v5135
  %v5140 = vpack.c.b16 %v5138, %v5137
  %v5144 = vsel %vm4695, %v5126, 0
  %5146 = vmatprep.subr.bf16.mxu0 0
  %5147 = vmatpush1.bf16.msra.mxu0 %v5139
  %5148 = vmatprep.subr.bf16.mxu0 0
  %5149 = vmatpush1.bf16.msra.mxu0 %v5140
  %5150 = vmatprep.subr.bf16.mxu0 0
  %5151 = vmatpush1.bf16.msra.mxu0 0
  %5152 = vmatprep.subr.bf16.mxu0 0
  %5153 = vmatpush1.bf16.msra.mxu0 0
  %5154 = vmatprep.subr.bf16.mxu0 0
  %5155 = vmatpush1.bf16.msra.mxu0 0
  %5156 = vmatprep.subr.bf16.mxu0 0
  %5157 = vmatpush1.bf16.msra.mxu0 0
  %5158 = vmatprep.subr.bf16.mxu0 0
  %5159 = vmatpush1.bf16.msra.mxu0 0
  %5160 = vmatprep.subr.bf16.mxu0 0
  %5161 = vmatpush1.bf16.msra.mxu0 0
  %5162 = vmatprep.subr.bf16.mxu0 0
  %5163 = vmatpush1.bf16.msra.mxu0 0
  %5164 = vmatprep.subr.bf16.mxu0 0
  %5165 = vmatpush1.bf16.msra.mxu0 0
  %5166 = vmatprep.subr.bf16.mxu0 0
  %5167 = vmatpush1.bf16.msra.mxu0 0
  %5168 = vmatprep.subr.bf16.mxu0 0
  %5169 = vmatpush1.bf16.msra.mxu0 0
  %5170 = vmatprep.subr.bf16.mxu0 0
  %5171 = vmatpush1.bf16.msra.mxu0 0
  %5172 = vmatprep.subr.bf16.mxu0 0
  %5173 = vmatpush1.bf16.msra.mxu0 0
  %5174 = vmatprep.subr.bf16.mxu0 0
  %5175 = vmatpush1.bf16.msra.mxu0 0
  %5176 = vmatprep.subr.bf16.mxu0 0
  %5177 = vmatpush1.bf16.msra.mxu0 0
  %5178 = vmatprep.mubr.bf16.mxu0 0
  %5179 = vmatmul.mubr.bf16.gmra.mrb[0].mxu0 %v5144
  %v5180 = vpop.f32.mrb[0].mxu0
  %v5181 = vadd.f32 0.0, %v5180
  %v5182 = vpop.f32.mrb[0].mxu0
  %v5183 = vpop.f32.mrb[0].mxu0
  %v5184 = vpop.f32.mrb[0].mxu0
  %5185 = vdwg.mxu0
  %v5186 = vadd.f32 %v5124, %v5181
  %v5187 = vld [vmem:[#allocation3 + $0xa] sm:$0x3]
  %v5188 = vpack.c.bf16 %v5187, %v5187
  %v5189 = vld [vmem:[%s7 + $0x50] sm:$0xf]
  %v5190 = vld [vmem:[%s7 + $0x54] sm:$0xf]
  %v5191 = vld [vmem:[%s7 + $0x58] sm:$0xf]
  %v5192 = vld [vmem:[%s7 + $0x5c] sm:$0xf]
  %v5197 = vunpack.c.l.b16 %v5189
  %v5198 = vunpack.c.l.b16 %v5190
  %v5199 = vunpack.c.l.b16 %v5191
  %v5200 = vunpack.c.l.b16 %v5192
  %v5201 = vpack.c.b16 %v5198, %v5197
  %v5202 = vpack.c.b16 %v5200, %v5199
  %v5206 = vsel %vm4695, %v5188, 0
  %5208 = vmatprep.subr.bf16.mxu0 0
  %5209 = vmatpush1.bf16.msra.mxu0 %v5201
  %5210 = vmatprep.subr.bf16.mxu0 0
  %5211 = vmatpush1.bf16.msra.mxu0 %v5202
  %5212 = vmatprep.subr.bf16.mxu0 0
  %5213 = vmatpush1.bf16.msra.mxu0 0
  %5214 = vmatprep.subr.bf16.mxu0 0
  %5215 = vmatpush1.bf16.msra.mxu0 0
  %5216 = vmatprep.subr.bf16.mxu0 0
  %5217 = vmatpush1.bf16.msra.mxu0 0
  %5218 = vmatprep.subr.bf16.mxu0 0
  %5219 = vmatpush1.bf16.msra.mxu0 0
  %5220 = vmatprep.subr.bf16.mxu0 0
  %5221 = vmatpush1.bf16.msra.mxu0 0
  %5222 = vmatprep.subr.bf16.mxu0 0
  %5223 = vmatpush1.bf16.msra.mxu0 0
  %5224 = vmatprep.subr.bf16.mxu0 0
  %5225 = vmatpush1.bf16.msra.mxu0 0
  %5226 = vmatprep.subr.bf16.mxu0 0
  %5227 = vmatpush1.bf16.msra.mxu0 0
  %5228 = vmatprep.subr.bf16.mxu0 0
  %5229 = vmatpush1.bf16.msra.mxu0 0
  %5230 = vmatprep.subr.bf16.mxu0 0
  %5231 = vmatpush1.bf16.msra.mxu0 0
  %5232 = vmatprep.subr.bf16.mxu0 0
  %5233 = vmatpush1.bf16.msra.mxu0 0
  %5234 = vmatprep.subr.bf16.mxu0 0
  %5235 = vmatpush1.bf16.msra.mxu0 0
  %5236 = vmatprep.subr.bf16.mxu0 0
  %5237 = vmatpush1.bf16.msra.mxu0 0
  %5238 = vmatprep.subr.bf16.mxu0 0
  %5239 = vmatpush1.bf16.msra.mxu0 0
  %5240 = vmatprep.mubr.bf16.mxu0 0
  %5241 = vmatmul.mubr.bf16.gmra.mrb[0].mxu0 %v5206
  %v5242 = vpop.f32.mrb[0].mxu0
  %v5243 = vadd.f32 0.0, %v5242
  %v5244 = vpop.f32.mrb[0].mxu0
  %v5245 = vpop.f32.mrb[0].mxu0
  %v5246 = vpop.f32.mrb[0].mxu0
  %5247 = vdwg.mxu0
  %v5248 = vadd.f32 %v5186, %v5243
  %v5249 = vld [vmem:[#allocation3 + $0xc] sm:$0x3]
  %v5250 = vpack.c.bf16 %v5249, %v5249
  %v5251 = vld [vmem:[%s7 + $0x60] sm:$0xf]
  %v5252 = vld [vmem:[%s7 + $0x64] sm:$0xf]
  %v5253 = vld [vmem:[%s7 + $0x68] sm:$0xf]
  %v5254 = vld [vmem:[%s7 + $0x6c] sm:$0xf]
  %v5259 = vunpack.c.l.b16 %v5251
  %v5260 = vunpack.c.l.b16 %v5252
  %v5261 = vunpack.c.l.b16 %v5253
  %v5262 = vunpack.c.l.b16 %v5254
  %v5263 = vpack.c.b16 %v5260, %v5259
  %v5264 = vpack.c.b16 %v5262, %v5261
  %v5268 = vsel %vm4695, %v5250, 0
  %5270 = vmatprep.subr.bf16.mxu0 0
  %5271 = vmatpush1.bf16.msra.mxu0 %v5263
  %5272 = vmatprep.subr.bf16.mxu0 0
  %5273 = vmatpush1.bf16.msra.mxu0 %v5264
  %5274 = vmatprep.subr.bf16.mxu0 0
  %5275 = vmatpush1.bf16.msra.mxu0 0
  %5276 = vmatprep.subr.bf16.mxu0 0
  %5277 = vmatpush1.bf16.msra.mxu0 0
  %5278 = vmatprep.subr.bf16.mxu0 0
  %5279 = vmatpush1.bf16.msra.mxu0 0
  %5280 = vmatprep.subr.bf16.mxu0 0
  %5281 = vmatpush1.bf16.msra.mxu0 0
  %5282 = vmatprep.subr.bf16.mxu0 0
  %5283 = vmatpush1.bf16.msra.mxu0 0
  %5284 = vmatprep.subr.bf16.mxu0 0
  %5285 = vmatpush1.bf16.msra.mxu0 0
  %5286 = vmatprep.subr.bf16.mxu0 0
  %5287 = vmatpush1.bf16.msra.mxu0 0
  %5288 = vmatprep.subr.bf16.mxu0 0
  %5289 = vmatpush1.bf16.msra.mxu0 0
  %5290 = vmatprep.subr.bf16.mxu0 0
  %5291 = vmatpush1.bf16.msra.mxu0 0
  %5292 = vmatprep.subr.bf16.mxu0 0
  %5293 = vmatpush1.bf16.msra.mxu0 0
  %5294 = vmatprep.subr.bf16.mxu0 0
  %5295 = vmatpush1.bf16.msra.mxu0 0
  %5296 = vmatprep.subr.bf16.mxu0 0
  %5297 = vmatpush1.bf16.msra.mxu0 0
  %5298 = vmatprep.subr.bf16.mxu0 0
  %5299 = vmatpush1.bf16.msra.mxu0 0
  %5300 = vmatprep.subr.bf16.mxu0 0
  %5301 = vmatpush1.bf16.msra.mxu0 0
  %5302 = vmatprep.mubr.bf16.mxu0 0
  %5303 = vmatmul.mubr.bf16.gmra.mrb[0].mxu0 %v5268
  %v5304 = vpop.f32.mrb[0].mxu0
  %v5305 = vadd.f32 0.0, %v5304
  %v5306 = vpop.f32.mrb[0].mxu0
  %v5307 = vpop.f32.mrb[0].mxu0
  %v5308 = vpop.f32.mrb[0].mxu0
  %5309 = vdwg.mxu0
  %v5310 = vadd.f32 %v5248, %v5305
  %v5311 = vld [vmem:[#allocation3 + $0xe] sm:$0x3]
  %v5312 = vpack.c.bf16 %v5311, %v5311
  %v5313 = vld [vmem:[%s7 + $0x70] sm:$0xf]
  %v5314 = vld [vmem:[%s7 + $0x74] sm:$0xf]
  %v5315 = vld [vmem:[%s7 + $0x78] sm:$0xf]
  %v5316 = vld [vmem:[%s7 + $0x7c] sm:$0xf]
  %v5321 = vunpack.c.l.b16 %v5313
  %v5322 = vunpack.c.l.b16 %v5314
  %v5323 = vunpack.c.l.b16 %v5315
  %v5324 = vunpack.c.l.b16 %v5316
  %v5325 = vpack.c.b16 %v5322, %v5321
  %v5326 = vpack.c.b16 %v5324, %v5323
  %v5330 = vsel %vm4695, %v5312, 0
  %5332 = vmatprep.subr.bf16.mxu0 0
  %5333 = vmatpush1.bf16.msra.mxu0 %v5325
  %5334 = vmatprep.subr.bf16.mxu0 0
  %5335 = vmatpush1.bf16.msra.mxu0 %v5326
  %5336 = vmatprep.subr.bf16.mxu0 0
  %5337 = vmatpush1.bf16.msra.mxu0 0
  %5338 = vmatprep.subr.bf16.mxu0 0
  %5339 = vmatpush1.bf16.msra.mxu0 0
  %5340 = vmatprep.subr.bf16.mxu0 0
  %5341 = vmatpush1.bf16.msra.mxu0 0
  %5342 = vmatprep.subr.bf16.mxu0 0
  %5343 = vmatpush1.bf16.msra.mxu0 0
  %5344 = vmatprep.subr.bf16.mxu0 0
  %5345 = vmatpush1.bf16.msra.mxu0 0
  %5346 = vmatprep.subr.bf16.mxu0 0
  %5347 = vmatpush1.bf16.msra.mxu0 0
  %5348 = vmatprep.subr.bf16.mxu0 0
  %5349 = vmatpush1.bf16.msra.mxu0 0
  %5350 = vmatprep.subr.bf16.mxu0 0
  %5351 = vmatpush1.bf16.msra.mxu0 0
  %5352 = vmatprep.subr.bf16.mxu0 0
  %5353 = vmatpush1.bf16.msra.mxu0 0
  %5354 = vmatprep.subr.bf16.mxu0 0
  %5355 = vmatpush1.bf16.msra.mxu0 0
  %5356 = vmatprep.subr.bf16.mxu0 0
  %5357 = vmatpush1.bf16.msra.mxu0 0
  %5358 = vmatprep.subr.bf16.mxu0 0
  %5359 = vmatpush1.bf16.msra.mxu0 0
  %5360 = vmatprep.subr.bf16.mxu0 0
  %5361 = vmatpush1.bf16.msra.mxu0 0
  %5362 = vmatprep.subr.bf16.mxu0 0
  %5363 = vmatpush1.bf16.msra.mxu0 0
  %5364 = vmatprep.mubr.bf16.mxu0 0
  %5365 = vmatmul.mubr.bf16.gmra.mrb[0].mxu0 %v5330
  %v5366 = vpop.f32.mrb[0].mxu0
  %v5367 = vadd.f32 0.0, %v5366
  %v5368 = vpop.f32.mrb[0].mxu0
  %v5369 = vpop.f32.mrb[0].mxu0
  %v5370 = vpop.f32.mrb[0].mxu0
  %5371 = vdwg.mxu0
  %v5372 = vadd.f32 %v5310, %v5367
  %v5373 = vld [vmem:[#allocation3 + $0x10] sm:$0x3]
  %v5374 = vpack.c.bf16 %v5373, %v5373
  %v5375 = vld [vmem:[%s7 + $0x80] sm:$0xf]
  %v5376 = vld [vmem:[%s7 + $0x84] sm:$0xf]
  %v5377 = vld [vmem:[%s7 + $0x88] sm:$0xf]
  %v5378 = vld [vmem:[%s7 + $0x8c] sm:$0xf]
  %v5383 = vunpack.c.l.b16 %v5375
  %v5384 = vunpack.c.l.b16 %v5376
  %v5385 = vunpack.c.l.b16 %v5377
  %v5386 = vunpack.c.l.b16 %v5378
  %v5387 = vpack.c.b16 %v5384, %v5383
  %v5388 = vpack.c.b16 %v5386, %v5385
  %v5392 = vsel %vm4695, %v5374, 0
  %5394 = vmatprep.subr.bf16.mxu0 0
  %5395 = vmatpush1.bf16.msra.mxu0 %v5387
  %5396 = vmatprep.subr.bf16.mxu0 0
  %5397 = vmatpush1.bf16.msra.mxu0 %v5388
  %5398 = vmatprep.subr.bf16.mxu0 0
  %5399 = vmatpush1.bf16.msra.mxu0 0
  %5400 = vmatprep.subr.bf16.mxu0 0
  %5401 = vmatpush1.bf16.msra.mxu0 0
  %5402 = vmatprep.subr.bf16.mxu0 0
  %5403 = vmatpush1.bf16.msra.mxu0 0
  %5404 = vmatprep.subr.bf16.mxu0 0
  %5405 = vmatpush1.bf16.msra.mxu0 0
  %5406 = vmatprep.subr.bf16.mxu0 0
  %5407 = vmatpush1.bf16.msra.mxu0 0
  %5408 = vmatprep.subr.bf16.mxu0 0
  %5409 = vmatpush1.bf16.msra.mxu0 0
  %5410 = vmatprep.subr.bf16.mxu0 0
  %5411 = vmatpush1.bf16.msra.mxu0 0
  %5412 = vmatprep.subr.bf16.mxu0 0
  %5413 = vmatpush1.bf16.msra.mxu0 0
  %5414 = vmatprep.subr.bf16.mxu0 0
  %5415 = vmatpush1.bf16.msra.mxu0 0
  %5416 = vmatprep.subr.bf16.mxu0 0
  %5417 = vmatpush1.bf16.msra.mxu0 0
  %5418 = vmatprep.subr.bf16.mxu0 0
  %5419 = vmatpush1.bf16.msra.mxu0 0
  %5420 = vmatprep.subr.bf16.mxu0 0
  %5421 = vmatpush1.bf16.msra.mxu0 0
  %5422 = vmatprep.subr.bf16.mxu0 0
  %5423 = vmatpush1.bf16.msra.mxu0 0
  %5424 = vmatprep.subr.bf16.mxu0 0
  %5425 = vmatpush1.bf16.msra.mxu0 0
  %5426 = vmatprep.mubr.bf16.mxu0 0
  %5427 = vmatmul.mubr.bf16.gmra.mrb[0].mxu0 %v5392
  %v5428 = vpop.f32.mrb[0].mxu0
  %v5429 = vadd.f32 0.0, %v5428
  %v5430 = vpop.f32.mrb[0].mxu0
  %v5431 = vpop.f32.mrb[0].mxu0
  %v5432 = vpop.f32.mrb[0].mxu0
  %5433 = vdwg.mxu0
  %v5434 = vadd.f32 %v5372, %v5429
  %v5435 = vld [vmem:[#allocation3 + $0x12] sm:$0x3]
  %v5436 = vpack.c.bf16 %v5435, %v5435
  %v5437 = vld [vmem:[%s7 + $0x90] sm:$0xf]
  %v5438 = vld [vmem:[%s7 + $0x94] sm:$0xf]
  %v5439 = vld [vmem:[%s7 + $0x98] sm:$0xf]
  %v5440 = vld [vmem:[%s7 + $0x9c] sm:$0xf]
  %v5445 = vunpack.c.l.b16 %v5437
  %v5446 = vunpack.c.l.b16 %v5438
  %v5447 = vunpack.c.l.b16 %v5439
  %v5448 = vunpack.c.l.b16 %v5440
  %v5449 = vpack.c.b16 %v5446, %v5445
  %v5450 = vpack.c.b16 %v5448, %v5447
  %v5454 = vsel %vm4695, %v5436, 0
  %5456 = vmatprep.subr.bf16.mxu0 0
  %5457 = vmatpush1.bf16.msra.mxu0 %v5449
  %5458 = vmatprep.subr.bf16.mxu0 0
  %5459 = vmatpush1.bf16.msra.mxu0 %v5450
  %5460 = vmatprep.subr.bf16.mxu0 0
  %5461 = vmatpush1.bf16.msra.mxu0 0
  %5462 = vmatprep.subr.bf16.mxu0 0
  %5463 = vmatpush1.bf16.msra.mxu0 0
  %5464 = vmatprep.subr.bf16.mxu0 0
  %5465 = vmatpush1.bf16.msra.mxu0 0
  %5466 = vmatprep.subr.bf16.mxu0 0
  %5467 = vmatpush1.bf16.msra.mxu0 0
  %5468 = vmatprep.subr.bf16.mxu0 0
  %5469 = vmatpush1.bf16.msra.mxu0 0
  %5470 = vmatprep.subr.bf16.mxu0 0
  %5471 = vmatpush1.bf16.msra.mxu0 0
  %5472 = vmatprep.subr.bf16.mxu0 0
  %5473 = vmatpush1.bf16.msra.mxu0 0
  %5474 = vmatprep.subr.bf16.mxu0 0
  %5475 = vmatpush1.bf16.msra.mxu0 0
  %5476 = vmatprep.subr.bf16.mxu0 0
  %5477 = vmatpush1.bf16.msra.mxu0 0
  %5478 = vmatprep.subr.bf16.mxu0 0
  %5479 = vmatpush1.bf16.msra.mxu0 0
  %5480 = vmatprep.subr.bf16.mxu0 0
  %5481 = vmatpush1.bf16.msra.mxu0 0
  %5482 = vmatprep.subr.bf16.mxu0 0
  %5483 = vmatpush1.bf16.msra.mxu0 0
  %5484 = vmatprep.subr.bf16.mxu0 0
  %5485 = vmatpush1.bf16.msra.mxu0 0
  %5486 = vmatprep.subr.bf16.mxu0 0
  %5487 = vmatpush1.bf16.msra.mxu0 0
  %5488 = vmatprep.mubr.bf16.mxu0 0
  %5489 = vmatmul.mubr.bf16.gmra.mrb[0].mxu0 %v5454
  %v5490 = vpop.f32.mrb[0].mxu0
  %v5491 = vadd.f32 0.0, %v5490
  %v5492 = vpop.f32.mrb[0].mxu0
  %v5493 = vpop.f32.mrb[0].mxu0
  %v5494 = vpop.f32.mrb[0].mxu0
  %5495 = vdwg.mxu0
  %v5496 = vadd.f32 %v5434, %v5491
  %v5497 = vld [vmem:[#allocation3 + $0x14] sm:$0x3]
  %v5498 = vpack.c.bf16 %v5497, %v5497
  %v5499 = vld [vmem:[%s7 + $0xa0] sm:$0xf]
  %v5500 = vld [vmem:[%s7 + $0xa4] sm:$0xf]
  %v5501 = vld [vmem:[%s7 + $0xa8] sm:$0xf]
  %v5502 = vld [vmem:[%s7 + $0xac] sm:$0xf]
  %v5507 = vunpack.c.l.b16 %v5499
  %v5508 = vunpack.c.l.b16 %v5500
  %v5509 = vunpack.c.l.b16 %v5501
  %v5510 = vunpack.c.l.b16 %v5502
  %v5511 = vpack.c.b16 %v5508, %v5507
  %v5512 = vpack.c.b16 %v5510, %v5509
  %v5516 = vsel %vm4695, %v5498, 0
  %5518 = vmatprep.subr.bf16.mxu0 0
  %5519 = vmatpush1.bf16.msra.mxu0 %v5511
  %5520 = vmatprep.subr.bf16.mxu0 0
  %5521 = vmatpush1.bf16.msra.mxu0 %v5512
  %5522 = vmatprep.subr.bf16.mxu0 0
  %5523 = vmatpush1.bf16.msra.mxu0 0
  %5524 = vmatprep.subr.bf16.mxu0 0
  %5525 = vmatpush1.bf16.msra.mxu0 0
  %5526 = vmatprep.subr.bf16.mxu0 0
  %5527 = vmatpush1.bf16.msra.mxu0 0
  %5528 = vmatprep.subr.bf16.mxu0 0
  %5529 = vmatpush1.bf16.msra.mxu0 0
  %5530 = vmatprep.subr.bf16.mxu0 0
  %5531 = vmatpush1.bf16.msra.mxu0 0
  %5532 = vmatprep.subr.bf16.mxu0 0
  %5533 = vmatpush1.bf16.msra.mxu0 0
  %5534 = vmatprep.subr.bf16.mxu0 0
  %5535 = vmatpush1.bf16.msra.mxu0 0
  %5536 = vmatprep.subr.bf16.mxu0 0
  %5537 = vmatpush1.bf16.msra.mxu0 0
  %5538 = vmatprep.subr.bf16.mxu0 0
  %5539 = vmatpush1.bf16.msra.mxu0 0
  %5540 = vmatprep.subr.bf16.mxu0 0
  %5541 = vmatpush1.bf16.msra.mxu0 0
  %5542 = vmatprep.subr.bf16.mxu0 0
  %5543 = vmatpush1.bf16.msra.mxu0 0
  %5544 = vmatprep.subr.bf16.mxu0 0
  %5545 = vmatpush1.bf16.msra.mxu0 0
  %5546 = vmatprep.subr.bf16.mxu0 0
  %5547 = vmatpush1.bf16.msra.mxu0 0
  %5548 = vmatprep.subr.bf16.mxu0 0
  %5549 = vmatpush1.bf16.msra.mxu0 0
  %5550 = vmatprep.mubr.bf16.mxu0 0
  %5551 = vmatmul.mubr.bf16.gmra.mrb[0].mxu0 %v5516
  %v5552 = vpop.f32.mrb[0].mxu0
  %v5553 = vadd.f32 0.0, %v5552
  %v5554 = vpop.f32.mrb[0].mxu0
  %v5555 = vpop.f32.mrb[0].mxu0
  %v5556 = vpop.f32.mrb[0].mxu0
  %5557 = vdwg.mxu0
  %v5558 = vadd.f32 %v5496, %v5553
  %v5559 = vld [vmem:[#allocation3 + $0x16] sm:$0x3]
  %v5560 = vpack.c.bf16 %v5559, %v5559
  %v5561 = vld [vmem:[%s7 + $0xb0] sm:$0xf]
  %v5562 = vld [vmem:[%s7 + $0xb4] sm:$0xf]
  %v5563 = vld [vmem:[%s7 + $0xb8] sm:$0xf]
  %v5564 = vld [vmem:[%s7 + $0xbc] sm:$0xf]
  %v5569 = vunpack.c.l.b16 %v5561
  %v5570 = vunpack.c.l.b16 %v5562
  %v5571 = vunpack.c.l.b16 %v5563
  %v5572 = vunpack.c.l.b16 %v5564
  %v5573 = vpack.c.b16 %v5570, %v5569
  %v5574 = vpack.c.b16 %v5572, %v5571
  %v5578 = vsel %vm4695, %v5560, 0
  %5580 = vmatprep.subr.bf16.mxu0 0
  %5581 = vmatpush1.bf16.msra.mxu0 %v5573
  %5582 = vmatprep.subr.bf16.mxu0 0
  %5583 = vmatpush1.bf16.msra.mxu0 %v5574
  %5584 = vmatprep.subr.bf16.mxu0 0
  %5585 = vmatpush1.bf16.msra.mxu0 0
  %5586 = vmatprep.subr.bf16.mxu0 0
  %5587 = vmatpush1.bf16.msra.mxu0 0
  %5588 = vmatprep.subr.bf16.mxu0 0
  %5589 = vmatpush1.bf16.msra.mxu0 0
  %5590 = vmatprep.subr.bf16.mxu0 0
  %5591 = vmatpush1.bf16.msra.mxu0 0
  %5592 = vmatprep.subr.bf16.mxu0 0
  %5593 = vmatpush1.bf16.msra.mxu0 0
  %5594 = vmatprep.subr.bf16.mxu0 0
  %5595 = vmatpush1.bf16.msra.mxu0 0
  %5596 = vmatprep.subr.bf16.mxu0 0
  %5597 = vmatpush1.bf16.msra.mxu0 0
  %5598 = vmatprep.subr.bf16.mxu0 0
  %5599 = vmatpush1.bf16.msra.mxu0 0
  %5600 = vmatprep.subr.bf16.mxu0 0
  %5601 = vmatpush1.bf16.msra.mxu0 0
  %5602 = vmatprep.subr.bf16.mxu0 0
  %5603 = vmatpush1.bf16.msra.mxu0 0
  %5604 = vmatprep.subr.bf16.mxu0 0
  %5605 = vmatpush1.bf16.msra.mxu0 0
  %5606 = vmatprep.subr.bf16.mxu0 0
  %5607 = vmatpush1.bf16.msra.mxu0 0
  %5608 = vmatprep.subr.bf16.mxu0 0
  %5609 = vmatpush1.bf16.msra.mxu0 0
  %5610 = vmatprep.subr.bf16.mxu0 0
  %5611 = vmatpush1.bf16.msra.mxu0 0
  %5612 = vmatprep.mubr.bf16.mxu0 0
  %5613 = vmatmul.mubr.bf16.gmra.mrb[0].mxu0 %v5578
  %v5614 = vpop.f32.mrb[0].mxu0
  %v5615 = vadd.f32 0.0, %v5614
  %v5616 = vpop.f32.mrb[0].mxu0
  %v5617 = vpop.f32.mrb[0].mxu0
  %v5618 = vpop.f32.mrb[0].mxu0
  %5619 = vdwg.mxu0
  %v5620 = vadd.f32 %v5558, %v5615
  %v5621 = vld [vmem:[#allocation3 + $0x18] sm:$0x3]
  %v5622 = vpack.c.bf16 %v5621, %v5621
  %v5623 = vld [vmem:[%s7 + $0xc0] sm:$0xf]
  %v5624 = vld [vmem:[%s7 + $0xc4] sm:$0xf]
  %v5625 = vld [vmem:[%s7 + $0xc8] sm:$0xf]
  %v5626 = vld [vmem:[%s7 + $0xcc] sm:$0xf]
  %v5631 = vunpack.c.l.b16 %v5623
  %v5632 = vunpack.c.l.b16 %v5624
  %v5633 = vunpack.c.l.b16 %v5625
  %v5634 = vunpack.c.l.b16 %v5626
  %v5635 = vpack.c.b16 %v5632, %v5631
  %v5636 = vpack.c.b16 %v5634, %v5633
  %v5640 = vsel %vm4695, %v5622, 0
  %5642 = vmatprep.subr.bf16.mxu0 0
  %5643 = vmatpush1.bf16.msra.mxu0 %v5635
  %5644 = vmatprep.subr.bf16.mxu0 0
  %5645 = vmatpush1.bf16.msra.mxu0 %v5636
  %5646 = vmatprep.subr.bf16.mxu0 0
  %5647 = vmatpush1.bf16.msra.mxu0 0
  %5648 = vmatprep.subr.bf16.mxu0 0
  %5649 = vmatpush1.bf16.msra.mxu0 0
  %5650 = vmatprep.subr.bf16.mxu0 0
  %5651 = vmatpush1.bf16.msra.mxu0 0
  %5652 = vmatprep.subr.bf16.mxu0 0
  %5653 = vmatpush1.bf16.msra.mxu0 0
  %5654 = vmatprep.subr.bf16.mxu0 0
  %5655 = vmatpush1.bf16.msra.mxu0 0
  %5656 = vmatprep.subr.bf16.mxu0 0
  %5657 = vmatpush1.bf16.msra.mxu0 0
  %5658 = vmatprep.subr.bf16.mxu0 0
  %5659 = vmatpush1.bf16.msra.mxu0 0
  %5660 = vmatprep.subr.bf16.mxu0 0
  %5661 = vmatpush1.bf16.msra.mxu0 0
  %5662 = vmatprep.subr.bf16.mxu0 0
  %5663 = vmatpush1.bf16.msra.mxu0 0
  %5664 = vmatprep.subr.bf16.mxu0 0
  %5665 = vmatpush1.bf16.msra.mxu0 0
  %5666 = vmatprep.subr.bf16.mxu0 0
  %5667 = vmatpush1.bf16.msra.mxu0 0
  %5668 = vmatprep.subr.bf16.mxu0 0
  %5669 = vmatpush1.bf16.msra.mxu0 0
  %5670 = vmatprep.subr.bf16.mxu0 0
  %5671 = vmatpush1.bf16.msra.mxu0 0
  %5672 = vmatprep.subr.bf16.mxu0 0
  %5673 = vmatpush1.bf16.msra.mxu0 0
  %5674 = vmatprep.mubr.bf16.mxu0 0
  %5675 = vmatmul.mubr.bf16.gmra.mrb[0].mxu0 %v5640
  %v5676 = vpop.f32.mrb[0].mxu0
  %v5677 = vadd.f32 0.0, %v5676
  %v5678 = vpop.f32.mrb[0].mxu0
  %v5679 = vpop.f32.mrb[0].mxu0
  %v5680 = vpop.f32.mrb[0].mxu0
  %5681 = vdwg.mxu0
  %v5682 = vadd.f32 %v5620, %v5677
  %v5683 = vld [vmem:[#allocation3 + $0x1a] sm:$0x3]
  %v5684 = vpack.c.bf16 %v5683, %v5683
  %v5685 = vld [vmem:[%s7 + $0xd0] sm:$0xf]
  %v5686 = vld [vmem:[%s7 + $0xd4] sm:$0xf]
  %v5687 = vld [vmem:[%s7 + $0xd8] sm:$0xf]
  %v5688 = vld [vmem:[%s7 + $0xdc] sm:$0xf]
  %v5693 = vunpack.c.l.b16 %v5685
  %v5694 = vunpack.c.l.b16 %v5686
  %v5695 = vunpack.c.l.b16 %v5687
  %v5696 = vunpack.c.l.b16 %v5688
  %v5697 = vpack.c.b16 %v5694, %v5693
  %v5698 = vpack.c.b16 %v5696, %v5695
  %v5702 = vsel %vm4695, %v5684, 0
  %5704 = vmatprep.subr.bf16.mxu0 0
  %5705 = vmatpush1.bf16.msra.mxu0 %v5697
  %5706 = vmatprep.subr.bf16.mxu0 0
  %5707 = vmatpush1.bf16.msra.mxu0 %v5698
  %5708 = vmatprep.subr.bf16.mxu0 0
  %5709 = vmatpush1.bf16.msra.mxu0 0
  %5710 = vmatprep.subr.bf16.mxu0 0
  %5711 = vmatpush1.bf16.msra.mxu0 0
  %5712 = vmatprep.subr.bf16.mxu0 0
  %5713 = vmatpush1.bf16.msra.mxu0 0
  %5714 = vmatprep.subr.bf16.mxu0 0
  %5715 = vmatpush1.bf16.msra.mxu0 0
  %5716 = vmatprep.subr.bf16.mxu0 0
  %5717 = vmatpush1.bf16.msra.mxu0 0
  %5718 = vmatprep.subr.bf16.mxu0 0
  %5719 = vmatpush1.bf16.msra.mxu0 0
  %5720 = vmatprep.subr.bf16.mxu0 0
  %5721 = vmatpush1.bf16.msra.mxu0 0
  %5722 = vmatprep.subr.bf16.mxu0 0
  %5723 = vmatpush1.bf16.msra.mxu0 0
  %5724 = vmatprep.subr.bf16.mxu0 0
  %5725 = vmatpush1.bf16.msra.mxu0 0
  %5726 = vmatprep.subr.bf16.mxu0 0
  %5727 = vmatpush1.bf16.msra.mxu0 0
  %5728 = vmatprep.subr.bf16.mxu0 0
  %5729 = vmatpush1.bf16.msra.mxu0 0
  %5730 = vmatprep.subr.bf16.mxu0 0
  %5731 = vmatpush1.bf16.msra.mxu0 0
  %5732 = vmatprep.subr.bf16.mxu0 0
  %5733 = vmatpush1.bf16.msra.mxu0 0
  %5734 = vmatprep.subr.bf16.mxu0 0
  %5735 = vmatpush1.bf16.msra.mxu0 0
  %5736 = vmatprep.mubr.bf16.mxu0 0
  %5737 = vmatmul.mubr.bf16.gmra.mrb[0].mxu0 %v5702
  %v5738 = vpop.f32.mrb[0].mxu0
  %v5739 = vadd.f32 0.0, %v5738
  %v5740 = vpop.f32.mrb[0].mxu0
  %v5741 = vpop.f32.mrb[0].mxu0
  %v5742 = vpop.f32.mrb[0].mxu0
  %5743 = vdwg.mxu0
  %v5744 = vadd.f32 %v5682, %v5739
  %v5745 = vld [vmem:[#allocation3 + $0x1c] sm:$0x3]
  %v5746 = vpack.c.bf16 %v5745, %v5745
  %v5747 = vld [vmem:[%s7 + $0xe0] sm:$0xf]
  %v5748 = vld [vmem:[%s7 + $0xe4] sm:$0xf]
  %v5749 = vld [vmem:[%s7 + $0xe8] sm:$0xf]
  %v5750 = vld [vmem:[%s7 + $0xec] sm:$0xf]
  %v5755 = vunpack.c.l.b16 %v5747
  %v5756 = vunpack.c.l.b16 %v5748
  %v5757 = vunpack.c.l.b16 %v5749
  %v5758 = vunpack.c.l.b16 %v5750
  %v5759 = vpack.c.b16 %v5756, %v5755
  %v5760 = vpack.c.b16 %v5758, %v5757
  %v5764 = vsel %vm4695, %v5746, 0
  %5766 = vmatprep.subr.bf16.mxu0 0
  %5767 = vmatpush1.bf16.msra.mxu0 %v5759
  %5768 = vmatprep.subr.bf16.mxu0 0
  %5769 = vmatpush1.bf16.msra.mxu0 %v5760
  %5770 = vmatprep.subr.bf16.mxu0 0
  %5771 = vmatpush1.bf16.msra.mxu0 0
  %5772 = vmatprep.subr.bf16.mxu0 0
  %5773 = vmatpush1.bf16.msra.mxu0 0
  %5774 = vmatprep.subr.bf16.mxu0 0
  %5775 = vmatpush1.bf16.msra.mxu0 0
  %5776 = vmatprep.subr.bf16.mxu0 0
  %5777 = vmatpush1.bf16.msra.mxu0 0
  %5778 = vmatprep.subr.bf16.mxu0 0
  %5779 = vmatpush1.bf16.msra.mxu0 0
  %5780 = vmatprep.subr.bf16.mxu0 0
  %5781 = vmatpush1.bf16.msra.mxu0 0
  %5782 = vmatprep.subr.bf16.mxu0 0
  %5783 = vmatpush1.bf16.msra.mxu0 0
  %5784 = vmatprep.subr.bf16.mxu0 0
  %5785 = vmatpush1.bf16.msra.mxu0 0
  %5786 = vmatprep.subr.bf16.mxu0 0
  %5787 = vmatpush1.bf16.msra.mxu0 0
  %5788 = vmatprep.subr.bf16.mxu0 0
  %5789 = vmatpush1.bf16.msra.mxu0 0
  %5790 = vmatprep.subr.bf16.mxu0 0
  %5791 = vmatpush1.bf16.msra.mxu0 0
  %5792 = vmatprep.subr.bf16.mxu0 0
  %5793 = vmatpush1.bf16.msra.mxu0 0
  %5794 = vmatprep.subr.bf16.mxu0 0
  %5795 = vmatpush1.bf16.msra.mxu0 0
  %5796 = vmatprep.subr.bf16.mxu0 0
  %5797 = vmatpush1.bf16.msra.mxu0 0
  %5798 = vmatprep.mubr.bf16.mxu0 0
  %5799 = vmatmul.mubr.bf16.gmra.mrb[0].mxu0 %v5764
  %v5800 = vpop.f32.mrb[0].mxu0
  %v5801 = vadd.f32 0.0, %v5800
  %v5802 = vpop.f32.mrb[0].mxu0
  %v5803 = vpop.f32.mrb[0].mxu0
  %v5804 = vpop.f32.mrb[0].mxu0
  %5805 = vdwg.mxu0
  %v5806 = vadd.f32 %v5744, %v5801
  %v5807 = vld [vmem:[#allocation3 + $0x1e] sm:$0x3]
  %v5808 = vpack.c.bf16 %v5807, %v5807
  %v5809 = vld [vmem:[%s7 + $0xf0] sm:$0xf]
  %v5810 = vld [vmem:[%s7 + $0xf4] sm:$0xf]
  %v5811 = vld [vmem:[%s7 + $0xf8] sm:$0xf]
  %v5812 = vld [vmem:[%s7 + $0xfc] sm:$0xf]
  %v5817 = vunpack.c.l.b16 %v5809
  %v5818 = vunpack.c.l.b16 %v5810
  %v5819 = vunpack.c.l.b16 %v5811
  %v5820 = vunpack.c.l.b16 %v5812
  %v5821 = vpack.c.b16 %v5818, %v5817
  %v5822 = vpack.c.b16 %v5820, %v5819
  %v5826 = vsel %vm4695, %v5808, 0
  %5828 = vmatprep.subr.bf16.mxu0 0
  %5829 = vmatpush1.bf16.msra.mxu0 %v5821
  %5830 = vmatprep.subr.bf16.mxu0 0
  %5831 = vmatpush1.bf16.msra.mxu0 %v5822
  %5832 = vmatprep.subr.bf16.mxu0 0
  %5833 = vmatpush1.bf16.msra.mxu0 0
  %5834 = vmatprep.subr.bf16.mxu0 0
  %5835 = vmatpush1.bf16.msra.mxu0 0
  %5836 = vmatprep.subr.bf16.mxu0 0
  %5837 = vmatpush1.bf16.msra.mxu0 0
  %5838 = vmatprep.subr.bf16.mxu0 0
  %5839 = vmatpush1.bf16.msra.mxu0 0
  %5840 = vmatprep.subr.bf16.mxu0 0
  %5841 = vmatpush1.bf16.msra.mxu0 0
  %5842 = vmatprep.subr.bf16.mxu0 0
  %5843 = vmatpush1.bf16.msra.mxu0 0
  %5844 = vmatprep.subr.bf16.mxu0 0
  %5845 = vmatpush1.bf16.msra.mxu0 0
  %5846 = vmatprep.subr.bf16.mxu0 0
  %5847 = vmatpush1.bf16.msra.mxu0 0
  %5848 = vmatprep.subr.bf16.mxu0 0
  %5849 = vmatpush1.bf16.msra.mxu0 0
  %5850 = vmatprep.subr.bf16.mxu0 0
  %5851 = vmatpush1.bf16.msra.mxu0 0
  %5852 = vmatprep.subr.bf16.mxu0 0
  %5853 = vmatpush1.bf16.msra.mxu0 0
  %5854 = vmatprep.subr.bf16.mxu0 0
  %5855 = vmatpush1.bf16.msra.mxu0 0
  %5856 = vmatprep.subr.bf16.mxu0 0
  %5857 = vmatpush1.bf16.msra.mxu0 0
  %5858 = vmatprep.subr.bf16.mxu0 0
  %5859 = vmatpush1.bf16.msra.mxu0 0
  %5860 = vmatprep.mubr.bf16.mxu0 0
  %5861 = vmatmul.mubr.bf16.gmra.mrb[0].mxu0 %v5826
  %v5862 = vpop.f32.mrb[0].mxu0
  %v5863 = vadd.f32 0.0, %v5862
  %v5864 = vpop.f32.mrb[0].mxu0
  %v5865 = vpop.f32.mrb[0].mxu0
  %v5866 = vpop.f32.mrb[0].mxu0
  %5867 = vdwg.mxu0
  %v5868 = vadd.f32 %v5806, %v5863
  %v5869 = vld [vmem:[#allocation4] sm:$0x1]
  %v5871 = vlaneseq
  %v5872 = vshrl.u32 %v5871, 7
  %v5873 = vsub.s32 0, %v5872
  %v5874 = vrot.slane %v5869, %v5873
  %v5876 = vadd.f32 %v5868, %v5874
  %vm5877 = vcmask 1024
  %5878 = vst.msk [vmem:[%s9] sm:$0x3] %vm5877, %v5876
  // Predicated region
  $region38: #{discriminator_forward.1} parent=0 // pred_check
    _
  $region39: #{discriminator_forward.1} parent=0 // pred_check_branch
    %5880 = sbr.rel (0) target = $region41
  $region40: #{discriminator_forward.1} parent=0 // pred_region
    _
  $region41: #{discriminator_forward.1} parent=0 // pred_fallthru
    _
  // Predicated region
  $region42: #{discriminator_forward.1} parent=0 // pred_check
    _
  $region43: #{discriminator_forward.1} parent=0 // pred_check_branch
    %5882 = sbr.rel (0) target = $region45
  $region44: #{discriminator_forward.1} parent=0 // pred_region
    _
  $region45: #{discriminator_forward.1} parent=0 // pred_fallthru
    _

</llo_original>
